<compile_context>
chip_gen: v7x
topology: tpu7x:2x2x1
jax: 0.10.0
libtpu: 0.0.40
codegen_flags: <defaults>
</compile_context>

<pallas_src>
import numpy as np
import jax
import jax.numpy as jnp
from jax import lax
from jax.experimental import pallas as pl
from jax.experimental.pallas import tpu as pltpu

# Small hyper-parameters consistent with the PyTorch module.
BATCH = 2
SEQ = 8            # decoder seq == encoder seq (same positional mask used for both)
EMB = 32           # embedding_dim
N_HEADS = 4        # n_heads
ATTN_HIDDEN = 8    # attention_hidden_dim (n_heads * attention_hidden_dim = 32)
FF_HIDDEN = 64     # linear_hidden_dim
LN_EPS = 1e-5      # torch.nn.LayerNorm default eps
QK_SCALE = 1.0 / float(np.sqrt(ATTN_HIDDEN))
NEG = -1e30        # finite "minus infinity" for additive masks
DH = N_HEADS * ATTN_HIDDEN

# Order of the (pre-fused) weight arguments handed to the kernel.
KERNEL_WEIGHTS = ["wqkv_s", "wo_s", "bo_s", "g1", "be1",
                  "wq_c", "wkv_c", "wo_c", "bo_c", "g2", "be2",
                  "w1", "bf1", "w2", "bf2", "g3", "be3"]


def decoder_block_kernel(x_ref, enc_ref, smask_ref, cmask_ref,
                         wqkv_s_ref, wo_s_ref, bo_s_ref, g1_ref, be1_ref,
                         wq_c_ref, wkv_c_ref, wo_c_ref, bo_c_ref, g2_ref, be2_ref,
                         w1_ref, bf1_ref, w2_ref, bf2_ref, g3_ref, be3_ref,
                         o_ref):
    f32 = jnp.float32
    x = x_ref[...]       # (B*S, E)
    enc = enc_ref[...]   # (B*S, E)

    def layer_norm(t, g, b):
        mu = jnp.mean(t, axis=-1, keepdims=True)
        var = jnp.mean((t - mu) ** 2, axis=-1, keepdims=True)
        return (t - mu) * lax.rsqrt(var + LN_EPS) * g + b

    def attend(q, k, v, wo, bo, add_mask):
        # q, k, v: (B*S, NH*HD) f32; q already scaled by 1/sqrt(head_dim).
        # Per-(batch, head) score tiles, stacked along the sublane axis -> one softmax.
        scores = []
        for b in range(BATCH):
            qb = q[b * SEQ:(b + 1) * SEQ]
            kb = k[b * SEQ:(b + 1) * SEQ]
            for h in range(N_HEADS):
                sl = slice(h * ATTN_HIDDEN, (h + 1) * ATTN_HIDDEN)
                scores.append(lax.dot_general(
                    qb[:, sl], kb[:, sl],
                    dimension_numbers=(((1,), (1,)), ((), ())),   # q @ k.T, no transpose
                    preferred_element_type=f32))
        s = jnp.concatenate(scores, axis=0) + add_mask            # (B*NH*S, S)
        s = s - jnp.max(s, axis=-1, keepdims=True)
        p = jnp.exp(s)
        p = p * pl.reciprocal(jnp.sum(p, axis=-1, keepdims=True), approx=True)

        # Fold the output projection into the per-head path, accumulate into (S, E).
        outs = []
        for b in range(BATCH):
            vb = v[b * SEQ:(b + 1) * SEQ]
            acc = jnp.zeros((SEQ, EMB), f32)
            for h in range(N_HEADS):
                sl = slice(h * ATTN_HIDDEN, (h + 1) * ATTN_HIDDEN)
                r0 = (b * N_HEADS + h) * SEQ
                p_bh = p[r0:r0 + SEQ, :]                                          # (S, S)
                o_h = jnp.dot(p_bh, vb[:, sl], preferred_element_type=f32)        # (S, HD)
                acc = acc + jnp.dot(o_h, wo[sl, :], preferred_element_type=f32)   # (S, E)
            outs.append(acc)
        return jnp.concatenate(outs, axis=0) + bo                 # (B*S, E)

    # 1) Masked (causal + positional) self-attention + residual + LayerNorm.
    qkv = jnp.dot(x, wqkv_s_ref[...], preferred_element_type=f32)        # (B*S, 3*NH*HD)
    a1 = attend(qkv[:, :DH] * QK_SCALE, qkv[:, DH:2 * DH], qkv[:, 2 * DH:],
                wo_s_ref[...], bo_s_ref[...], smask_ref[...])
    h1 = layer_norm(x + a1, g1_ref[...], be1_ref[...])

    # 2) Cross-attention over encoder output + residual + LayerNorm.
    qc = jnp.dot(h1, wq_c_ref[...], preferred_element_type=f32) * QK_SCALE
    kv = jnp.dot(enc, wkv_c_ref[...], preferred_element_type=f32)        # (B*S, 2*NH*HD)
    a2 = attend(qc, kv[:, :DH], kv[:, DH:],
                wo_c_ref[...], bo_c_ref[...], cmask_ref[...])
    h2 = layer_norm(h1 + a2, g2_ref[...], be2_ref[...])

    # 3) Feed-forward (batch-fused) + residual + LayerNorm.
    f = jnp.dot(h2, w1_ref[...], preferred_element_type=f32) + bf1_ref[...]
    f = jnp.maximum(f, 0.0)
    f = jnp.dot(f, w2_ref[...], preferred_element_type=f32) + bf2_ref[...]
    o_ref[...] = layer_norm(h2 + f, g3_ref[...], be3_ref[...])


def decoder_block(x, encoded, positional_mask, params):
    B, S, E = x.shape

    # Additive masks, pre-stacked to match the kernel's (batch, head) sublane stacking.
    pos_add = jnp.where(positional_mask, 0.0, NEG).astype(jnp.float32)          # (B, S)
    causal_add = jnp.where(jnp.arange(S)[:, None] >= jnp.arange(S)[None, :],
                           0.0, NEG).astype(jnp.float32)                        # (S, S)
    self_mask = causal_add[None, None, :, :] + pos_add[:, None, None, :]        # (B,1,S,S)
    self_mask = jnp.broadcast_to(self_mask, (B, N_HEADS, S, S)).reshape(B * N_HEADS * S, S)
    cross_mask = jnp.broadcast_to(pos_add[:, None, None, :],
                                  (B, N_HEADS, S, S)).reshape(B * N_HEADS * S, S)

    # One-time weight prep: fuse Q/K/V (self) and K/V (cross) projection weights
    # so each attention block needs fewer MXU launches inside the kernel.
    fused = dict(params)
    fused["wqkv_s"] = jnp.concatenate([params["wq_s"], params["wk_s"], params["wv_s"]], axis=1)
    fused["wkv_c"] = jnp.concatenate([params["wk_c"], params["wv_c"]], axis=1)
    weights = [fused[name] for name in KERNEL_WEIGHTS]

    x2d = x.reshape(B * S, E)
    enc2d = encoded.reshape(B * S, E)

    n_inputs = 4 + len(weights)
    out2d = pl.pallas_call(
        decoder_block_kernel,
        out_shape=jax.ShapeDtypeStruct((B * S, E), jnp.float32),
        in_specs=[pl.BlockSpec(memory_space=pltpu.MemorySpace.VMEM)] * n_inputs,
        out_specs=pl.BlockSpec(memory_space=pltpu.MemorySpace.VMEM),
    )(x2d, enc2d, self_mask, cross_mask, *weights)
    return out2d.reshape(B, S, E)


# ---------------------------------------------------------------------------
# Pure-JAX reference mirroring the PyTorch DecoderBlock exactly.
# ---------------------------------------------------------------------------
def _mha_ref(q_in, kv_in, wq, wk, wv, wo, bo, pos_mask, future_mask):
    B, Sq, _ = q_in.shape
    Sk = kv_in.shape[1]
    split = lambda t, S_: t.reshape(B, S_, N_HEADS, ATTN_HIDDEN).transpose(0, 2, 1, 3)
    q = split(q_in @ wq, Sq)
    k = split(kv_in @ wk, Sk)
    v = split(kv_in @ wv, Sk)
    w = jnp.einsum("bhqd,bhkd->bhqk", q, k) / np.sqrt(ATTN_HIDDEN)
    w = w + jnp.where(pos_mask, 0.0, -jnp.inf)[:, None, None, :]
    if future_mask:
        r = jnp.arange(Sq)[:, None]
        c = jnp.arange(Sk)[None, :]
        w = w + jnp.where(c > r, -jnp.inf, 0.0)[None, None]
    w = jax.nn.softmax(w, axis=-1)
    o = jnp.einsum("bhqk,bhkd->bhqd", w, v).transpose(0, 2, 1, 3).reshape(B, Sq, -1)
    return o @ wo + bo[0]


def decoder_block_ref(x, encoded, pos_mask, p):
    def ln(t, g, b):
        mu = t.mean(-1, keepdims=True)
        var = ((t - mu) ** 2).mean(-1, keepdims=True)
        return (t - mu) / jnp.sqrt(var + LN_EPS) * g[0] + b[0]

    a1 = _mha_ref(x, x, p["wq_s"], p["wk_s"], p["wv_s"], p["wo_s"], p["bo_s"],
                  pos_mask, future_mask=True)
    h1 = ln(x + a1, p["g1"], p["be1"])
    a2 = _mha_ref(h1, encoded, p["wq_c"], p["wk_c"], p["wv_c"], p["wo_c"], p["bo_c"],
                  pos_mask, future_mask=False)
    h2 = ln(h1 + a2, p["g2"], p["be2"])
    f = jnp.maximum(h2 @ p["w1"] + p["bf1"][0], 0.0) @ p["w2"] + p["bf2"][0]
    return ln(h2 + f, p["g3"], p["be3"])


def init_params(key):
    ks = jax.random.split(key, 14)
    nh_hd = N_HEADS * ATTN_HIDDEN
    sc = 0.05
    lin = lambda k, shape: sc * jax.random.normal(k, shape, jnp.float32)
    return {
        # self-attention (q/k/v bias=False; out projection with bias), stored (in, out)
        "wq_s": lin(ks[0], (EMB, nh_hd)), "wk_s": lin(ks[1], (EMB, nh_hd)),
        "wv_s": lin(ks[2], (EMB, nh_hd)),
        "wo_s": lin(ks[3], (nh_hd, EMB)), "bo_s": lin(ks[4], (1, EMB)),
        "g1": jnp.ones((1, EMB), jnp.float32), "be1": jnp.zeros((1, EMB), jnp.float32),
        # cross-attention
        "wq_c": lin(ks[5], (EMB, nh_hd)), "wk_c": lin(ks[6], (EMB, nh_hd)),
        "wv_c": lin(ks[7], (EMB, nh_hd)),
        "wo_c": lin(ks[8], (nh_hd, EMB)), "bo_c": lin(ks[9], (1, EMB)),
        "g2": jnp.ones((1, EMB), jnp.float32), "be2": jnp.zeros((1, EMB), jnp.float32),
        # feed-forward
        "w1": lin(ks[10], (EMB, FF_HIDDEN)), "bf1": lin(ks[11], (1, FF_HIDDEN)),
        "w2": lin(ks[12], (FF_HIDDEN, EMB)), "bf2": lin(ks[13], (1, EMB)),
        "g3": jnp.ones((1, EMB), jnp.float32), "be3": jnp.zeros((1, EMB), jnp.float32),
    }


if __name__ == "__main__":
    key = jax.random.PRNGKey(0)
    k_x, k_e, k_p = jax.random.split(key, 3)

    x = jax.random.normal(k_x, (BATCH, SEQ, EMB), jnp.float32)
    encoded = jax.random.normal(k_e, (BATCH, SEQ, EMB), jnp.float32)
    # Positional mask: last position of batch element 1 is padding (False = masked).
    positional_mask = jnp.ones((BATCH, SEQ), dtype=jnp.bool_).at[1, -1].set(False)

    params = init_params(k_p)

    out = decoder_block(x, encoded, positional_mask, params)
    out = jax.block_until_ready(out)

    ref = decoder_block_ref(x, encoded, positional_mask, params)
    # tolerance accounts for the EUP approximate reciprocal in the softmax
    np.testing.assert_allclose(np.asarray(out), np.asarray(ref), rtol=2e-3, atol=2e-3)

    print("KERNEL_OK")
</pallas_src>

<mosaic_0001>
module attributes {stable_mosaic.version = 11 : i64} {
  func.func @decoder_block_kernel(%arg0: memref<16x32xf32, #tpu.memory_space<vmem>>, %arg1: memref<16x32xf32, #tpu.memory_space<vmem>>, %arg2: memref<64x8xf32, #tpu.memory_space<vmem>>, %arg3: memref<64x8xf32, #tpu.memory_space<vmem>>, %arg4: memref<32x96xf32, #tpu.memory_space<vmem>>, %arg5: memref<32x32xf32, #tpu.memory_space<vmem>>, %arg6: memref<1x32xf32, #tpu.memory_space<vmem>>, %arg7: memref<1x32xf32, #tpu.memory_space<vmem>>, %arg8: memref<1x32xf32, #tpu.memory_space<vmem>>, %arg9: memref<32x32xf32, #tpu.memory_space<vmem>>, %arg10: memref<32x64xf32, #tpu.memory_space<vmem>>, %arg11: memref<32x32xf32, #tpu.memory_space<vmem>>, %arg12: memref<1x32xf32, #tpu.memory_space<vmem>>, %arg13: memref<1x32xf32, #tpu.memory_space<vmem>>, %arg14: memref<1x32xf32, #tpu.memory_space<vmem>>, %arg15: memref<32x64xf32, #tpu.memory_space<vmem>>, %arg16: memref<1x64xf32, #tpu.memory_space<vmem>>, %arg17: memref<64x32xf32, #tpu.memory_space<vmem>>, %arg18: memref<1x32xf32, #tpu.memory_space<vmem>>, %arg19: memref<1x32xf32, #tpu.memory_space<vmem>>, %arg20: memref<1x32xf32, #tpu.memory_space<vmem>>, %arg21: memref<16x32xf32, #tpu.memory_space<vmem>>) attributes {dimension_semantics = [], scalar_prefetch = 0 : i64, scratch_operands = 0 : i64, tpu.core_type = #tpu.core_type<tc>} {
    %c0 = arith.constant 0 : index
    %c0_0 = arith.constant 0 : index
    %0 = vector.load %arg0[%c0, %c0_0] : memref<16x32xf32, #tpu.memory_space<vmem>>, vector<16x32xf32>
    %c0_1 = arith.constant 0 : index
    %c0_2 = arith.constant 0 : index
    %1 = vector.load %arg1[%c0_1, %c0_2] : memref<16x32xf32, #tpu.memory_space<vmem>>, vector<16x32xf32>
    %c0_3 = arith.constant 0 : index
    %c0_4 = arith.constant 0 : index
    %2 = vector.load %arg4[%c0_3, %c0_4] : memref<32x96xf32, #tpu.memory_space<vmem>>, vector<32x96xf32>
    %cst = arith.constant dense<0.000000e+00> : vector<16x96xf32>
    %3 = tpu.matmul %0, %2, %cst {dimension_numbers = #tpu.dot_dimension_numbers<[1], [0], [0], [1], [0, 0, 1, 1], [], []>} : vector<16x32xf32>, vector<32x96xf32>, vector<16x96xf32> -> vector<16x96xf32>
    %4 = vector.extract_strided_slice %3 {offsets = [0, 0], sizes = [16, 32], strides = [1, 1]} : vector<16x96xf32> to vector<16x32xf32>
    %cst_5 = arith.constant 0.353553385 : f32
    %5 = vector.broadcast %cst_5 : f32 to vector<16x32xf32>
    %6 = arith.mulf %4, %5 : vector<16x32xf32>
    %7 = vector.extract_strided_slice %3 {offsets = [0, 32], sizes = [16, 32], strides = [1, 1]} : vector<16x96xf32> to vector<16x32xf32>
    %8 = vector.extract_strided_slice %3 {offsets = [0, 64], sizes = [16, 32], strides = [1, 1]} : vector<16x96xf32> to vector<16x32xf32>
    %c0_6 = arith.constant 0 : index
    %c0_7 = arith.constant 0 : index
    %9 = vector.load %arg5[%c0_6, %c0_7] : memref<32x32xf32, #tpu.memory_space<vmem>>, vector<32x32xf32>
    %c0_8 = arith.constant 0 : index
    %c0_9 = arith.constant 0 : index
    %10 = vector.load %arg6[%c0_8, %c0_9] : memref<1x32xf32, #tpu.memory_space<vmem>>, vector<1x32xf32>
    %c0_10 = arith.constant 0 : index
    %c0_11 = arith.constant 0 : index
    %11 = vector.load %arg2[%c0_10, %c0_11] : memref<64x8xf32, #tpu.memory_space<vmem>>, vector<64x8xf32>
    %12 = vector.extract_strided_slice %6 {offsets = [0, 0], sizes = [8, 32], strides = [1, 1]} : vector<16x32xf32> to vector<8x32xf32>
    %13 = vector.extract_strided_slice %7 {offsets = [0, 0], sizes = [8, 32], strides = [1, 1]} : vector<16x32xf32> to vector<8x32xf32>
    %14 = vector.extract_strided_slice %12 {offsets = [0, 0], sizes = [8, 8], strides = [1, 1]} : vector<8x32xf32> to vector<8x8xf32>
    %15 = vector.extract_strided_slice %13 {offsets = [0, 0], sizes = [8, 8], strides = [1, 1]} : vector<8x32xf32> to vector<8x8xf32>
    %cst_12 = arith.constant dense<0.000000e+00> : vector<8x8xf32>
    %16 = tpu.matmul %14, %15, %cst_12 {dimension_numbers = #tpu.dot_dimension_numbers<[1], [1], [0], [0], [0, 0, 1, 0], [], []>} : vector<8x8xf32>, vector<8x8xf32>, vector<8x8xf32> -> vector<8x8xf32>
    %17 = vector.extract_strided_slice %12 {offsets = [0, 8], sizes = [8, 8], strides = [1, 1]} : vector<8x32xf32> to vector<8x8xf32>
    %18 = vector.extract_strided_slice %13 {offsets = [0, 8], sizes = [8, 8], strides = [1, 1]} : vector<8x32xf32> to vector<8x8xf32>
    %cst_13 = arith.constant dense<0.000000e+00> : vector<8x8xf32>
    %19 = tpu.matmul %17, %18, %cst_13 {dimension_numbers = #tpu.dot_dimension_numbers<[1], [1], [0], [0], [0, 0, 1, 0], [], []>} : vector<8x8xf32>, vector<8x8xf32>, vector<8x8xf32> -> vector<8x8xf32>
    %20 = vector.extract_strided_slice %12 {offsets = [0, 16], sizes = [8, 8], strides = [1, 1]} : vector<8x32xf32> to vector<8x8xf32>
    %21 = vector.extract_strided_slice %13 {offsets = [0, 16], sizes = [8, 8], strides = [1, 1]} : vector<8x32xf32> to vector<8x8xf32>
    %cst_14 = arith.constant dense<0.000000e+00> : vector<8x8xf32>
    %22 = tpu.matmul %20, %21, %cst_14 {dimension_numbers = #tpu.dot_dimension_numbers<[1], [1], [0], [0], [0, 0, 1, 0], [], []>} : vector<8x8xf32>, vector<8x8xf32>, vector<8x8xf32> -> vector<8x8xf32>
    %23 = vector.extract_strided_slice %12 {offsets = [0, 24], sizes = [8, 8], strides = [1, 1]} : vector<8x32xf32> to vector<8x8xf32>
    %24 = vector.extract_strided_slice %13 {offsets = [0, 24], sizes = [8, 8], strides = [1, 1]} : vector<8x32xf32> to vector<8x8xf32>
    %cst_15 = arith.constant dense<0.000000e+00> : vector<8x8xf32>
    %25 = tpu.matmul %23, %24, %cst_15 {dimension_numbers = #tpu.dot_dimension_numbers<[1], [1], [0], [0], [0, 0, 1, 0], [], []>} : vector<8x8xf32>, vector<8x8xf32>, vector<8x8xf32> -> vector<8x8xf32>
    %26 = vector.extract_strided_slice %6 {offsets = [8, 0], sizes = [8, 32], strides = [1, 1]} : vector<16x32xf32> to vector<8x32xf32>
    %27 = vector.extract_strided_slice %7 {offsets = [8, 0], sizes = [8, 32], strides = [1, 1]} : vector<16x32xf32> to vector<8x32xf32>
    %28 = vector.extract_strided_slice %26 {offsets = [0, 0], sizes = [8, 8], strides = [1, 1]} : vector<8x32xf32> to vector<8x8xf32>
    %29 = vector.extract_strided_slice %27 {offsets = [0, 0], sizes = [8, 8], strides = [1, 1]} : vector<8x32xf32> to vector<8x8xf32>
    %cst_16 = arith.constant dense<0.000000e+00> : vector<8x8xf32>
    %30 = tpu.matmul %28, %29, %cst_16 {dimension_numbers = #tpu.dot_dimension_numbers<[1], [1], [0], [0], [0, 0, 1, 0], [], []>} : vector<8x8xf32>, vector<8x8xf32>, vector<8x8xf32> -> vector<8x8xf32>
    %31 = vector.extract_strided_slice %26 {offsets = [0, 8], sizes = [8, 8], strides = [1, 1]} : vector<8x32xf32> to vector<8x8xf32>
    %32 = vector.extract_strided_slice %27 {offsets = [0, 8], sizes = [8, 8], strides = [1, 1]} : vector<8x32xf32> to vector<8x8xf32>
    %cst_17 = arith.constant dense<0.000000e+00> : vector<8x8xf32>
    %33 = tpu.matmul %31, %32, %cst_17 {dimension_numbers = #tpu.dot_dimension_numbers<[1], [1], [0], [0], [0, 0, 1, 0], [], []>} : vector<8x8xf32>, vector<8x8xf32>, vector<8x8xf32> -> vector<8x8xf32>
    %34 = vector.extract_strided_slice %26 {offsets = [0, 16], sizes = [8, 8], strides = [1, 1]} : vector<8x32xf32> to vector<8x8xf32>
    %35 = vector.extract_strided_slice %27 {offsets = [0, 16], sizes = [8, 8], strides = [1, 1]} : vector<8x32xf32> to vector<8x8xf32>
    %cst_18 = arith.constant dense<0.000000e+00> : vector<8x8xf32>
    %36 = tpu.matmul %34, %35, %cst_18 {dimension_numbers = #tpu.dot_dimension_numbers<[1], [1], [0], [0], [0, 0, 1, 0], [], []>} : vector<8x8xf32>, vector<8x8xf32>, vector<8x8xf32> -> vector<8x8xf32>
    %37 = vector.extract_strided_slice %26 {offsets = [0, 24], sizes = [8, 8], strides = [1, 1]} : vector<8x32xf32> to vector<8x8xf32>
    %38 = vector.extract_strided_slice %27 {offsets = [0, 24], sizes = [8, 8], strides = [1, 1]} : vector<8x32xf32> to vector<8x8xf32>
    %cst_19 = arith.constant dense<0.000000e+00> : vector<8x8xf32>
    %39 = tpu.matmul %37, %38, %cst_19 {dimension_numbers = #tpu.dot_dimension_numbers<[1], [1], [0], [0], [0, 0, 1, 0], [], []>} : vector<8x8xf32>, vector<8x8xf32>, vector<8x8xf32> -> vector<8x8xf32>
    %40 = tpu.concatenate %16, %19, %22, %25, %30, %33, %36, %39 in 0 : vector<8x8xf32>, vector<8x8xf32>, vector<8x8xf32>, vector<8x8xf32>, vector<8x8xf32>, vector<8x8xf32>, vector<8x8xf32>, vector<8x8xf32> -> vector<64x8xf32>
    %41 = arith.addf %40, %11 : vector<64x8xf32>
    %cst_20 = arith.constant dense<0xFF800000> : vector<64xf32>
    %42 = vector.multi_reduction <maximumf>, %41, %cst_20 [1] : vector<64x8xf32> to vector<64xf32>
    %43 = vector.shape_cast %42 : vector<64xf32> to vector<64x1xf32>
    %44 = vector.broadcast %43 : vector<64x1xf32> to vector<64x8xf32>
    %45 = arith.subf %41, %44 : vector<64x8xf32>
    %46 = math.exp %45 : vector<64x8xf32>
    %cst_21 = arith.constant dense<0.000000e+00> : vector<64xf32>
    %47 = vector.multi_reduction <add>, %46, %cst_21 [1] : vector<64x8xf32> to vector<64xf32>
    %48 = vector.shape_cast %47 : vector<64xf32> to vector<64x1xf32>
    %49 = tpu.reciprocal %48 {approx = true} : vector<64x1xf32> -> vector<64x1xf32>
    %50 = vector.broadcast %49 : vector<64x1xf32> to vector<64x8xf32>
    %51 = arith.mulf %46, %50 : vector<64x8xf32>
    %52 = vector.extract_strided_slice %8 {offsets = [0, 0], sizes = [8, 32], strides = [1, 1]} : vector<16x32xf32> to vector<8x32xf32>
    %cst_22 = arith.constant 0.000000e+00 : f32
    %53 = vector.broadcast %cst_22 : f32 to vector<8x32xf32>
    %54 = vector.extract_strided_slice %51 {offsets = [0, 0], sizes = [8, 8], strides = [1, 1]} : vector<64x8xf32> to vector<8x8xf32>
    %55 = vector.extract_strided_slice %52 {offsets = [0, 0], sizes = [8, 8], strides = [1, 1]} : vector<8x32xf32> to vector<8x8xf32>
    %cst_23 = arith.constant dense<0.000000e+00> : vector<8x8xf32>
    %56 = tpu.matmul %54, %55, %cst_23 {dimension_numbers = #tpu.dot_dimension_numbers<[1], [0], [0], [1], [0, 0, 1, 1], [], []>} : vector<8x8xf32>, vector<8x8xf32>, vector<8x8xf32> -> vector<8x8xf32>
    %57 = vector.extract_strided_slice %9 {offsets = [0, 0], sizes = [8, 32], strides = [1, 1]} : vector<32x32xf32> to vector<8x32xf32>
    %cst_24 = arith.constant dense<0.000000e+00> : vector<8x32xf32>
    %58 = tpu.matmul %56, %57, %cst_24 {dimension_numbers = #tpu.dot_dimension_numbers<[1], [0], [0], [1], [0, 0, 1, 1], [], []>} : vector<8x8xf32>, vector<8x32xf32>, vector<8x32xf32> -> vector<8x32xf32>
    %59 = arith.addf %53, %58 : vector<8x32xf32>
    %60 = vector.extract_strided_slice %51 {offsets = [8, 0], sizes = [8, 8], strides = [1, 1]} : vector<64x8xf32> to vector<8x8xf32>
    %61 = vector.extract_strided_slice %52 {offsets = [0, 8], sizes = [8, 8], strides = [1, 1]} : vector<8x32xf32> to vector<8x8xf32>
    %cst_25 = arith.constant dense<0.000000e+00> : vector<8x8xf32>
    %62 = tpu.matmul %60, %61, %cst_25 {dimension_numbers = #tpu.dot_dimension_numbers<[1], [0], [0], [1], [0, 0, 1, 1], [], []>} : vector<8x8xf32>, vector<8x8xf32>, vector<8x8xf32> -> vector<8x8xf32>
    %63 = vector.extract_strided_slice %9 {offsets = [8, 0], sizes = [8, 32], strides = [1, 1]} : vector<32x32xf32> to vector<8x32xf32>
    %cst_26 = arith.constant dense<0.000000e+00> : vector<8x32xf32>
    %64 = tpu.matmul %62, %63, %cst_26 {dimension_numbers = #tpu.dot_dimension_numbers<[1], [0], [0], [1], [0, 0, 1, 1], [], []>} : vector<8x8xf32>, vector<8x32xf32>, vector<8x32xf32> -> vector<8x32xf32>
    %65 = arith.addf %59, %64 : vector<8x32xf32>
    %66 = vector.extract_strided_slice %51 {offsets = [16, 0], sizes = [8, 8], strides = [1, 1]} : vector<64x8xf32> to vector<8x8xf32>
    %67 = vector.extract_strided_slice %52 {offsets = [0, 16], sizes = [8, 8], strides = [1, 1]} : vector<8x32xf32> to vector<8x8xf32>
    %cst_27 = arith.constant dense<0.000000e+00> : vector<8x8xf32>
    %68 = tpu.matmul %66, %67, %cst_27 {dimension_numbers = #tpu.dot_dimension_numbers<[1], [0], [0], [1], [0, 0, 1, 1], [], []>} : vector<8x8xf32>, vector<8x8xf32>, vector<8x8xf32> -> vector<8x8xf32>
    %69 = vector.extract_strided_slice %9 {offsets = [16, 0], sizes = [8, 32], strides = [1, 1]} : vector<32x32xf32> to vector<8x32xf32>
    %cst_28 = arith.constant dense<0.000000e+00> : vector<8x32xf32>
    %70 = tpu.matmul %68, %69, %cst_28 {dimension_numbers = #tpu.dot_dimension_numbers<[1], [0], [0], [1], [0, 0, 1, 1], [], []>} : vector<8x8xf32>, vector<8x32xf32>, vector<8x32xf32> -> vector<8x32xf32>
    %71 = arith.addf %65, %70 : vector<8x32xf32>
    %72 = vector.extract_strided_slice %51 {offsets = [24, 0], sizes = [8, 8], strides = [1, 1]} : vector<64x8xf32> to vector<8x8xf32>
    %73 = vector.extract_strided_slice %52 {offsets = [0, 24], sizes = [8, 8], strides = [1, 1]} : vector<8x32xf32> to vector<8x8xf32>
    %cst_29 = arith.constant dense<0.000000e+00> : vector<8x8xf32>
    %74 = tpu.matmul %72, %73, %cst_29 {dimension_numbers = #tpu.dot_dimension_numbers<[1], [0], [0], [1], [0, 0, 1, 1], [], []>} : vector<8x8xf32>, vector<8x8xf32>, vector<8x8xf32> -> vector<8x8xf32>
    %75 = vector.extract_strided_slice %9 {offsets = [24, 0], sizes = [8, 32], strides = [1, 1]} : vector<32x32xf32> to vector<8x32xf32>
    %cst_30 = arith.constant dense<0.000000e+00> : vector<8x32xf32>
    %76 = tpu.matmul %74, %75, %cst_30 {dimension_numbers = #tpu.dot_dimension_numbers<[1], [0], [0], [1], [0, 0, 1, 1], [], []>} : vector<8x8xf32>, vector<8x32xf32>, vector<8x32xf32> -> vector<8x32xf32>
    %77 = arith.addf %71, %76 : vector<8x32xf32>
    %78 = vector.extract_strided_slice %8 {offsets = [8, 0], sizes = [8, 32], strides = [1, 1]} : vector<16x32xf32> to vector<8x32xf32>
    %cst_31 = arith.constant 0.000000e+00 : f32
    %79 = vector.broadcast %cst_31 : f32 to vector<8x32xf32>
    %80 = vector.extract_strided_slice %51 {offsets = [32, 0], sizes = [8, 8], strides = [1, 1]} : vector<64x8xf32> to vector<8x8xf32>
    %81 = vector.extract_strided_slice %78 {offsets = [0, 0], sizes = [8, 8], strides = [1, 1]} : vector<8x32xf32> to vector<8x8xf32>
    %cst_32 = arith.constant dense<0.000000e+00> : vector<8x8xf32>
    %82 = tpu.matmul %80, %81, %cst_32 {dimension_numbers = #tpu.dot_dimension_numbers<[1], [0], [0], [1], [0, 0, 1, 1], [], []>} : vector<8x8xf32>, vector<8x8xf32>, vector<8x8xf32> -> vector<8x8xf32>
    %83 = vector.extract_strided_slice %9 {offsets = [0, 0], sizes = [8, 32], strides = [1, 1]} : vector<32x32xf32> to vector<8x32xf32>
    %cst_33 = arith.constant dense<0.000000e+00> : vector<8x32xf32>
    %84 = tpu.matmul %82, %83, %cst_33 {dimension_numbers = #tpu.dot_dimension_numbers<[1], [0], [0], [1], [0, 0, 1, 1], [], []>} : vector<8x8xf32>, vector<8x32xf32>, vector<8x32xf32> -> vector<8x32xf32>
    %85 = arith.addf %79, %84 : vector<8x32xf32>
    %86 = vector.extract_strided_slice %51 {offsets = [40, 0], sizes = [8, 8], strides = [1, 1]} : vector<64x8xf32> to vector<8x8xf32>
    %87 = vector.extract_strided_slice %78 {offsets = [0, 8], sizes = [8, 8], strides = [1, 1]} : vector<8x32xf32> to vector<8x8xf32>
    %cst_34 = arith.constant dense<0.000000e+00> : vector<8x8xf32>
    %88 = tpu.matmul %86, %87, %cst_34 {dimension_numbers = #tpu.dot_dimension_numbers<[1], [0], [0], [1], [0, 0, 1, 1], [], []>} : vector<8x8xf32>, vector<8x8xf32>, vector<8x8xf32> -> vector<8x8xf32>
    %89 = vector.extract_strided_slice %9 {offsets = [8, 0], sizes = [8, 32], strides = [1, 1]} : vector<32x32xf32> to vector<8x32xf32>
    %cst_35 = arith.constant dense<0.000000e+00> : vector<8x32xf32>
    %90 = tpu.matmul %88, %89, %cst_35 {dimension_numbers = #tpu.dot_dimension_numbers<[1], [0], [0], [1], [0, 0, 1, 1], [], []>} : vector<8x8xf32>, vector<8x32xf32>, vector<8x32xf32> -> vector<8x32xf32>
    %91 = arith.addf %85, %90 : vector<8x32xf32>
    %92 = vector.extract_strided_slice %51 {offsets = [48, 0], sizes = [8, 8], strides = [1, 1]} : vector<64x8xf32> to vector<8x8xf32>
    %93 = vector.extract_strided_slice %78 {offsets = [0, 16], sizes = [8, 8], strides = [1, 1]} : vector<8x32xf32> to vector<8x8xf32>
    %cst_36 = arith.constant dense<0.000000e+00> : vector<8x8xf32>
    %94 = tpu.matmul %92, %93, %cst_36 {dimension_numbers = #tpu.dot_dimension_numbers<[1], [0], [0], [1], [0, 0, 1, 1], [], []>} : vector<8x8xf32>, vector<8x8xf32>, vector<8x8xf32> -> vector<8x8xf32>
    %95 = vector.extract_strided_slice %9 {offsets = [16, 0], sizes = [8, 32], strides = [1, 1]} : vector<32x32xf32> to vector<8x32xf32>
    %cst_37 = arith.constant dense<0.000000e+00> : vector<8x32xf32>
    %96 = tpu.matmul %94, %95, %cst_37 {dimension_numbers = #tpu.dot_dimension_numbers<[1], [0], [0], [1], [0, 0, 1, 1], [], []>} : vector<8x8xf32>, vector<8x32xf32>, vector<8x32xf32> -> vector<8x32xf32>
    %97 = arith.addf %91, %96 : vector<8x32xf32>
    %98 = vector.extract_strided_slice %51 {offsets = [56, 0], sizes = [8, 8], strides = [1, 1]} : vector<64x8xf32> to vector<8x8xf32>
    %99 = vector.extract_strided_slice %78 {offsets = [0, 24], sizes = [8, 8], strides = [1, 1]} : vector<8x32xf32> to vector<8x8xf32>
    %cst_38 = arith.constant dense<0.000000e+00> : vector<8x8xf32>
    %100 = tpu.matmul %98, %99, %cst_38 {dimension_numbers = #tpu.dot_dimension_numbers<[1], [0], [0], [1], [0, 0, 1, 1], [], []>} : vector<8x8xf32>, vector<8x8xf32>, vector<8x8xf32> -> vector<8x8xf32>
    %101 = vector.extract_strided_slice %9 {offsets = [24, 0], sizes = [8, 32], strides = [1, 1]} : vector<32x32xf32> to vector<8x32xf32>
    %cst_39 = arith.constant dense<0.000000e+00> : vector<8x32xf32>
    %102 = tpu.matmul %100, %101, %cst_39 {dimension_numbers = #tpu.dot_dimension_numbers<[1], [0], [0], [1], [0, 0, 1, 1], [], []>} : vector<8x8xf32>, vector<8x32xf32>, vector<8x32xf32> -> vector<8x32xf32>
    %103 = arith.addf %97, %102 : vector<8x32xf32>
    %104 = tpu.concatenate %77, %103 in 0 : vector<8x32xf32>, vector<8x32xf32> -> vector<16x32xf32>
    %105 = vector.broadcast %10 : vector<1x32xf32> to vector<16x32xf32>
    %106 = arith.addf %104, %105 : vector<16x32xf32>
    %107 = arith.addf %0, %106 : vector<16x32xf32>
    %c0_40 = arith.constant 0 : index
    %c0_41 = arith.constant 0 : index
    %108 = vector.load %arg7[%c0_40, %c0_41] : memref<1x32xf32, #tpu.memory_space<vmem>>, vector<1x32xf32>
    %c0_42 = arith.constant 0 : index
    %c0_43 = arith.constant 0 : index
    %109 = vector.load %arg8[%c0_42, %c0_43] : memref<1x32xf32, #tpu.memory_space<vmem>>, vector<1x32xf32>
    %cst_44 = arith.constant dense<0.000000e+00> : vector<16xf32>
    %110 = vector.multi_reduction <add>, %107, %cst_44 [1] : vector<16x32xf32> to vector<16xf32>
    %111 = vector.shape_cast %110 : vector<16xf32> to vector<16x1xf32>
    %cst_45 = arith.constant 3.200000e+01 : f32
    %112 = vector.broadcast %cst_45 : f32 to vector<16x1xf32>
    %113 = arith.divf %111, %112 : vector<16x1xf32>
    %114 = vector.broadcast %113 : vector<16x1xf32> to vector<16x32xf32>
    %115 = arith.subf %107, %114 : vector<16x32xf32>
    %116 = arith.mulf %115, %115 : vector<16x32xf32>
    %cst_46 = arith.constant dense<0.000000e+00> : vector<16xf32>
    %117 = vector.multi_reduction <add>, %116, %cst_46 [1] : vector<16x32xf32> to vector<16xf32>
    %118 = vector.shape_cast %117 : vector<16xf32> to vector<16x1xf32>
    %cst_47 = arith.constant 3.200000e+01 : f32
    %119 = vector.broadcast %cst_47 : f32 to vector<16x1xf32>
    %120 = arith.divf %118, %119 : vector<16x1xf32>
    %121 = vector.broadcast %113 : vector<16x1xf32> to vector<16x32xf32>
    %122 = arith.subf %107, %121 : vector<16x32xf32>
    %cst_48 = arith.constant 9.99999974E-6 : f32
    %123 = vector.broadcast %cst_48 : f32 to vector<16x1xf32>
    %124 = arith.addf %120, %123 : vector<16x1xf32>
    %125 = math.rsqrt %124 : vector<16x1xf32>
    %126 = vector.broadcast %125 : vector<16x1xf32> to vector<16x32xf32>
    %127 = arith.mulf %122, %126 : vector<16x32xf32>
    %128 = vector.broadcast %108 : vector<1x32xf32> to vector<16x32xf32>
    %129 = arith.mulf %127, %128 : vector<16x32xf32>
    %130 = vector.broadcast %109 : vector<1x32xf32> to vector<16x32xf32>
    %131 = arith.addf %129, %130 : vector<16x32xf32>
    %c0_49 = arith.constant 0 : index
    %c0_50 = arith.constant 0 : index
    %132 = vector.load %arg9[%c0_49, %c0_50] : memref<32x32xf32, #tpu.memory_space<vmem>>, vector<32x32xf32>
    %cst_51 = arith.constant dense<0.000000e+00> : vector<16x32xf32>
    %133 = tpu.matmul %131, %132, %cst_51 {dimension_numbers = #tpu.dot_dimension_numbers<[1], [0], [0], [1], [0, 0, 1, 1], [], []>} : vector<16x32xf32>, vector<32x32xf32>, vector<16x32xf32> -> vector<16x32xf32>
    %cst_52 = arith.constant 0.353553385 : f32
    %134 = vector.broadcast %cst_52 : f32 to vector<16x32xf32>
    %135 = arith.mulf %133, %134 : vector<16x32xf32>
    %c0_53 = arith.constant 0 : index
    %c0_54 = arith.constant 0 : index
    %136 = vector.load %arg10[%c0_53, %c0_54] : memref<32x64xf32, #tpu.memory_space<vmem>>, vector<32x64xf32>
    %cst_55 = arith.constant dense<0.000000e+00> : vector<16x64xf32>
    %137 = tpu.matmul %1, %136, %cst_55 {dimension_numbers = #tpu.dot_dimension_numbers<[1], [0], [0], [1], [0, 0, 1, 1], [], []>} : vector<16x32xf32>, vector<32x64xf32>, vector<16x64xf32> -> vector<16x64xf32>
    %138 = vector.extract_strided_slice %137 {offsets = [0, 0], sizes = [16, 32], strides = [1, 1]} : vector<16x64xf32> to vector<16x32xf32>
    %139 = vector.extract_strided_slice %137 {offsets = [0, 32], sizes = [16, 32], strides = [1, 1]} : vector<16x64xf32> to vector<16x32xf32>
    %c0_56 = arith.constant 0 : index
    %c0_57 = arith.constant 0 : index
    %140 = vector.load %arg11[%c0_56, %c0_57] : memref<32x32xf32, #tpu.memory_space<vmem>>, vector<32x32xf32>
    %c0_58 = arith.constant 0 : index
    %c0_59 = arith.constant 0 : index
    %141 = vector.load %arg12[%c0_58, %c0_59] : memref<1x32xf32, #tpu.memory_space<vmem>>, vector<1x32xf32>
    %c0_60 = arith.constant 0 : index
    %c0_61 = arith.constant 0 : index
    %142 = vector.load %arg3[%c0_60, %c0_61] : memref<64x8xf32, #tpu.memory_space<vmem>>, vector<64x8xf32>
    %143 = vector.extract_strided_slice %135 {offsets = [0, 0], sizes = [8, 32], strides = [1, 1]} : vector<16x32xf32> to vector<8x32xf32>
    %144 = vector.extract_strided_slice %138 {offsets = [0, 0], sizes = [8, 32], strides = [1, 1]} : vector<16x32xf32> to vector<8x32xf32>
    %145 = vector.extract_strided_slice %143 {offsets = [0, 0], sizes = [8, 8], strides = [1, 1]} : vector<8x32xf32> to vector<8x8xf32>
    %146 = vector.extract_strided_slice %144 {offsets = [0, 0], sizes = [8, 8], strides = [1, 1]} : vector<8x32xf32> to vector<8x8xf32>
    %cst_62 = arith.constant dense<0.000000e+00> : vector<8x8xf32>
    %147 = tpu.matmul %145, %146, %cst_62 {dimension_numbers = #tpu.dot_dimension_numbers<[1], [1], [0], [0], [0, 0, 1, 0], [], []>} : vector<8x8xf32>, vector<8x8xf32>, vector<8x8xf32> -> vector<8x8xf32>
    %148 = vector.extract_strided_slice %143 {offsets = [0, 8], sizes = [8, 8], strides = [1, 1]} : vector<8x32xf32> to vector<8x8xf32>
    %149 = vector.extract_strided_slice %144 {offsets = [0, 8], sizes = [8, 8], strides = [1, 1]} : vector<8x32xf32> to vector<8x8xf32>
    %cst_63 = arith.constant dense<0.000000e+00> : vector<8x8xf32>
    %150 = tpu.matmul %148, %149, %cst_63 {dimension_numbers = #tpu.dot_dimension_numbers<[1], [1], [0], [0], [0, 0, 1, 0], [], []>} : vector<8x8xf32>, vector<8x8xf32>, vector<8x8xf32> -> vector<8x8xf32>
    %151 = vector.extract_strided_slice %143 {offsets = [0, 16], sizes = [8, 8], strides = [1, 1]} : vector<8x32xf32> to vector<8x8xf32>
    %152 = vector.extract_strided_slice %144 {offsets = [0, 16], sizes = [8, 8], strides = [1, 1]} : vector<8x32xf32> to vector<8x8xf32>
    %cst_64 = arith.constant dense<0.000000e+00> : vector<8x8xf32>
    %153 = tpu.matmul %151, %152, %cst_64 {dimension_numbers = #tpu.dot_dimension_numbers<[1], [1], [0], [0], [0, 0, 1, 0], [], []>} : vector<8x8xf32>, vector<8x8xf32>, vector<8x8xf32> -> vector<8x8xf32>
    %154 = vector.extract_strided_slice %143 {offsets = [0, 24], sizes = [8, 8], strides = [1, 1]} : vector<8x32xf32> to vector<8x8xf32>
    %155 = vector.extract_strided_slice %144 {offsets = [0, 24], sizes = [8, 8], strides = [1, 1]} : vector<8x32xf32> to vector<8x8xf32>
    %cst_65 = arith.constant dense<0.000000e+00> : vector<8x8xf32>
    %156 = tpu.matmul %154, %155, %cst_65 {dimension_numbers = #tpu.dot_dimension_numbers<[1], [1], [0], [0], [0, 0, 1, 0], [], []>} : vector<8x8xf32>, vector<8x8xf32>, vector<8x8xf32> -> vector<8x8xf32>
    %157 = vector.extract_strided_slice %135 {offsets = [8, 0], sizes = [8, 32], strides = [1, 1]} : vector<16x32xf32> to vector<8x32xf32>
    %158 = vector.extract_strided_slice %138 {offsets = [8, 0], sizes = [8, 32], strides = [1, 1]} : vector<16x32xf32> to vector<8x32xf32>
    %159 = vector.extract_strided_slice %157 {offsets = [0, 0], sizes = [8, 8], strides = [1, 1]} : vector<8x32xf32> to vector<8x8xf32>
    %160 = vector.extract_strided_slice %158 {offsets = [0, 0], sizes = [8, 8], strides = [1, 1]} : vector<8x32xf32> to vector<8x8xf32>
    %cst_66 = arith.constant dense<0.000000e+00> : vector<8x8xf32>
    %161 = tpu.matmul %159, %160, %cst_66 {dimension_numbers = #tpu.dot_dimension_numbers<[1], [1], [0], [0], [0, 0, 1, 0], [], []>} : vector<8x8xf32>, vector<8x8xf32>, vector<8x8xf32> -> vector<8x8xf32>
    %162 = vector.extract_strided_slice %157 {offsets = [0, 8], sizes = [8, 8], strides = [1, 1]} : vector<8x32xf32> to vector<8x8xf32>
    %163 = vector.extract_strided_slice %158 {offsets = [0, 8], sizes = [8, 8], strides = [1, 1]} : vector<8x32xf32> to vector<8x8xf32>
    %cst_67 = arith.constant dense<0.000000e+00> : vector<8x8xf32>
    %164 = tpu.matmul %162, %163, %cst_67 {dimension_numbers = #tpu.dot_dimension_numbers<[1], [1], [0], [0], [0, 0, 1, 0], [], []>} : vector<8x8xf32>, vector<8x8xf32>, vector<8x8xf32> -> vector<8x8xf32>
    %165 = vector.extract_strided_slice %157 {offsets = [0, 16], sizes = [8, 8], strides = [1, 1]} : vector<8x32xf32> to vector<8x8xf32>
    %166 = vector.extract_strided_slice %158 {offsets = [0, 16], sizes = [8, 8], strides = [1, 1]} : vector<8x32xf32> to vector<8x8xf32>
    %cst_68 = arith.constant dense<0.000000e+00> : vector<8x8xf32>
    %167 = tpu.matmul %165, %166, %cst_68 {dimension_numbers = #tpu.dot_dimension_numbers<[1], [1], [0], [0], [0, 0, 1, 0], [], []>} : vector<8x8xf32>, vector<8x8xf32>, vector<8x8xf32> -> vector<8x8xf32>
    %168 = vector.extract_strided_slice %157 {offsets = [0, 24], sizes = [8, 8], strides = [1, 1]} : vector<8x32xf32> to vector<8x8xf32>
    %169 = vector.extract_strided_slice %158 {offsets = [0, 24], sizes = [8, 8], strides = [1, 1]} : vector<8x32xf32> to vector<8x8xf32>
    %cst_69 = arith.constant dense<0.000000e+00> : vector<8x8xf32>
    %170 = tpu.matmul %168, %169, %cst_69 {dimension_numbers = #tpu.dot_dimension_numbers<[1], [1], [0], [0], [0, 0, 1, 0], [], []>} : vector<8x8xf32>, vector<8x8xf32>, vector<8x8xf32> -> vector<8x8xf32>
    %171 = tpu.concatenate %147, %150, %153, %156, %161, %164, %167, %170 in 0 : vector<8x8xf32>, vector<8x8xf32>, vector<8x8xf32>, vector<8x8xf32>, vector<8x8xf32>, vector<8x8xf32>, vector<8x8xf32>, vector<8x8xf32> -> vector<64x8xf32>
    %172 = arith.addf %171, %142 : vector<64x8xf32>
    %cst_70 = arith.constant dense<0xFF800000> : vector<64xf32>
    %173 = vector.multi_reduction <maximumf>, %172, %cst_70 [1] : vector<64x8xf32> to vector<64xf32>
    %174 = vector.shape_cast %173 : vector<64xf32> to vector<64x1xf32>
    %175 = vector.broadcast %174 : vector<64x1xf32> to vector<64x8xf32>
    %176 = arith.subf %172, %175 : vector<64x8xf32>
    %177 = math.exp %176 : vector<64x8xf32>
    %cst_71 = arith.constant dense<0.000000e+00> : vector<64xf32>
    %178 = vector.multi_reduction <add>, %177, %cst_71 [1] : vector<64x8xf32> to vector<64xf32>
    %179 = vector.shape_cast %178 : vector<64xf32> to vector<64x1xf32>
    %180 = tpu.reciprocal %179 {approx = true} : vector<64x1xf32> -> vector<64x1xf32>
    %181 = vector.broadcast %180 : vector<64x1xf32> to vector<64x8xf32>
    %182 = arith.mulf %177, %181 : vector<64x8xf32>
    %183 = vector.extract_strided_slice %139 {offsets = [0, 0], sizes = [8, 32], strides = [1, 1]} : vector<16x32xf32> to vector<8x32xf32>
    %cst_72 = arith.constant 0.000000e+00 : f32
    %184 = vector.broadcast %cst_72 : f32 to vector<8x32xf32>
    %185 = vector.extract_strided_slice %182 {offsets = [0, 0], sizes = [8, 8], strides = [1, 1]} : vector<64x8xf32> to vector<8x8xf32>
    %186 = vector.extract_strided_slice %183 {offsets = [0, 0], sizes = [8, 8], strides = [1, 1]} : vector<8x32xf32> to vector<8x8xf32>
    %cst_73 = arith.constant dense<0.000000e+00> : vector<8x8xf32>
    %187 = tpu.matmul %185, %186, %cst_73 {dimension_numbers = #tpu.dot_dimension_numbers<[1], [0], [0], [1], [0, 0, 1, 1], [], []>} : vector<8x8xf32>, vector<8x8xf32>, vector<8x8xf32> -> vector<8x8xf32>
    %188 = vector.extract_strided_slice %140 {offsets = [0, 0], sizes = [8, 32], strides = [1, 1]} : vector<32x32xf32> to vector<8x32xf32>
    %cst_74 = arith.constant dense<0.000000e+00> : vector<8x32xf32>
    %189 = tpu.matmul %187, %188, %cst_74 {dimension_numbers = #tpu.dot_dimension_numbers<[1], [0], [0], [1], [0, 0, 1, 1], [], []>} : vector<8x8xf32>, vector<8x32xf32>, vector<8x32xf32> -> vector<8x32xf32>
    %190 = arith.addf %184, %189 : vector<8x32xf32>
    %191 = vector.extract_strided_slice %182 {offsets = [8, 0], sizes = [8, 8], strides = [1, 1]} : vector<64x8xf32> to vector<8x8xf32>
    %192 = vector.extract_strided_slice %183 {offsets = [0, 8], sizes = [8, 8], strides = [1, 1]} : vector<8x32xf32> to vector<8x8xf32>
    %cst_75 = arith.constant dense<0.000000e+00> : vector<8x8xf32>
    %193 = tpu.matmul %191, %192, %cst_75 {dimension_numbers = #tpu.dot_dimension_numbers<[1], [0], [0], [1], [0, 0, 1, 1], [], []>} : vector<8x8xf32>, vector<8x8xf32>, vector<8x8xf32> -> vector<8x8xf32>
    %194 = vector.extract_strided_slice %140 {offsets = [8, 0], sizes = [8, 32], strides = [1, 1]} : vector<32x32xf32> to vector<8x32xf32>
    %cst_76 = arith.constant dense<0.000000e+00> : vector<8x32xf32>
    %195 = tpu.matmul %193, %194, %cst_76 {dimension_numbers = #tpu.dot_dimension_numbers<[1], [0], [0], [1], [0, 0, 1, 1], [], []>} : vector<8x8xf32>, vector<8x32xf32>, vector<8x32xf32> -> vector<8x32xf32>
    %196 = arith.addf %190, %195 : vector<8x32xf32>
    %197 = vector.extract_strided_slice %182 {offsets = [16, 0], sizes = [8, 8], strides = [1, 1]} : vector<64x8xf32> to vector<8x8xf32>
    %198 = vector.extract_strided_slice %183 {offsets = [0, 16], sizes = [8, 8], strides = [1, 1]} : vector<8x32xf32> to vector<8x8xf32>
    %cst_77 = arith.constant dense<0.000000e+00> : vector<8x8xf32>
    %199 = tpu.matmul %197, %198, %cst_77 {dimension_numbers = #tpu.dot_dimension_numbers<[1], [0], [0], [1], [0, 0, 1, 1], [], []>} : vector<8x8xf32>, vector<8x8xf32>, vector<8x8xf32> -> vector<8x8xf32>
    %200 = vector.extract_strided_slice %140 {offsets = [16, 0], sizes = [8, 32], strides = [1, 1]} : vector<32x32xf32> to vector<8x32xf32>
    %cst_78 = arith.constant dense<0.000000e+00> : vector<8x32xf32>
    %201 = tpu.matmul %199, %200, %cst_78 {dimension_numbers = #tpu.dot_dimension_numbers<[1], [0], [0], [1], [0, 0, 1, 1], [], []>} : vector<8x8xf32>, vector<8x32xf32>, vector<8x32xf32> -> vector<8x32xf32>
    %202 = arith.addf %196, %201 : vector<8x32xf32>
    %203 = vector.extract_strided_slice %182 {offsets = [24, 0], sizes = [8, 8], strides = [1, 1]} : vector<64x8xf32> to vector<8x8xf32>
    %204 = vector.extract_strided_slice %183 {offsets = [0, 24], sizes = [8, 8], strides = [1, 1]} : vector<8x32xf32> to vector<8x8xf32>
    %cst_79 = arith.constant dense<0.000000e+00> : vector<8x8xf32>
    %205 = tpu.matmul %203, %204, %cst_79 {dimension_numbers = #tpu.dot_dimension_numbers<[1], [0], [0], [1], [0, 0, 1, 1], [], []>} : vector<8x8xf32>, vector<8x8xf32>, vector<8x8xf32> -> vector<8x8xf32>
    %206 = vector.extract_strided_slice %140 {offsets = [24, 0], sizes = [8, 32], strides = [1, 1]} : vector<32x32xf32> to vector<8x32xf32>
    %cst_80 = arith.constant dense<0.000000e+00> : vector<8x32xf32>
    %207 = tpu.matmul %205, %206, %cst_80 {dimension_numbers = #tpu.dot_dimension_numbers<[1], [0], [0], [1], [0, 0, 1, 1], [], []>} : vector<8x8xf32>, vector<8x32xf32>, vector<8x32xf32> -> vector<8x32xf32>
    %208 = arith.addf %202, %207 : vector<8x32xf32>
    %209 = vector.extract_strided_slice %139 {offsets = [8, 0], sizes = [8, 32], strides = [1, 1]} : vector<16x32xf32> to vector<8x32xf32>
    %cst_81 = arith.constant 0.000000e+00 : f32
    %210 = vector.broadcast %cst_81 : f32 to vector<8x32xf32>
    %211 = vector.extract_strided_slice %182 {offsets = [32, 0], sizes = [8, 8], strides = [1, 1]} : vector<64x8xf32> to vector<8x8xf32>
    %212 = vector.extract_strided_slice %209 {offsets = [0, 0], sizes = [8, 8], strides = [1, 1]} : vector<8x32xf32> to vector<8x8xf32>
    %cst_82 = arith.constant dense<0.000000e+00> : vector<8x8xf32>
    %213 = tpu.matmul %211, %212, %cst_82 {dimension_numbers = #tpu.dot_dimension_numbers<[1], [0], [0], [1], [0, 0, 1, 1], [], []>} : vector<8x8xf32>, vector<8x8xf32>, vector<8x8xf32> -> vector<8x8xf32>
    %214 = vector.extract_strided_slice %140 {offsets = [0, 0], sizes = [8, 32], strides = [1, 1]} : vector<32x32xf32> to vector<8x32xf32>
    %cst_83 = arith.constant dense<0.000000e+00> : vector<8x32xf32>
    %215 = tpu.matmul %213, %214, %cst_83 {dimension_numbers = #tpu.dot_dimension_numbers<[1], [0], [0], [1], [0, 0, 1, 1], [], []>} : vector<8x8xf32>, vector<8x32xf32>, vector<8x32xf32> -> vector<8x32xf32>
    %216 = arith.addf %210, %215 : vector<8x32xf32>
    %217 = vector.extract_strided_slice %182 {offsets = [40, 0], sizes = [8, 8], strides = [1, 1]} : vector<64x8xf32> to vector<8x8xf32>
    %218 = vector.extract_strided_slice %209 {offsets = [0, 8], sizes = [8, 8], strides = [1, 1]} : vector<8x32xf32> to vector<8x8xf32>
    %cst_84 = arith.constant dense<0.000000e+00> : vector<8x8xf32>
    %219 = tpu.matmul %217, %218, %cst_84 {dimension_numbers = #tpu.dot_dimension_numbers<[1], [0], [0], [1], [0, 0, 1, 1], [], []>} : vector<8x8xf32>, vector<8x8xf32>, vector<8x8xf32> -> vector<8x8xf32>
    %220 = vector.extract_strided_slice %140 {offsets = [8, 0], sizes = [8, 32], strides = [1, 1]} : vector<32x32xf32> to vector<8x32xf32>
    %cst_85 = arith.constant dense<0.000000e+00> : vector<8x32xf32>
    %221 = tpu.matmul %219, %220, %cst_85 {dimension_numbers = #tpu.dot_dimension_numbers<[1], [0], [0], [1], [0, 0, 1, 1], [], []>} : vector<8x8xf32>, vector<8x32xf32>, vector<8x32xf32> -> vector<8x32xf32>
    %222 = arith.addf %216, %221 : vector<8x32xf32>
    %223 = vector.extract_strided_slice %182 {offsets = [48, 0], sizes = [8, 8], strides = [1, 1]} : vector<64x8xf32> to vector<8x8xf32>
    %224 = vector.extract_strided_slice %209 {offsets = [0, 16], sizes = [8, 8], strides = [1, 1]} : vector<8x32xf32> to vector<8x8xf32>
    %cst_86 = arith.constant dense<0.000000e+00> : vector<8x8xf32>
    %225 = tpu.matmul %223, %224, %cst_86 {dimension_numbers = #tpu.dot_dimension_numbers<[1], [0], [0], [1], [0, 0, 1, 1], [], []>} : vector<8x8xf32>, vector<8x8xf32>, vector<8x8xf32> -> vector<8x8xf32>
    %226 = vector.extract_strided_slice %140 {offsets = [16, 0], sizes = [8, 32], strides = [1, 1]} : vector<32x32xf32> to vector<8x32xf32>
    %cst_87 = arith.constant dense<0.000000e+00> : vector<8x32xf32>
    %227 = tpu.matmul %225, %226, %cst_87 {dimension_numbers = #tpu.dot_dimension_numbers<[1], [0], [0], [1], [0, 0, 1, 1], [], []>} : vector<8x8xf32>, vector<8x32xf32>, vector<8x32xf32> -> vector<8x32xf32>
    %228 = arith.addf %222, %227 : vector<8x32xf32>
    %229 = vector.extract_strided_slice %182 {offsets = [56, 0], sizes = [8, 8], strides = [1, 1]} : vector<64x8xf32> to vector<8x8xf32>
    %230 = vector.extract_strided_slice %209 {offsets = [0, 24], sizes = [8, 8], strides = [1, 1]} : vector<8x32xf32> to vector<8x8xf32>
    %cst_88 = arith.constant dense<0.000000e+00> : vector<8x8xf32>
    %231 = tpu.matmul %229, %230, %cst_88 {dimension_numbers = #tpu.dot_dimension_numbers<[1], [0], [0], [1], [0, 0, 1, 1], [], []>} : vector<8x8xf32>, vector<8x8xf32>, vector<8x8xf32> -> vector<8x8xf32>
    %232 = vector.extract_strided_slice %140 {offsets = [24, 0], sizes = [8, 32], strides = [1, 1]} : vector<32x32xf32> to vector<8x32xf32>
    %cst_89 = arith.constant dense<0.000000e+00> : vector<8x32xf32>
    %233 = tpu.matmul %231, %232, %cst_89 {dimension_numbers = #tpu.dot_dimension_numbers<[1], [0], [0], [1], [0, 0, 1, 1], [], []>} : vector<8x8xf32>, vector<8x32xf32>, vector<8x32xf32> -> vector<8x32xf32>
    %234 = arith.addf %228, %233 : vector<8x32xf32>
    %235 = tpu.concatenate %208, %234 in 0 : vector<8x32xf32>, vector<8x32xf32> -> vector<16x32xf32>
    %236 = vector.broadcast %141 : vector<1x32xf32> to vector<16x32xf32>
    %237 = arith.addf %235, %236 : vector<16x32xf32>
    %238 = arith.addf %131, %237 : vector<16x32xf32>
    %c0_90 = arith.constant 0 : index
    %c0_91 = arith.constant 0 : index
    %239 = vector.load %arg13[%c0_90, %c0_91] : memref<1x32xf32, #tpu.memory_space<vmem>>, vector<1x32xf32>
    %c0_92 = arith.constant 0 : index
    %c0_93 = arith.constant 0 : index
    %240 = vector.load %arg14[%c0_92, %c0_93] : memref<1x32xf32, #tpu.memory_space<vmem>>, vector<1x32xf32>
    %cst_94 = arith.constant dense<0.000000e+00> : vector<16xf32>
    %241 = vector.multi_reduction <add>, %238, %cst_94 [1] : vector<16x32xf32> to vector<16xf32>
    %242 = vector.shape_cast %241 : vector<16xf32> to vector<16x1xf32>
    %cst_95 = arith.constant 3.200000e+01 : f32
    %243 = vector.broadcast %cst_95 : f32 to vector<16x1xf32>
    %244 = arith.divf %242, %243 : vector<16x1xf32>
    %245 = vector.broadcast %244 : vector<16x1xf32> to vector<16x32xf32>
    %246 = arith.subf %238, %245 : vector<16x32xf32>
    %247 = arith.mulf %246, %246 : vector<16x32xf32>
    %cst_96 = arith.constant dense<0.000000e+00> : vector<16xf32>
    %248 = vector.multi_reduction <add>, %247, %cst_96 [1] : vector<16x32xf32> to vector<16xf32>
    %249 = vector.shape_cast %248 : vector<16xf32> to vector<16x1xf32>
    %cst_97 = arith.constant 3.200000e+01 : f32
    %250 = vector.broadcast %cst_97 : f32 to vector<16x1xf32>
    %251 = arith.divf %249, %250 : vector<16x1xf32>
    %252 = vector.broadcast %244 : vector<16x1xf32> to vector<16x32xf32>
    %253 = arith.subf %238, %252 : vector<16x32xf32>
    %cst_98 = arith.constant 9.99999974E-6 : f32
    %254 = vector.broadcast %cst_98 : f32 to vector<16x1xf32>
    %255 = arith.addf %251, %254 : vector<16x1xf32>
    %256 = math.rsqrt %255 : vector<16x1xf32>
    %257 = vector.broadcast %256 : vector<16x1xf32> to vector<16x32xf32>
    %258 = arith.mulf %253, %257 : vector<16x32xf32>
    %259 = vector.broadcast %239 : vector<1x32xf32> to vector<16x32xf32>
    %260 = arith.mulf %258, %259 : vector<16x32xf32>
    %261 = vector.broadcast %240 : vector<1x32xf32> to vector<16x32xf32>
    %262 = arith.addf %260, %261 : vector<16x32xf32>
    %c0_99 = arith.constant 0 : index
    %c0_100 = arith.constant 0 : index
    %263 = vector.load %arg15[%c0_99, %c0_100] : memref<32x64xf32, #tpu.memory_space<vmem>>, vector<32x64xf32>
    %cst_101 = arith.constant dense<0.000000e+00> : vector<16x64xf32>
    %264 = tpu.matmul %262, %263, %cst_101 {dimension_numbers = #tpu.dot_dimension_numbers<[1], [0], [0], [1], [0, 0, 1, 1], [], []>} : vector<16x32xf32>, vector<32x64xf32>, vector<16x64xf32> -> vector<16x64xf32>
    %c0_102 = arith.constant 0 : index
    %c0_103 = arith.constant 0 : index
    %265 = vector.load %arg16[%c0_102, %c0_103] : memref<1x64xf32, #tpu.memory_space<vmem>>, vector<1x64xf32>
    %266 = vector.broadcast %265 : vector<1x64xf32> to vector<16x64xf32>
    %267 = arith.addf %264, %266 : vector<16x64xf32>
    %cst_104 = arith.constant 0.000000e+00 : f32
    %268 = vector.broadcast %cst_104 : f32 to vector<16x64xf32>
    %269 = arith.maximumf %267, %268 : vector<16x64xf32>
    %c0_105 = arith.constant 0 : index
    %c0_106 = arith.constant 0 : index
    %270 = vector.load %arg17[%c0_105, %c0_106] : memref<64x32xf32, #tpu.memory_space<vmem>>, vector<64x32xf32>
    %cst_107 = arith.constant dense<0.000000e+00> : vector<16x32xf32>
    %271 = tpu.matmul %269, %270, %cst_107 {dimension_numbers = #tpu.dot_dimension_numbers<[1], [0], [0], [1], [0, 0, 1, 1], [], []>} : vector<16x64xf32>, vector<64x32xf32>, vector<16x32xf32> -> vector<16x32xf32>
    %c0_108 = arith.constant 0 : index
    %c0_109 = arith.constant 0 : index
    %272 = vector.load %arg18[%c0_108, %c0_109] : memref<1x32xf32, #tpu.memory_space<vmem>>, vector<1x32xf32>
    %273 = vector.broadcast %272 : vector<1x32xf32> to vector<16x32xf32>
    %274 = arith.addf %271, %273 : vector<16x32xf32>
    %275 = arith.addf %262, %274 : vector<16x32xf32>
    %c0_110 = arith.constant 0 : index
    %c0_111 = arith.constant 0 : index
    %276 = vector.load %arg19[%c0_110, %c0_111] : memref<1x32xf32, #tpu.memory_space<vmem>>, vector<1x32xf32>
    %c0_112 = arith.constant 0 : index
    %c0_113 = arith.constant 0 : index
    %277 = vector.load %arg20[%c0_112, %c0_113] : memref<1x32xf32, #tpu.memory_space<vmem>>, vector<1x32xf32>
    %cst_114 = arith.constant dense<0.000000e+00> : vector<16xf32>
    %278 = vector.multi_reduction <add>, %275, %cst_114 [1] : vector<16x32xf32> to vector<16xf32>
    %279 = vector.shape_cast %278 : vector<16xf32> to vector<16x1xf32>
    %cst_115 = arith.constant 3.200000e+01 : f32
    %280 = vector.broadcast %cst_115 : f32 to vector<16x1xf32>
    %281 = arith.divf %279, %280 : vector<16x1xf32>
    %282 = vector.broadcast %281 : vector<16x1xf32> to vector<16x32xf32>
    %283 = arith.subf %275, %282 : vector<16x32xf32>
    %284 = arith.mulf %283, %283 : vector<16x32xf32>
    %cst_116 = arith.constant dense<0.000000e+00> : vector<16xf32>
    %285 = vector.multi_reduction <add>, %284, %cst_116 [1] : vector<16x32xf32> to vector<16xf32>
    %286 = vector.shape_cast %285 : vector<16xf32> to vector<16x1xf32>
    %cst_117 = arith.constant 3.200000e+01 : f32
    %287 = vector.broadcast %cst_117 : f32 to vector<16x1xf32>
    %288 = arith.divf %286, %287 : vector<16x1xf32>
    %289 = vector.broadcast %281 : vector<16x1xf32> to vector<16x32xf32>
    %290 = arith.subf %275, %289 : vector<16x32xf32>
    %cst_118 = arith.constant 9.99999974E-6 : f32
    %291 = vector.broadcast %cst_118 : f32 to vector<16x1xf32>
    %292 = arith.addf %288, %291 : vector<16x1xf32>
    %293 = math.rsqrt %292 : vector<16x1xf32>
    %294 = vector.broadcast %293 : vector<16x1xf32> to vector<16x32xf32>
    %295 = arith.mulf %290, %294 : vector<16x32xf32>
    %296 = vector.broadcast %276 : vector<1x32xf32> to vector<16x32xf32>
    %297 = arith.mulf %295, %296 : vector<16x32xf32>
    %298 = vector.broadcast %277 : vector<1x32xf32> to vector<16x32xf32>
    %299 = arith.addf %297, %298 : vector<16x32xf32>
    %c0_119 = arith.constant 0 : index
    %c0_120 = arith.constant 0 : index
    %300 = vector.load %arg21[%c0_119, %c0_120] : memref<16x32xf32, #tpu.memory_space<vmem>>, vector<16x32xf32>
    tpu.vector_store %arg21[%c0_119, %c0_120], %299 {strides = array<i32>} : memref<16x32xf32, #tpu.memory_space<vmem>>, vector<16x32xf32>,
    return
  }
}

</mosaic_0001>

<llo_original>
// kernel: tpu_custom_call.1
$region0: #{tpu_custom_call.1}
  #allocation0 [shape = 'u32[]', space=smem, size = 0x4, offset = 0x4, fixed_abs, tag = 'smem constant byte address 0x4 - core index']
  #allocation1 [shape = 'u32[144,128]{1,0:T(1,128)}', space=vmem, size = 0x12000, scoped, tag = 'internal scratch']
  %s0 = inlined_call_operand.vmem [shape: f32[16,32], index: 0, kind: input, shape index: {}]
  %s1 = inlined_call_operand.hbm [shape: f32[16,32], index: 1, kind: input, shape index: {}]
  %s2 = inlined_call_operand.vmem [shape: f32[64,8], index: 2, kind: input, shape index: {}]
  %s3 = inlined_call_operand.vmem [shape: f32[64,8], index: 3, kind: input, shape index: {}]
  %s4 = inlined_call_operand.vmem [shape: f32[32,96], index: 4, kind: input, shape index: {}]
  %s5 = inlined_call_operand.vmem [shape: f32[32,32], index: 5, kind: input, shape index: {}]
  %s6 = inlined_call_operand.vmem [shape: f32[1,32], index: 6, kind: input, shape index: {}]
  %s7 = inlined_call_operand.vmem [shape: f32[1,32], index: 7, kind: input, shape index: {}]
  %s8 = inlined_call_operand.vmem [shape: f32[1,32], index: 8, kind: input, shape index: {}]
  %s9 = inlined_call_operand.vmem [shape: f32[32,32], index: 9, kind: input, shape index: {}]
  %s10 = inlined_call_operand.vmem [shape: f32[32,64], index: 10, kind: input, shape index: {}]
  %s11 = inlined_call_operand.vmem [shape: f32[32,32], index: 11, kind: input, shape index: {}]
  %s12 = inlined_call_operand.vmem [shape: f32[1,32], index: 12, kind: input, shape index: {}]
  %s13 = inlined_call_operand.vmem [shape: f32[1,32], index: 13, kind: input, shape index: {}]
  %s14 = inlined_call_operand.vmem [shape: f32[1,32], index: 14, kind: input, shape index: {}]
  %s15 = inlined_call_operand.vmem [shape: f32[32,64], index: 15, kind: input, shape index: {}]
  %s16 = inlined_call_operand.vmem [shape: f32[1,64], index: 16, kind: input, shape index: {}]
  %s17 = inlined_call_operand.vmem [shape: f32[64,32], index: 17, kind: input, shape index: {}]
  %s18 = inlined_call_operand.vmem [shape: f32[1,32], index: 18, kind: input, shape index: {}]
  %s19 = inlined_call_operand.vmem [shape: f32[1,32], index: 19, kind: input, shape index: {}]
  %s20 = inlined_call_operand.vmem [shape: f32[1,32], index: 20, kind: input, shape index: {}]
  %s21 = inlined_call_operand.hbm [shape: f32[16,32], index: 21, kind: output, shape index: {}]
  %s22 = sld [smem:[#allocation0]]
  $region98: #{tpu_custom_call.1} parent=0
    _
  %s24 = ssub.s32 1, %s22
  %s25 = scalar_select 0, %s24, %s22
  $region1: #{tpu_custom_call.1} parent=0
    #allocation2 [shape = 'u8[8192]{0}', space=vmem, size = 0x2000, scoped, tag = 'input window, operand 1, single buffered']
    #allocation3 [shape = 's32[1]{0}', space=sflag, size = 0x4, scoped, tag = 'scoped memory for tpu_custom_call.1']
    #allocation4 [shape = 's32[1]{0}', space=sflag, size = 0x4, scoped, tag = 'scoped memory for tpu_custom_call.1']
    #allocation5 [shape = 'u8[8192]{0}', space=vmem, size = 0x2000, scoped, tag = 'output window, operand 0, single buffered']
    %26 = vsyncpa [#allocation3], 0
    %27 = vsyncpa [#allocation4], 0
    // Predicated region
    $region2: #{tpu_custom_call.1} parent=1 // pred_check
      _
    $region3: #{tpu_custom_call.1} parent=1 // pred_check_branch
      %29 = sbr.rel (0) target = $region5
    $region4: #{tpu_custom_call.1} parent=1 // pred_region
      _
    $region5: #{tpu_custom_call.1} parent=1 // pred_fallthru
      _
    // Predicated region
    $region6: #{tpu_custom_call.1} parent=1 // pred_check
      _
    $region7: #{tpu_custom_call.1} parent=1 // pred_check_branch
      %31 = sbr.rel (0) target = $region9
    $region8: #{tpu_custom_call.1} parent=1 // pred_region
      %s33 = ssub.s32 256, 256
      %34 = vsyncadd [#allocation3], %s33
      %s35 = sshll.u32 [#allocation2], 4
      %s36 = int_to_ptr.vmem [resolvable:$true] %s35
      %41 = dma.hbm_to_vmem [thread:$0]  %s1, 256, %s36, [#allocation3], 128, 128, 8
    $region9: #{tpu_custom_call.1} parent=1 // pred_fallthru
      _
    // Predicated region
    $region10: #{tpu_custom_call.1} parent=1 // pred_check
      _
    $region11: #{tpu_custom_call.1} parent=1 // pred_check_branch
      %43 = sbr.rel (0) target = $region13
    $region12: #{tpu_custom_call.1} parent=1 // pred_region
      _
    $region13: #{tpu_custom_call.1} parent=1 // pred_fallthru
      _
    // Predicated region
    $region14: #{tpu_custom_call.1} parent=1 // pred_check
      _
    $region15: #{tpu_custom_call.1} parent=1 // pred_check_branch
      %45 = sbr.rel (0) target = $region17
    $region16: #{tpu_custom_call.1} parent=1 // pred_region
      _
    $region17: #{tpu_custom_call.1} parent=1 // pred_fallthru
      _
    // Predicated region
    $region18: #{tpu_custom_call.1} parent=1 // pred_check
      _
    $region19: #{tpu_custom_call.1} parent=1 // pred_check_branch
      %47 = sbr.rel (0) target = $region21
    $region20: #{tpu_custom_call.1} parent=1 // pred_region
      _
    $region21: #{tpu_custom_call.1} parent=1 // pred_fallthru
      _
    // Predicated region
    $region22: #{tpu_custom_call.1} parent=1 // pred_check
      _
    $region23: #{tpu_custom_call.1} parent=1 // pred_check_branch
      %49 = sbr.rel (0) target = $region25
    $region24: #{tpu_custom_call.1} parent=1 // pred_region
      _
    $region25: #{tpu_custom_call.1} parent=1 // pred_fallthru
      _
    // Predicated region
    $region26: #{tpu_custom_call.1} parent=1 // pred_check
      _
    $region27: #{tpu_custom_call.1} parent=1 // pred_check_branch
      %51 = sbr.rel (0) target = $region29
    $region28: #{tpu_custom_call.1} parent=1 // pred_region
      _
    $region29: #{tpu_custom_call.1} parent=1 // pred_fallthru
      _
    // Predicated region
    $region30: #{tpu_custom_call.1} parent=1 // pred_check
      _
    $region31: #{tpu_custom_call.1} parent=1 // pred_check_branch
      %53 = sbr.rel (0) target = $region33
    $region32: #{tpu_custom_call.1} parent=1 // pred_region
      _
    $region33: #{tpu_custom_call.1} parent=1 // pred_fallthru
      _
    // Predicated region
    $region34: #{tpu_custom_call.1} parent=1 // pred_check
      _
    $region35: #{tpu_custom_call.1} parent=1 // pred_check_branch
      %55 = sbr.rel (0) target = $region37
    $region36: #{tpu_custom_call.1} parent=1 // pred_region
      _
    $region37: #{tpu_custom_call.1} parent=1 // pred_fallthru
      _
    // Predicated region
    $region38: #{tpu_custom_call.1} parent=1 // pred_check
      _
    $region39: #{tpu_custom_call.1} parent=1 // pred_check_branch
      %57 = sbr.rel (0) target = $region41
    $region40: #{tpu_custom_call.1} parent=1 // pred_region
      _
    $region41: #{tpu_custom_call.1} parent=1 // pred_fallthru
      _
    // Predicated region
    $region42: #{tpu_custom_call.1} parent=1 // pred_check
      _
    $region43: #{tpu_custom_call.1} parent=1 // pred_check_branch
      %59 = sbr.rel (0) target = $region45
    $region44: #{tpu_custom_call.1} parent=1 // pred_region
      _
    $region45: #{tpu_custom_call.1} parent=1 // pred_fallthru
      _
    // Predicated region
    $region46: #{tpu_custom_call.1} parent=1 // pred_check
      _
    $region47: #{tpu_custom_call.1} parent=1 // pred_check_branch
      %61 = sbr.rel (0) target = $region49
    $region48: #{tpu_custom_call.1} parent=1 // pred_region
      _
    $region49: #{tpu_custom_call.1} parent=1 // pred_fallthru
      _
    // Predicated region
    $region50: #{tpu_custom_call.1} parent=1 // pred_check
      _
    $region51: #{tpu_custom_call.1} parent=1 // pred_check_branch
      %63 = sbr.rel (0) target = $region53
    $region52: #{tpu_custom_call.1} parent=1 // pred_region
      _
    $region53: #{tpu_custom_call.1} parent=1 // pred_fallthru
      _
    // Predicated region
    $region54: #{tpu_custom_call.1} parent=1 // pred_check
      _
    $region55: #{tpu_custom_call.1} parent=1 // pred_check_branch
      %65 = sbr.rel (0) target = $region57
    $region56: #{tpu_custom_call.1} parent=1 // pred_region
      _
    $region57: #{tpu_custom_call.1} parent=1 // pred_fallthru
      _
    // Predicated region
    $region58: #{tpu_custom_call.1} parent=1 // pred_check
      _
    $region59: #{tpu_custom_call.1} parent=1 // pred_check_branch
      %67 = sbr.rel (0) target = $region61
    $region60: #{tpu_custom_call.1} parent=1 // pred_region
      _
    $region61: #{tpu_custom_call.1} parent=1 // pred_fallthru
      _
    // Predicated region
    $region62: #{tpu_custom_call.1} parent=1 // pred_check
      _
    $region63: #{tpu_custom_call.1} parent=1 // pred_check_branch
      %69 = sbr.rel (0) target = $region65
    $region64: #{tpu_custom_call.1} parent=1 // pred_region
      _
    $region65: #{tpu_custom_call.1} parent=1 // pred_fallthru
      _
    // Predicated region
    $region66: #{tpu_custom_call.1} parent=1 // pred_check
      _
    $region67: #{tpu_custom_call.1} parent=1 // pred_check_branch
      %71 = sbr.rel (0) target = $region69
    $region68: #{tpu_custom_call.1} parent=1 // pred_region
      _
    $region69: #{tpu_custom_call.1} parent=1 // pred_fallthru
      _
    // Predicated region
    $region70: #{tpu_custom_call.1} parent=1 // pred_check
      _
    $region71: #{tpu_custom_call.1} parent=1 // pred_check_branch
      %73 = sbr.rel (0) target = $region73
    $region72: #{tpu_custom_call.1} parent=1 // pred_region
      _
    $region73: #{tpu_custom_call.1} parent=1 // pred_fallthru
      _
    // Predicated region
    $region74: #{tpu_custom_call.1} parent=1 // pred_check
      _
    $region75: #{tpu_custom_call.1} parent=1 // pred_check_branch
      %75 = sbr.rel (0) target = $region77
    $region76: #{tpu_custom_call.1} parent=1 // pred_region
      _
    $region77: #{tpu_custom_call.1} parent=1 // pred_fallthru
      _
    // Predicated region
    $region78: #{tpu_custom_call.1} parent=1 // pred_check
      _
    $region79: #{tpu_custom_call.1} parent=1 // pred_check_branch
      %77 = sbr.rel (0) target = $region81
    $region80: #{tpu_custom_call.1} parent=1 // pred_region
      _
    $region81: #{tpu_custom_call.1} parent=1 // pred_fallthru
      _
    // Predicated region
    $region82: #{tpu_custom_call.1} parent=1 // pred_check
      _
    $region83: #{tpu_custom_call.1} parent=1 // pred_check_branch
      %79 = sbr.rel (0) target = $region85
    $region84: #{tpu_custom_call.1} parent=1 // pred_region
      _
    $region85: #{tpu_custom_call.1} parent=1 // pred_fallthru
      _
    // Predicated region
    $region86: #{tpu_custom_call.1} parent=1 // pred_check
      _
    $region87: #{tpu_custom_call.1} parent=1 // pred_check_branch
      %81 = sbr.rel (0) target = $region89
    $region88: #{tpu_custom_call.1} parent=1 // pred_region
      %82 = dma.done [#allocation3], 256
    $region89: #{tpu_custom_call.1} parent=1 // pred_fallthru
      _
    %v83 = vld [vmem:[%s0] sm:$0xff]
    %v84 = vld [vmem:[%s0 + $0x8] sm:$0xff]
    %v85 = vld [vmem:[#allocation2] sm:$0xff]
    %v86 = vld [vmem:[#allocation2 + $0x8] sm:$0xff]
    %v87 = vld [vmem:[%s4] sm:$0xff]
    %v88 = vld [vmem:[%s4 + $0x8] sm:$0xff]
    %v89 = vld [vmem:[%s4 + $0x10] sm:$0xff]
    %v90 = vld [vmem:[%s4 + $0x18] sm:$0xff]
    %vm91 = vcmask 261120
    %v93 = vsel %vm91, %v83, 0
    %v96 = vsel %vm91, %v84, 0
    %98 = vmatprep.subr.mxu0 0.0
    %99 = vmatpush1.msra.mxu0 %v87
    %100 = vmatprep.subr.mxu0 0.0
    %101 = vmatpush1.msra.mxu0 %v88
    %102 = vmatprep.subr.mxu0 0.0
    %103 = vmatpush1.msra.mxu0 %v89
    %104 = vmatprep.subr.mxu0 0.0
    %105 = vmatpush1.msra.mxu0 %v90
    %106 = vmatprep.subr.mxu0 0.0
    %107 = vmatpush1.msra.mxu0 0.0
    %108 = vmatprep.subr.mxu0 0.0
    %109 = vmatpush1.msra.mxu0 0.0
    %110 = vmatprep.subr.mxu0 0.0
    %111 = vmatpush1.msra.mxu0 0.0
    %112 = vmatprep.subr.mxu0 0.0
    %113 = vmatpush1.msra.mxu0 0.0
    %114 = vmatprep.subr.mxu0 0.0
    %115 = vmatpush1.msra.mxu0 0.0
    %116 = vmatprep.subr.mxu0 0.0
    %117 = vmatpush1.msra.mxu0 0.0
    %118 = vmatprep.subr.mxu0 0.0
    %119 = vmatpush1.msra.mxu0 0.0
    %120 = vmatprep.subr.mxu0 0.0
    %121 = vmatpush1.msra.mxu0 0.0
    %122 = vmatprep.subr.mxu0 0.0
    %123 = vmatpush1.msra.mxu0 0.0
    %124 = vmatprep.subr.mxu0 0.0
    %125 = vmatpush1.msra.mxu0 0.0
    %126 = vmatprep.subr.mxu0 0.0
    %127 = vmatpush1.msra.mxu0 0.0
    %128 = vmatprep.subr.mxu0 0.0
    %129 = vmatpush1.msra.mxu0 0.0
    %130 = vmatprep.subr.mxu0 0.0
    %131 = vmatpush1.msra.mxu0 0.0
    %132 = vmatprep.subr.mxu0 0.0
    %133 = vmatpush1.msra.mxu0 0.0
    %134 = vmatprep.subr.mxu0 0.0
    %135 = vmatpush1.msra.mxu0 0.0
    %136 = vmatprep.subr.mxu0 0.0
    %137 = vmatpush1.msra.mxu0 0.0
    %138 = vmatprep.subr.mxu0 0.0
    %139 = vmatpush1.msra.mxu0 0.0
    %140 = vmatprep.subr.mxu0 0.0
    %141 = vmatpush1.msra.mxu0 0.0
    %142 = vmatprep.subr.mxu0 0.0
    %143 = vmatpush1.msra.mxu0 0.0
    %144 = vmatprep.subr.mxu0 0.0
    %145 = vmatpush1.msra.mxu0 0.0
    %146 = vmatprep.subr.mxu0 0.0
    %147 = vmatpush1.msra.mxu0 0.0
    %148 = vmatprep.subr.mxu0 0.0
    %149 = vmatpush1.msra.mxu0 0.0
    %150 = vmatprep.subr.mxu0 0.0
    %151 = vmatpush1.msra.mxu0 0.0
    %152 = vmatprep.subr.mxu0 0.0
    %153 = vmatpush1.msra.mxu0 0.0
    %154 = vmatprep.subr.mxu0 0.0
    %155 = vmatpush1.msra.mxu0 0.0
    %156 = vmatprep.subr.mxu0 0.0
    %157 = vmatpush1.msra.mxu0 0.0
    %158 = vmatprep.subr.mxu0 0.0
    %159 = vmatpush1.msra.mxu0 0.0
    %160 = vmatprep.subr.mxu0 0.0
    %161 = vmatpush1.msra.mxu0 0.0
    %162 = vmatprep.mubr.f32.mxu0 0.0
    %163 = vmatmul.mubr.f32.gmra.mrb[0].mxu0 %v93
    %v164 = vpop.f32.mrb[0].mxu0
    %v165 = vadd.f32 0.0, %v164
    %v166 = vpop.f32.mrb[0].mxu0
    %167 = vmatprep.mubr.f32.mxu0 0.0
    %168 = vmatmul.mubr.f32.gmra.mrb[0].mxu0 %v96
    %v169 = vpop.f32.mrb[0].mxu0
    %v170 = vadd.f32 0.0, %v169
    %v171 = vpop.f32.mrb[0].mxu0
    %172 = vdwg.mxu0
    %v173 = vmul.f32 %v165, 0.35355338
    %v174 = vmul.f32 %v170, 0.35355338
    %v175 = vld [vmem:[%s5] sm:$0xff]
    %v176 = vld [vmem:[%s5 + $0x8] sm:$0xff]
    %v177 = vld [vmem:[%s5 + $0x10] sm:$0xff]
    %v178 = vld [vmem:[%s5 + $0x18] sm:$0xff]
    %v179 = vld [vmem:[%s6] sm:$0x1]
    %v180 = vld [vmem:[%s2] sm:$0xff]
    %v181 = vld [vmem:[%s2 + $0x8] sm:$0xff]
    %v182 = vld [vmem:[%s2 + $0x10] sm:$0xff]
    %v183 = vld [vmem:[%s2 + $0x18] sm:$0xff]
    %v184 = vld [vmem:[%s2 + $0x20] sm:$0xff]
    %v185 = vld [vmem:[%s2 + $0x28] sm:$0xff]
    %v186 = vld [vmem:[%s2 + $0x30] sm:$0xff]
    %v187 = vld [vmem:[%s2 + $0x38] sm:$0xff]
    %189 = vrot.lane.b32.xlu0 %v165, 96
    %v190 = vpop.permute.xlu0 %189
    %vm191 = vcmask 64512
    %v193 = vsel %vm191, %v173, 0
    %v195 = vsel %vm191, %v190, 0
    %197 = vmatprep.subr.mxu0 0.0
    %198 = vmatpush1.xpose.msra.mxu0 %v195
    %199 = vmatprep.subr.mxu0 0.0
    %200 = vmatpush1.xpose.msra.mxu0 0.0
    %201 = vmatprep.subr.mxu0 0.0
    %202 = vmatpush1.xpose.msra.mxu0 0.0
    %203 = vmatprep.subr.mxu0 0.0
    %204 = vmatpush1.xpose.msra.mxu0 0.0
    %205 = vmatprep.subr.mxu0 0.0
    %206 = vmatpush1.xpose.msra.mxu0 0.0
    %207 = vmatprep.subr.mxu0 0.0
    %208 = vmatpush1.xpose.msra.mxu0 0.0
    %209 = vmatprep.subr.mxu0 0.0
    %210 = vmatpush1.xpose.msra.mxu0 0.0
    %211 = vmatprep.subr.mxu0 0.0
    %212 = vmatpush1.xpose.msra.mxu0 0.0
    %213 = vmatprep.subr.mxu0 0.0
    %214 = vmatpush1.xpose.msra.mxu0 0.0
    %215 = vmatprep.subr.mxu0 0.0
    %216 = vmatpush1.xpose.msra.mxu0 0.0
    %217 = vmatprep.subr.mxu0 0.0
    %218 = vmatpush1.xpose.msra.mxu0 0.0
    %219 = vmatprep.subr.mxu0 0.0
    %220 = vmatpush1.xpose.msra.mxu0 0.0
    %221 = vmatprep.subr.mxu0 0.0
    %222 = vmatpush1.xpose.msra.mxu0 0.0
    %223 = vmatprep.subr.mxu0 0.0
    %224 = vmatpush1.xpose.msra.mxu0 0.0
    %225 = vmatprep.subr.mxu0 0.0
    %226 = vmatpush1.xpose.msra.mxu0 0.0
    %227 = vmatprep.subr.mxu0 0.0
    %228 = vmatpush1.xpose.msra.mxu0 0.0
    %229 = vmatprep.subr.mxu0 0.0
    %230 = vmatpush1.xpose.msra.mxu0 0.0
    %231 = vmatprep.subr.mxu0 0.0
    %232 = vmatpush1.xpose.msra.mxu0 0.0
    %233 = vmatprep.subr.mxu0 0.0
    %234 = vmatpush1.xpose.msra.mxu0 0.0
    %235 = vmatprep.subr.mxu0 0.0
    %236 = vmatpush1.xpose.msra.mxu0 0.0
    %237 = vmatprep.subr.mxu0 0.0
    %238 = vmatpush1.xpose.msra.mxu0 0.0
    %239 = vmatprep.subr.mxu0 0.0
    %240 = vmatpush1.xpose.msra.mxu0 0.0
    %241 = vmatprep.subr.mxu0 0.0
    %242 = vmatpush1.xpose.msra.mxu0 0.0
    %243 = vmatprep.subr.mxu0 0.0
    %244 = vmatpush1.xpose.msra.mxu0 0.0
    %245 = vmatprep.subr.mxu0 0.0
    %246 = vmatpush1.xpose.msra.mxu0 0.0
    %247 = vmatprep.subr.mxu0 0.0
    %248 = vmatpush1.xpose.msra.mxu0 0.0
    %249 = vmatprep.subr.mxu0 0.0
    %250 = vmatpush1.xpose.msra.mxu0 0.0
    %251 = vmatprep.subr.mxu0 0.0
    %252 = vmatpush1.xpose.msra.mxu0 0.0
    %253 = vmatprep.subr.mxu0 0.0
    %254 = vmatpush1.xpose.msra.mxu0 0.0
    %255 = vmatprep.subr.mxu0 0.0
    %256 = vmatpush1.xpose.msra.mxu0 0.0
    %257 = vmatprep.subr.mxu0 0.0
    %258 = vmatpush1.xpose.msra.mxu0 0.0
    %259 = vmatprep.subr.mxu0 0.0
    %260 = vmatpush1.xpose.msra.mxu0 0.0
    %261 = vmatprep.mubr.f32.mxu0 0.0
    %262 = vmatmul.mubr.f32.gmra.mrb[0].mxu0 %v193
    %v263 = vpop.f32.mrb[0].mxu0
    %v264 = vadd.f32 0.0, %v263
    %v265 = vpop.f32.mrb[0].mxu0
    %266 = vdwg.mxu0
    %267 = vrot.lane.b32.xlu0 %v173, 120
    %v268 = vpop.permute.xlu0 %267
    %269 = vrot.lane.b32.xlu0 %v165, 88
    %v270 = vpop.permute.xlu0 %269
    %v271 = vsel %vm191, %v268, 0
    %v273 = vsel %vm191, %v270, 0
    %275 = vmatprep.subr.mxu0 0.0
    %276 = vmatpush1.xpose.msra.mxu0 %v273
    %277 = vmatprep.subr.mxu0 0.0
    %278 = vmatpush1.xpose.msra.mxu0 0.0
    %279 = vmatprep.subr.mxu0 0.0
    %280 = vmatpush1.xpose.msra.mxu0 0.0
    %281 = vmatprep.subr.mxu0 0.0
    %282 = vmatpush1.xpose.msra.mxu0 0.0
    %283 = vmatprep.subr.mxu0 0.0
    %284 = vmatpush1.xpose.msra.mxu0 0.0
    %285 = vmatprep.subr.mxu0 0.0
    %286 = vmatpush1.xpose.msra.mxu0 0.0
    %287 = vmatprep.subr.mxu0 0.0
    %288 = vmatpush1.xpose.msra.mxu0 0.0
    %289 = vmatprep.subr.mxu0 0.0
    %290 = vmatpush1.xpose.msra.mxu0 0.0
    %291 = vmatprep.subr.mxu0 0.0
    %292 = vmatpush1.xpose.msra.mxu0 0.0
    %293 = vmatprep.subr.mxu0 0.0
    %294 = vmatpush1.xpose.msra.mxu0 0.0
    %295 = vmatprep.subr.mxu0 0.0
    %296 = vmatpush1.xpose.msra.mxu0 0.0
    %297 = vmatprep.subr.mxu0 0.0
    %298 = vmatpush1.xpose.msra.mxu0 0.0
    %299 = vmatprep.subr.mxu0 0.0
    %300 = vmatpush1.xpose.msra.mxu0 0.0
    %301 = vmatprep.subr.mxu0 0.0
    %302 = vmatpush1.xpose.msra.mxu0 0.0
    %303 = vmatprep.subr.mxu0 0.0
    %304 = vmatpush1.xpose.msra.mxu0 0.0
    %305 = vmatprep.subr.mxu0 0.0
    %306 = vmatpush1.xpose.msra.mxu0 0.0
    %307 = vmatprep.subr.mxu0 0.0
    %308 = vmatpush1.xpose.msra.mxu0 0.0
    %309 = vmatprep.subr.mxu0 0.0
    %310 = vmatpush1.xpose.msra.mxu0 0.0
    %311 = vmatprep.subr.mxu0 0.0
    %312 = vmatpush1.xpose.msra.mxu0 0.0
    %313 = vmatprep.subr.mxu0 0.0
    %314 = vmatpush1.xpose.msra.mxu0 0.0
    %315 = vmatprep.subr.mxu0 0.0
    %316 = vmatpush1.xpose.msra.mxu0 0.0
    %317 = vmatprep.subr.mxu0 0.0
    %318 = vmatpush1.xpose.msra.mxu0 0.0
    %319 = vmatprep.subr.mxu0 0.0
    %320 = vmatpush1.xpose.msra.mxu0 0.0
    %321 = vmatprep.subr.mxu0 0.0
    %322 = vmatpush1.xpose.msra.mxu0 0.0
    %323 = vmatprep.subr.mxu0 0.0
    %324 = vmatpush1.xpose.msra.mxu0 0.0
    %325 = vmatprep.subr.mxu0 0.0
    %326 = vmatpush1.xpose.msra.mxu0 0.0
    %327 = vmatprep.subr.mxu0 0.0
    %328 = vmatpush1.xpose.msra.mxu0 0.0
    %329 = vmatprep.subr.mxu0 0.0
    %330 = vmatpush1.xpose.msra.mxu0 0.0
    %331 = vmatprep.subr.mxu0 0.0
    %332 = vmatpush1.xpose.msra.mxu0 0.0
    %333 = vmatprep.subr.mxu0 0.0
    %334 = vmatpush1.xpose.msra.mxu0 0.0
    %335 = vmatprep.subr.mxu0 0.0
    %336 = vmatpush1.xpose.msra.mxu0 0.0
    %337 = vmatprep.subr.mxu0 0.0
    %338 = vmatpush1.xpose.msra.mxu0 0.0
    %339 = vmatprep.mubr.f32.mxu0 0.0
    %340 = vmatmul.mubr.f32.gmra.mrb[0].mxu0 %v271
    %v341 = vpop.f32.mrb[0].mxu0
    %v342 = vadd.f32 0.0, %v341
    %v343 = vpop.f32.mrb[0].mxu0
    %344 = vdwg.mxu0
    %345 = vrot.lane.b32.xlu0 %v173, 112
    %v346 = vpop.permute.xlu0 %345
    %347 = vrot.lane.b32.xlu0 %v165, 80
    %v348 = vpop.permute.xlu0 %347
    %v349 = vsel %vm191, %v346, 0
    %v351 = vsel %vm191, %v348, 0
    %353 = vmatprep.subr.mxu0 0.0
    %354 = vmatpush1.xpose.msra.mxu0 %v351
    %355 = vmatprep.subr.mxu0 0.0
    %356 = vmatpush1.xpose.msra.mxu0 0.0
    %357 = vmatprep.subr.mxu0 0.0
    %358 = vmatpush1.xpose.msra.mxu0 0.0
    %359 = vmatprep.subr.mxu0 0.0
    %360 = vmatpush1.xpose.msra.mxu0 0.0
    %361 = vmatprep.subr.mxu0 0.0
    %362 = vmatpush1.xpose.msra.mxu0 0.0
    %363 = vmatprep.subr.mxu0 0.0
    %364 = vmatpush1.xpose.msra.mxu0 0.0
    %365 = vmatprep.subr.mxu0 0.0
    %366 = vmatpush1.xpose.msra.mxu0 0.0
    %367 = vmatprep.subr.mxu0 0.0
    %368 = vmatpush1.xpose.msra.mxu0 0.0
    %369 = vmatprep.subr.mxu0 0.0
    %370 = vmatpush1.xpose.msra.mxu0 0.0
    %371 = vmatprep.subr.mxu0 0.0
    %372 = vmatpush1.xpose.msra.mxu0 0.0
    %373 = vmatprep.subr.mxu0 0.0
    %374 = vmatpush1.xpose.msra.mxu0 0.0
    %375 = vmatprep.subr.mxu0 0.0
    %376 = vmatpush1.xpose.msra.mxu0 0.0
    %377 = vmatprep.subr.mxu0 0.0
    %378 = vmatpush1.xpose.msra.mxu0 0.0
    %379 = vmatprep.subr.mxu0 0.0
    %380 = vmatpush1.xpose.msra.mxu0 0.0
    %381 = vmatprep.subr.mxu0 0.0
    %382 = vmatpush1.xpose.msra.mxu0 0.0
    %383 = vmatprep.subr.mxu0 0.0
    %384 = vmatpush1.xpose.msra.mxu0 0.0
    %385 = vmatprep.subr.mxu0 0.0
    %386 = vmatpush1.xpose.msra.mxu0 0.0
    %387 = vmatprep.subr.mxu0 0.0
    %388 = vmatpush1.xpose.msra.mxu0 0.0
    %389 = vmatprep.subr.mxu0 0.0
    %390 = vmatpush1.xpose.msra.mxu0 0.0
    %391 = vmatprep.subr.mxu0 0.0
    %392 = vmatpush1.xpose.msra.mxu0 0.0
    %393 = vmatprep.subr.mxu0 0.0
    %394 = vmatpush1.xpose.msra.mxu0 0.0
    %395 = vmatprep.subr.mxu0 0.0
    %396 = vmatpush1.xpose.msra.mxu0 0.0
    %397 = vmatprep.subr.mxu0 0.0
    %398 = vmatpush1.xpose.msra.mxu0 0.0
    %399 = vmatprep.subr.mxu0 0.0
    %400 = vmatpush1.xpose.msra.mxu0 0.0
    %401 = vmatprep.subr.mxu0 0.0
    %402 = vmatpush1.xpose.msra.mxu0 0.0
    %403 = vmatprep.subr.mxu0 0.0
    %404 = vmatpush1.xpose.msra.mxu0 0.0
    %405 = vmatprep.subr.mxu0 0.0
    %406 = vmatpush1.xpose.msra.mxu0 0.0
    %407 = vmatprep.subr.mxu0 0.0
    %408 = vmatpush1.xpose.msra.mxu0 0.0
    %409 = vmatprep.subr.mxu0 0.0
    %410 = vmatpush1.xpose.msra.mxu0 0.0
    %411 = vmatprep.subr.mxu0 0.0
    %412 = vmatpush1.xpose.msra.mxu0 0.0
    %413 = vmatprep.subr.mxu0 0.0
    %414 = vmatpush1.xpose.msra.mxu0 0.0
    %415 = vmatprep.subr.mxu0 0.0
    %416 = vmatpush1.xpose.msra.mxu0 0.0
    %417 = vmatprep.mubr.f32.mxu0 0.0
    %418 = vmatmul.mubr.f32.gmra.mrb[0].mxu0 %v349
    %v419 = vpop.f32.mrb[0].mxu0
    %v420 = vadd.f32 0.0, %v419
    %v421 = vpop.f32.mrb[0].mxu0
    %422 = vdwg.mxu0
    %423 = vrot.lane.b32.xlu0 %v173, 104
    %v424 = vpop.permute.xlu0 %423
    %425 = vrot.lane.b32.xlu0 %v165, 72
    %v426 = vpop.permute.xlu0 %425
    %v427 = vsel %vm191, %v424, 0
    %v429 = vsel %vm191, %v426, 0
    %431 = vmatprep.subr.mxu0 0.0
    %432 = vmatpush1.xpose.msra.mxu0 %v429
    %433 = vmatprep.subr.mxu0 0.0
    %434 = vmatpush1.xpose.msra.mxu0 0.0
    %435 = vmatprep.subr.mxu0 0.0
    %436 = vmatpush1.xpose.msra.mxu0 0.0
    %437 = vmatprep.subr.mxu0 0.0
    %438 = vmatpush1.xpose.msra.mxu0 0.0
    %439 = vmatprep.subr.mxu0 0.0
    %440 = vmatpush1.xpose.msra.mxu0 0.0
    %441 = vmatprep.subr.mxu0 0.0
    %442 = vmatpush1.xpose.msra.mxu0 0.0
    %443 = vmatprep.subr.mxu0 0.0
    %444 = vmatpush1.xpose.msra.mxu0 0.0
    %445 = vmatprep.subr.mxu0 0.0
    %446 = vmatpush1.xpose.msra.mxu0 0.0
    %447 = vmatprep.subr.mxu0 0.0
    %448 = vmatpush1.xpose.msra.mxu0 0.0
    %449 = vmatprep.subr.mxu0 0.0
    %450 = vmatpush1.xpose.msra.mxu0 0.0
    %451 = vmatprep.subr.mxu0 0.0
    %452 = vmatpush1.xpose.msra.mxu0 0.0
    %453 = vmatprep.subr.mxu0 0.0
    %454 = vmatpush1.xpose.msra.mxu0 0.0
    %455 = vmatprep.subr.mxu0 0.0
    %456 = vmatpush1.xpose.msra.mxu0 0.0
    %457 = vmatprep.subr.mxu0 0.0
    %458 = vmatpush1.xpose.msra.mxu0 0.0
    %459 = vmatprep.subr.mxu0 0.0
    %460 = vmatpush1.xpose.msra.mxu0 0.0
    %461 = vmatprep.subr.mxu0 0.0
    %462 = vmatpush1.xpose.msra.mxu0 0.0
    %463 = vmatprep.subr.mxu0 0.0
    %464 = vmatpush1.xpose.msra.mxu0 0.0
    %465 = vmatprep.subr.mxu0 0.0
    %466 = vmatpush1.xpose.msra.mxu0 0.0
    %467 = vmatprep.subr.mxu0 0.0
    %468 = vmatpush1.xpose.msra.mxu0 0.0
    %469 = vmatprep.subr.mxu0 0.0
    %470 = vmatpush1.xpose.msra.mxu0 0.0
    %471 = vmatprep.subr.mxu0 0.0
    %472 = vmatpush1.xpose.msra.mxu0 0.0
    %473 = vmatprep.subr.mxu0 0.0
    %474 = vmatpush1.xpose.msra.mxu0 0.0
    %475 = vmatprep.subr.mxu0 0.0
    %476 = vmatpush1.xpose.msra.mxu0 0.0
    %477 = vmatprep.subr.mxu0 0.0
    %478 = vmatpush1.xpose.msra.mxu0 0.0
    %479 = vmatprep.subr.mxu0 0.0
    %480 = vmatpush1.xpose.msra.mxu0 0.0
    %481 = vmatprep.subr.mxu0 0.0
    %482 = vmatpush1.xpose.msra.mxu0 0.0
    %483 = vmatprep.subr.mxu0 0.0
    %484 = vmatpush1.xpose.msra.mxu0 0.0
    %485 = vmatprep.subr.mxu0 0.0
    %486 = vmatpush1.xpose.msra.mxu0 0.0
    %487 = vmatprep.subr.mxu0 0.0
    %488 = vmatpush1.xpose.msra.mxu0 0.0
    %489 = vmatprep.subr.mxu0 0.0
    %490 = vmatpush1.xpose.msra.mxu0 0.0
    %491 = vmatprep.subr.mxu0 0.0
    %492 = vmatpush1.xpose.msra.mxu0 0.0
    %493 = vmatprep.subr.mxu0 0.0
    %494 = vmatpush1.xpose.msra.mxu0 0.0
    %495 = vmatprep.mubr.f32.mxu0 0.0
    %496 = vmatmul.mubr.f32.gmra.mrb[0].mxu0 %v427
    %v497 = vpop.f32.mrb[0].mxu0
    %v498 = vadd.f32 0.0, %v497
    %v499 = vpop.f32.mrb[0].mxu0
    %500 = vdwg.mxu0
    %502 = vrot.lane.b32.xlu0 %v170, 96
    %v503 = vpop.permute.xlu0 %502
    %v505 = vsel %vm191, %v174, 0
    %v507 = vsel %vm191, %v503, 0
    %509 = vmatprep.subr.mxu0 0.0
    %510 = vmatpush1.xpose.msra.mxu0 %v507
    %511 = vmatprep.subr.mxu0 0.0
    %512 = vmatpush1.xpose.msra.mxu0 0.0
    %513 = vmatprep.subr.mxu0 0.0
    %514 = vmatpush1.xpose.msra.mxu0 0.0
    %515 = vmatprep.subr.mxu0 0.0
    %516 = vmatpush1.xpose.msra.mxu0 0.0
    %517 = vmatprep.subr.mxu0 0.0
    %518 = vmatpush1.xpose.msra.mxu0 0.0
    %519 = vmatprep.subr.mxu0 0.0
    %520 = vmatpush1.xpose.msra.mxu0 0.0
    %521 = vmatprep.subr.mxu0 0.0
    %522 = vmatpush1.xpose.msra.mxu0 0.0
    %523 = vmatprep.subr.mxu0 0.0
    %524 = vmatpush1.xpose.msra.mxu0 0.0
    %525 = vmatprep.subr.mxu0 0.0
    %526 = vmatpush1.xpose.msra.mxu0 0.0
    %527 = vmatprep.subr.mxu0 0.0
    %528 = vmatpush1.xpose.msra.mxu0 0.0
    %529 = vmatprep.subr.mxu0 0.0
    %530 = vmatpush1.xpose.msra.mxu0 0.0
    %531 = vmatprep.subr.mxu0 0.0
    %532 = vmatpush1.xpose.msra.mxu0 0.0
    %533 = vmatprep.subr.mxu0 0.0
    %534 = vmatpush1.xpose.msra.mxu0 0.0
    %535 = vmatprep.subr.mxu0 0.0
    %536 = vmatpush1.xpose.msra.mxu0 0.0
    %537 = vmatprep.subr.mxu0 0.0
    %538 = vmatpush1.xpose.msra.mxu0 0.0
    %539 = vmatprep.subr.mxu0 0.0
    %540 = vmatpush1.xpose.msra.mxu0 0.0
    %541 = vmatprep.subr.mxu0 0.0
    %542 = vmatpush1.xpose.msra.mxu0 0.0
    %543 = vmatprep.subr.mxu0 0.0
    %544 = vmatpush1.xpose.msra.mxu0 0.0
    %545 = vmatprep.subr.mxu0 0.0
    %546 = vmatpush1.xpose.msra.mxu0 0.0
    %547 = vmatprep.subr.mxu0 0.0
    %548 = vmatpush1.xpose.msra.mxu0 0.0
    %549 = vmatprep.subr.mxu0 0.0
    %550 = vmatpush1.xpose.msra.mxu0 0.0
    %551 = vmatprep.subr.mxu0 0.0
    %552 = vmatpush1.xpose.msra.mxu0 0.0
    %553 = vmatprep.subr.mxu0 0.0
    %554 = vmatpush1.xpose.msra.mxu0 0.0
    %555 = vmatprep.subr.mxu0 0.0
    %556 = vmatpush1.xpose.msra.mxu0 0.0
    %557 = vmatprep.subr.mxu0 0.0
    %558 = vmatpush1.xpose.msra.mxu0 0.0
    %559 = vmatprep.subr.mxu0 0.0
    %560 = vmatpush1.xpose.msra.mxu0 0.0
    %561 = vmatprep.subr.mxu0 0.0
    %562 = vmatpush1.xpose.msra.mxu0 0.0
    %563 = vmatprep.subr.mxu0 0.0
    %564 = vmatpush1.xpose.msra.mxu0 0.0
    %565 = vmatprep.subr.mxu0 0.0
    %566 = vmatpush1.xpose.msra.mxu0 0.0
    %567 = vmatprep.subr.mxu0 0.0
    %568 = vmatpush1.xpose.msra.mxu0 0.0
    %569 = vmatprep.subr.mxu0 0.0
    %570 = vmatpush1.xpose.msra.mxu0 0.0
    %571 = vmatprep.subr.mxu0 0.0
    %572 = vmatpush1.xpose.msra.mxu0 0.0
    %573 = vmatprep.mubr.f32.mxu0 0.0
    %574 = vmatmul.mubr.f32.gmra.mrb[0].mxu0 %v505
    %v575 = vpop.f32.mrb[0].mxu0
    %v576 = vadd.f32 0.0, %v575
    %v577 = vpop.f32.mrb[0].mxu0
    %578 = vdwg.mxu0
    %579 = vrot.lane.b32.xlu0 %v174, 120
    %v580 = vpop.permute.xlu0 %579
    %581 = vrot.lane.b32.xlu0 %v170, 88
    %v582 = vpop.permute.xlu0 %581
    %v583 = vsel %vm191, %v580, 0
    %v585 = vsel %vm191, %v582, 0
    %587 = vmatprep.subr.mxu0 0.0
    %588 = vmatpush1.xpose.msra.mxu0 %v585
    %589 = vmatprep.subr.mxu0 0.0
    %590 = vmatpush1.xpose.msra.mxu0 0.0
    %591 = vmatprep.subr.mxu0 0.0
    %592 = vmatpush1.xpose.msra.mxu0 0.0
    %593 = vmatprep.subr.mxu0 0.0
    %594 = vmatpush1.xpose.msra.mxu0 0.0
    %595 = vmatprep.subr.mxu0 0.0
    %596 = vmatpush1.xpose.msra.mxu0 0.0
    %597 = vmatprep.subr.mxu0 0.0
    %598 = vmatpush1.xpose.msra.mxu0 0.0
    %599 = vmatprep.subr.mxu0 0.0
    %600 = vmatpush1.xpose.msra.mxu0 0.0
    %601 = vmatprep.subr.mxu0 0.0
    %602 = vmatpush1.xpose.msra.mxu0 0.0
    %603 = vmatprep.subr.mxu0 0.0
    %604 = vmatpush1.xpose.msra.mxu0 0.0
    %605 = vmatprep.subr.mxu0 0.0
    %606 = vmatpush1.xpose.msra.mxu0 0.0
    %607 = vmatprep.subr.mxu0 0.0
    %608 = vmatpush1.xpose.msra.mxu0 0.0
    %609 = vmatprep.subr.mxu0 0.0
    %610 = vmatpush1.xpose.msra.mxu0 0.0
    %611 = vmatprep.subr.mxu0 0.0
    %612 = vmatpush1.xpose.msra.mxu0 0.0
    %613 = vmatprep.subr.mxu0 0.0
    %614 = vmatpush1.xpose.msra.mxu0 0.0
    %615 = vmatprep.subr.mxu0 0.0
    %616 = vmatpush1.xpose.msra.mxu0 0.0
    %617 = vmatprep.subr.mxu0 0.0
    %618 = vmatpush1.xpose.msra.mxu0 0.0
    %619 = vmatprep.subr.mxu0 0.0
    %620 = vmatpush1.xpose.msra.mxu0 0.0
    %621 = vmatprep.subr.mxu0 0.0
    %622 = vmatpush1.xpose.msra.mxu0 0.0
    %623 = vmatprep.subr.mxu0 0.0
    %624 = vmatpush1.xpose.msra.mxu0 0.0
    %625 = vmatprep.subr.mxu0 0.0
    %626 = vmatpush1.xpose.msra.mxu0 0.0
    %627 = vmatprep.subr.mxu0 0.0
    %628 = vmatpush1.xpose.msra.mxu0 0.0
    %629 = vmatprep.subr.mxu0 0.0
    %630 = vmatpush1.xpose.msra.mxu0 0.0
    %631 = vmatprep.subr.mxu0 0.0
    %632 = vmatpush1.xpose.msra.mxu0 0.0
    %633 = vmatprep.subr.mxu0 0.0
    %634 = vmatpush1.xpose.msra.mxu0 0.0
    %635 = vmatprep.subr.mxu0 0.0
    %636 = vmatpush1.xpose.msra.mxu0 0.0
    %637 = vmatprep.subr.mxu0 0.0
    %638 = vmatpush1.xpose.msra.mxu0 0.0
    %639 = vmatprep.subr.mxu0 0.0
    %640 = vmatpush1.xpose.msra.mxu0 0.0
    %641 = vmatprep.subr.mxu0 0.0
    %642 = vmatpush1.xpose.msra.mxu0 0.0
    %643 = vmatprep.subr.mxu0 0.0
    %644 = vmatpush1.xpose.msra.mxu0 0.0
    %645 = vmatprep.subr.mxu0 0.0
    %646 = vmatpush1.xpose.msra.mxu0 0.0
    %647 = vmatprep.subr.mxu0 0.0
    %648 = vmatpush1.xpose.msra.mxu0 0.0
    %649 = vmatprep.subr.mxu0 0.0
    %650 = vmatpush1.xpose.msra.mxu0 0.0
    %651 = vmatprep.mubr.f32.mxu0 0.0
    %652 = vmatmul.mubr.f32.gmra.mrb[0].mxu0 %v583
    %v653 = vpop.f32.mrb[0].mxu0
    %v654 = vadd.f32 0.0, %v653
    %v655 = vpop.f32.mrb[0].mxu0
    %656 = vdwg.mxu0
    %657 = vrot.lane.b32.xlu0 %v174, 112
    %v658 = vpop.permute.xlu0 %657
    %659 = vrot.lane.b32.xlu0 %v170, 80
    %v660 = vpop.permute.xlu0 %659
    %v661 = vsel %vm191, %v658, 0
    %v663 = vsel %vm191, %v660, 0
    %665 = vmatprep.subr.mxu0 0.0
    %666 = vmatpush1.xpose.msra.mxu0 %v663
    %667 = vmatprep.subr.mxu0 0.0
    %668 = vmatpush1.xpose.msra.mxu0 0.0
    %669 = vmatprep.subr.mxu0 0.0
    %670 = vmatpush1.xpose.msra.mxu0 0.0
    %671 = vmatprep.subr.mxu0 0.0
    %672 = vmatpush1.xpose.msra.mxu0 0.0
    %673 = vmatprep.subr.mxu0 0.0
    %674 = vmatpush1.xpose.msra.mxu0 0.0
    %675 = vmatprep.subr.mxu0 0.0
    %676 = vmatpush1.xpose.msra.mxu0 0.0
    %677 = vmatprep.subr.mxu0 0.0
    %678 = vmatpush1.xpose.msra.mxu0 0.0
    %679 = vmatprep.subr.mxu0 0.0
    %680 = vmatpush1.xpose.msra.mxu0 0.0
    %681 = vmatprep.subr.mxu0 0.0
    %682 = vmatpush1.xpose.msra.mxu0 0.0
    %683 = vmatprep.subr.mxu0 0.0
    %684 = vmatpush1.xpose.msra.mxu0 0.0
    %685 = vmatprep.subr.mxu0 0.0
    %686 = vmatpush1.xpose.msra.mxu0 0.0
    %687 = vmatprep.subr.mxu0 0.0
    %688 = vmatpush1.xpose.msra.mxu0 0.0
    %689 = vmatprep.subr.mxu0 0.0
    %690 = vmatpush1.xpose.msra.mxu0 0.0
    %691 = vmatprep.subr.mxu0 0.0
    %692 = vmatpush1.xpose.msra.mxu0 0.0
    %693 = vmatprep.subr.mxu0 0.0
    %694 = vmatpush1.xpose.msra.mxu0 0.0
    %695 = vmatprep.subr.mxu0 0.0
    %696 = vmatpush1.xpose.msra.mxu0 0.0
    %697 = vmatprep.subr.mxu0 0.0
    %698 = vmatpush1.xpose.msra.mxu0 0.0
    %699 = vmatprep.subr.mxu0 0.0
    %700 = vmatpush1.xpose.msra.mxu0 0.0
    %701 = vmatprep.subr.mxu0 0.0
    %702 = vmatpush1.xpose.msra.mxu0 0.0
    %703 = vmatprep.subr.mxu0 0.0
    %704 = vmatpush1.xpose.msra.mxu0 0.0
    %705 = vmatprep.subr.mxu0 0.0
    %706 = vmatpush1.xpose.msra.mxu0 0.0
    %707 = vmatprep.subr.mxu0 0.0
    %708 = vmatpush1.xpose.msra.mxu0 0.0
    %709 = vmatprep.subr.mxu0 0.0
    %710 = vmatpush1.xpose.msra.mxu0 0.0
    %711 = vmatprep.subr.mxu0 0.0
    %712 = vmatpush1.xpose.msra.mxu0 0.0
    %713 = vmatprep.subr.mxu0 0.0
    %714 = vmatpush1.xpose.msra.mxu0 0.0
    %715 = vmatprep.subr.mxu0 0.0
    %716 = vmatpush1.xpose.msra.mxu0 0.0
    %717 = vmatprep.subr.mxu0 0.0
    %718 = vmatpush1.xpose.msra.mxu0 0.0
    %719 = vmatprep.subr.mxu0 0.0
    %720 = vmatpush1.xpose.msra.mxu0 0.0
    %721 = vmatprep.subr.mxu0 0.0
    %722 = vmatpush1.xpose.msra.mxu0 0.0
    %723 = vmatprep.subr.mxu0 0.0
    %724 = vmatpush1.xpose.msra.mxu0 0.0
    %725 = vmatprep.subr.mxu0 0.0
    %726 = vmatpush1.xpose.msra.mxu0 0.0
    %727 = vmatprep.subr.mxu0 0.0
    %728 = vmatpush1.xpose.msra.mxu0 0.0
    %729 = vmatprep.mubr.f32.mxu0 0.0
    %730 = vmatmul.mubr.f32.gmra.mrb[0].mxu0 %v661
    %v731 = vpop.f32.mrb[0].mxu0
    %v732 = vadd.f32 0.0, %v731
    %v733 = vpop.f32.mrb[0].mxu0
    %734 = vdwg.mxu0
    %735 = vrot.lane.b32.xlu0 %v174, 104
    %v736 = vpop.permute.xlu0 %735
    %737 = vrot.lane.b32.xlu0 %v170, 72
    %v738 = vpop.permute.xlu0 %737
    %v739 = vsel %vm191, %v736, 0
    %v741 = vsel %vm191, %v738, 0
    %743 = vmatprep.subr.mxu0 0.0
    %744 = vmatpush1.xpose.msra.mxu0 %v741
    %745 = vmatprep.subr.mxu0 0.0
    %746 = vmatpush1.xpose.msra.mxu0 0.0
    %747 = vmatprep.subr.mxu0 0.0
    %748 = vmatpush1.xpose.msra.mxu0 0.0
    %749 = vmatprep.subr.mxu0 0.0
    %750 = vmatpush1.xpose.msra.mxu0 0.0
    %751 = vmatprep.subr.mxu0 0.0
    %752 = vmatpush1.xpose.msra.mxu0 0.0
    %753 = vmatprep.subr.mxu0 0.0
    %754 = vmatpush1.xpose.msra.mxu0 0.0
    %755 = vmatprep.subr.mxu0 0.0
    %756 = vmatpush1.xpose.msra.mxu0 0.0
    %757 = vmatprep.subr.mxu0 0.0
    %758 = vmatpush1.xpose.msra.mxu0 0.0
    %759 = vmatprep.subr.mxu0 0.0
    %760 = vmatpush1.xpose.msra.mxu0 0.0
    %761 = vmatprep.subr.mxu0 0.0
    %762 = vmatpush1.xpose.msra.mxu0 0.0
    %763 = vmatprep.subr.mxu0 0.0
    %764 = vmatpush1.xpose.msra.mxu0 0.0
    %765 = vmatprep.subr.mxu0 0.0
    %766 = vmatpush1.xpose.msra.mxu0 0.0
    %767 = vmatprep.subr.mxu0 0.0
    %768 = vmatpush1.xpose.msra.mxu0 0.0
    %769 = vmatprep.subr.mxu0 0.0
    %770 = vmatpush1.xpose.msra.mxu0 0.0
    %771 = vmatprep.subr.mxu0 0.0
    %772 = vmatpush1.xpose.msra.mxu0 0.0
    %773 = vmatprep.subr.mxu0 0.0
    %774 = vmatpush1.xpose.msra.mxu0 0.0
    %775 = vmatprep.subr.mxu0 0.0
    %776 = vmatpush1.xpose.msra.mxu0 0.0
    %777 = vmatprep.subr.mxu0 0.0
    %778 = vmatpush1.xpose.msra.mxu0 0.0
    %779 = vmatprep.subr.mxu0 0.0
    %780 = vmatpush1.xpose.msra.mxu0 0.0
    %781 = vmatprep.subr.mxu0 0.0
    %782 = vmatpush1.xpose.msra.mxu0 0.0
    %783 = vmatprep.subr.mxu0 0.0
    %784 = vmatpush1.xpose.msra.mxu0 0.0
    %785 = vmatprep.subr.mxu0 0.0
    %786 = vmatpush1.xpose.msra.mxu0 0.0
    %787 = vmatprep.subr.mxu0 0.0
    %788 = vmatpush1.xpose.msra.mxu0 0.0
    %789 = vmatprep.subr.mxu0 0.0
    %790 = vmatpush1.xpose.msra.mxu0 0.0
    %791 = vmatprep.subr.mxu0 0.0
    %792 = vmatpush1.xpose.msra.mxu0 0.0
    %793 = vmatprep.subr.mxu0 0.0
    %794 = vmatpush1.xpose.msra.mxu0 0.0
    %795 = vmatprep.subr.mxu0 0.0
    %796 = vmatpush1.xpose.msra.mxu0 0.0
    %797 = vmatprep.subr.mxu0 0.0
    %798 = vmatpush1.xpose.msra.mxu0 0.0
    %799 = vmatprep.subr.mxu0 0.0
    %800 = vmatpush1.xpose.msra.mxu0 0.0
    %801 = vmatprep.subr.mxu0 0.0
    %802 = vmatpush1.xpose.msra.mxu0 0.0
    %803 = vmatprep.subr.mxu0 0.0
    %804 = vmatpush1.xpose.msra.mxu0 0.0
    %805 = vmatprep.subr.mxu0 0.0
    %806 = vmatpush1.xpose.msra.mxu0 0.0
    %807 = vmatprep.mubr.f32.mxu0 0.0
    %808 = vmatmul.mubr.f32.gmra.mrb[0].mxu0 %v739
    %v809 = vpop.f32.mrb[0].mxu0
    %v810 = vadd.f32 0.0, %v809
    %v811 = vpop.f32.mrb[0].mxu0
    %812 = vdwg.mxu0
    %v813 = vadd.f32 %v264, %v180
    %v814 = vadd.f32 %v342, %v181
    %v815 = vadd.f32 %v420, %v182
    %v816 = vadd.f32 %v498, %v183
    %v817 = vadd.f32 %v576, %v184
    %v818 = vadd.f32 %v654, %v185
    %v819 = vadd.f32 %v732, %v186
    %v820 = vadd.f32 %v810, %v187
    %v821 = vsel %vm191, %v813, -inf
    %822 = vmax.xlane.f32.xlu0 %v821
    %v823 = vpop.xlane.xlu0 %822
    %v824 = vsel %vm191, %v814, -inf
    %825 = vmax.xlane.f32.xlu0 %v824
    %v826 = vpop.xlane.xlu0 %825
    %v827 = vsel %vm191, %v815, -inf
    %828 = vmax.xlane.f32.xlu0 %v827
    %v829 = vpop.xlane.xlu0 %828
    %v830 = vsel %vm191, %v816, -inf
    %831 = vmax.xlane.f32.xlu0 %v830
    %v832 = vpop.xlane.xlu0 %831
    %v833 = vsel %vm191, %v817, -inf
    %834 = vmax.xlane.f32.xlu0 %v833
    %v835 = vpop.xlane.xlu0 %834
    %v836 = vsel %vm191, %v818, -inf
    %837 = vmax.xlane.f32.xlu0 %v836
    %v838 = vpop.xlane.xlu0 %837
    %v839 = vsel %vm191, %v819, -inf
    %840 = vmax.xlane.f32.xlu0 %v839
    %v841 = vpop.xlane.xlu0 %840
    %v842 = vsel %vm191, %v820, -inf
    %843 = vmax.xlane.f32.xlu0 %v842
    %v844 = vpop.xlane.xlu0 %843
    %v845 = vsub.f32 %v813, %v823
    %v846 = vsub.f32 %v814, %v826
    %v847 = vsub.f32 %v815, %v829
    %v848 = vsub.f32 %v816, %v832
    %v849 = vsub.f32 %v817, %v835
    %v850 = vsub.f32 %v818, %v838
    %v851 = vsub.f32 %v819, %v841
    %v852 = vsub.f32 %v820, %v844
    %v853 = vmul.f32 %v845, 1.442695
    %v854 = vpow.pop %v853
    %v855 = vmul.f32 %v846, 1.442695
    %v856 = vpow.pop %v855
    %v857 = vmul.f32 %v847, 1.442695
    %v858 = vpow.pop %v857
    %v859 = vmul.f32 %v848, 1.442695
    %v860 = vpow.pop %v859
    %v861 = vmul.f32 %v849, 1.442695
    %v862 = vpow.pop %v861
    %v863 = vmul.f32 %v850, 1.442695
    %v864 = vpow.pop %v863
    %v865 = vmul.f32 %v851, 1.442695
    %v866 = vpow.pop %v865
    %v867 = vmul.f32 %v852, 1.442695
    %v868 = vpow.pop %v867
    %v869 = vsel %vm191, %v854, 0.0
    %870 = vadd.xlane.f32.xlu0 %v869
    %v871 = vpop.xlane.xlu0 %870
    %v872 = vsel %vm191, %v856, 0.0
    %873 = vadd.xlane.f32.xlu0 %v872
    %v874 = vpop.xlane.xlu0 %873
    %v875 = vsel %vm191, %v858, 0.0
    %876 = vadd.xlane.f32.xlu0 %v875
    %v877 = vpop.xlane.xlu0 %876
    %v878 = vsel %vm191, %v860, 0.0
    %879 = vadd.xlane.f32.xlu0 %v878
    %v880 = vpop.xlane.xlu0 %879
    %v881 = vsel %vm191, %v862, 0.0
    %882 = vadd.xlane.f32.xlu0 %v881
    %v883 = vpop.xlane.xlu0 %882
    %v884 = vsel %vm191, %v864, 0.0
    %885 = vadd.xlane.f32.xlu0 %v884
    %v886 = vpop.xlane.xlu0 %885
    %v887 = vsel %vm191, %v866, 0.0
    %888 = vadd.xlane.f32.xlu0 %v887
    %v889 = vpop.xlane.xlu0 %888
    %v890 = vsel %vm191, %v868, 0.0
    %891 = vadd.xlane.f32.xlu0 %v890
    %v892 = vpop.xlane.xlu0 %891
    %v893 = vrcp.pop %v871
    %v894 = vrcp.pop %v874
    %v895 = vrcp.pop %v877
    %v896 = vrcp.pop %v880
    %v897 = vrcp.pop %v883
    %v898 = vrcp.pop %v886
    %v899 = vrcp.pop %v889
    %v900 = vrcp.pop %v892
    %v901 = vmul.f32 %v854, %v893
    %v902 = vmul.f32 %v856, %v894
    %v903 = vmul.f32 %v858, %v895
    %v904 = vmul.f32 %v860, %v896
    %v905 = vmul.f32 %v862, %v897
    %v906 = vmul.f32 %v864, %v898
    %v907 = vmul.f32 %v866, %v899
    %v908 = vmul.f32 %v868, %v900
    %909 = vrot.lane.b32.xlu0 %v165, 64
    %v910 = vpop.permute.xlu0 %909
    %v913 = vsel %vm191, %v901, 0
    %915 = vmatprep.subr.mxu0 0.0
    %916 = vmatpush1.msra.mxu0 %v910
    %917 = vmatprep.subr.mxu0 0.0
    %918 = vmatpush1.msra.mxu0 0.0
    %919 = vmatprep.subr.mxu0 0.0
    %920 = vmatpush1.msra.mxu0 0.0
    %921 = vmatprep.subr.mxu0 0.0
    %922 = vmatpush1.msra.mxu0 0.0
    %923 = vmatprep.subr.mxu0 0.0
    %924 = vmatpush1.msra.mxu0 0.0
    %925 = vmatprep.subr.mxu0 0.0
    %926 = vmatpush1.msra.mxu0 0.0
    %927 = vmatprep.subr.mxu0 0.0
    %928 = vmatpush1.msra.mxu0 0.0
    %929 = vmatprep.subr.mxu0 0.0
    %930 = vmatpush1.msra.mxu0 0.0
    %931 = vmatprep.subr.mxu0 0.0
    %932 = vmatpush1.msra.mxu0 0.0
    %933 = vmatprep.subr.mxu0 0.0
    %934 = vmatpush1.msra.mxu0 0.0
    %935 = vmatprep.subr.mxu0 0.0
    %936 = vmatpush1.msra.mxu0 0.0
    %937 = vmatprep.subr.mxu0 0.0
    %938 = vmatpush1.msra.mxu0 0.0
    %939 = vmatprep.subr.mxu0 0.0
    %940 = vmatpush1.msra.mxu0 0.0
    %941 = vmatprep.subr.mxu0 0.0
    %942 = vmatpush1.msra.mxu0 0.0
    %943 = vmatprep.subr.mxu0 0.0
    %944 = vmatpush1.msra.mxu0 0.0
    %945 = vmatprep.subr.mxu0 0.0
    %946 = vmatpush1.msra.mxu0 0.0
    %947 = vmatprep.subr.mxu0 0.0
    %948 = vmatpush1.msra.mxu0 0.0
    %949 = vmatprep.subr.mxu0 0.0
    %950 = vmatpush1.msra.mxu0 0.0
    %951 = vmatprep.subr.mxu0 0.0
    %952 = vmatpush1.msra.mxu0 0.0
    %953 = vmatprep.subr.mxu0 0.0
    %954 = vmatpush1.msra.mxu0 0.0
    %955 = vmatprep.subr.mxu0 0.0
    %956 = vmatpush1.msra.mxu0 0.0
    %957 = vmatprep.subr.mxu0 0.0
    %958 = vmatpush1.msra.mxu0 0.0
    %959 = vmatprep.subr.mxu0 0.0
    %960 = vmatpush1.msra.mxu0 0.0
    %961 = vmatprep.subr.mxu0 0.0
    %962 = vmatpush1.msra.mxu0 0.0
    %963 = vmatprep.subr.mxu0 0.0
    %964 = vmatpush1.msra.mxu0 0.0
    %965 = vmatprep.subr.mxu0 0.0
    %966 = vmatpush1.msra.mxu0 0.0
    %967 = vmatprep.subr.mxu0 0.0
    %968 = vmatpush1.msra.mxu0 0.0
    %969 = vmatprep.subr.mxu0 0.0
    %970 = vmatpush1.msra.mxu0 0.0
    %971 = vmatprep.subr.mxu0 0.0
    %972 = vmatpush1.msra.mxu0 0.0
    %973 = vmatprep.subr.mxu0 0.0
    %974 = vmatpush1.msra.mxu0 0.0
    %975 = vmatprep.subr.mxu0 0.0
    %976 = vmatpush1.msra.mxu0 0.0
    %977 = vmatprep.subr.mxu0 0.0
    %978 = vmatpush1.msra.mxu0 0.0
    %979 = vmatprep.mubr.f32.mxu0 0.0
    %980 = vmatmul.mubr.f32.gmra.mrb[0].mxu0 %v913
    %v981 = vpop.f32.mrb[0].mxu0
    %v982 = vadd.f32 0.0, %v981
    %v983 = vpop.f32.mrb[0].mxu0
    %984 = vdwg.mxu0
    %985 = vrot.lane.b32.xlu0 %v165, 56
    %v986 = vpop.permute.xlu0 %985
    %v989 = vsel %vm191, %v902, 0
    %991 = vmatprep.subr.mxu0 0.0
    %992 = vmatpush1.msra.mxu0 %v986
    %993 = vmatprep.subr.mxu0 0.0
    %994 = vmatpush1.msra.mxu0 0.0
    %995 = vmatprep.subr.mxu0 0.0
    %996 = vmatpush1.msra.mxu0 0.0
    %997 = vmatprep.subr.mxu0 0.0
    %998 = vmatpush1.msra.mxu0 0.0
    %999 = vmatprep.subr.mxu0 0.0
    %1000 = vmatpush1.msra.mxu0 0.0
    %1001 = vmatprep.subr.mxu0 0.0
    %1002 = vmatpush1.msra.mxu0 0.0
    %1003 = vmatprep.subr.mxu0 0.0
    %1004 = vmatpush1.msra.mxu0 0.0
    %1005 = vmatprep.subr.mxu0 0.0
    %1006 = vmatpush1.msra.mxu0 0.0
    %1007 = vmatprep.subr.mxu0 0.0
    %1008 = vmatpush1.msra.mxu0 0.0
    %1009 = vmatprep.subr.mxu0 0.0
    %1010 = vmatpush1.msra.mxu0 0.0
    %1011 = vmatprep.subr.mxu0 0.0
    %1012 = vmatpush1.msra.mxu0 0.0
    %1013 = vmatprep.subr.mxu0 0.0
    %1014 = vmatpush1.msra.mxu0 0.0
    %1015 = vmatprep.subr.mxu0 0.0
    %1016 = vmatpush1.msra.mxu0 0.0
    %1017 = vmatprep.subr.mxu0 0.0
    %1018 = vmatpush1.msra.mxu0 0.0
    %1019 = vmatprep.subr.mxu0 0.0
    %1020 = vmatpush1.msra.mxu0 0.0
    %1021 = vmatprep.subr.mxu0 0.0
    %1022 = vmatpush1.msra.mxu0 0.0
    %1023 = vmatprep.subr.mxu0 0.0
    %1024 = vmatpush1.msra.mxu0 0.0
    %1025 = vmatprep.subr.mxu0 0.0
    %1026 = vmatpush1.msra.mxu0 0.0
    %1027 = vmatprep.subr.mxu0 0.0
    %1028 = vmatpush1.msra.mxu0 0.0
    %1029 = vmatprep.subr.mxu0 0.0
    %1030 = vmatpush1.msra.mxu0 0.0
    %1031 = vmatprep.subr.mxu0 0.0
    %1032 = vmatpush1.msra.mxu0 0.0
    %1033 = vmatprep.subr.mxu0 0.0
    %1034 = vmatpush1.msra.mxu0 0.0
    %1035 = vmatprep.subr.mxu0 0.0
    %1036 = vmatpush1.msra.mxu0 0.0
    %1037 = vmatprep.subr.mxu0 0.0
    %1038 = vmatpush1.msra.mxu0 0.0
    %1039 = vmatprep.subr.mxu0 0.0
    %1040 = vmatpush1.msra.mxu0 0.0
    %1041 = vmatprep.subr.mxu0 0.0
    %1042 = vmatpush1.msra.mxu0 0.0
    %1043 = vmatprep.subr.mxu0 0.0
    %1044 = vmatpush1.msra.mxu0 0.0
    %1045 = vmatprep.subr.mxu0 0.0
    %1046 = vmatpush1.msra.mxu0 0.0
    %1047 = vmatprep.subr.mxu0 0.0
    %1048 = vmatpush1.msra.mxu0 0.0
    %1049 = vmatprep.subr.mxu0 0.0
    %1050 = vmatpush1.msra.mxu0 0.0
    %1051 = vmatprep.subr.mxu0 0.0
    %1052 = vmatpush1.msra.mxu0 0.0
    %1053 = vmatprep.subr.mxu0 0.0
    %1054 = vmatpush1.msra.mxu0 0.0
    %1055 = vmatprep.mubr.f32.mxu0 0.0
    %1056 = vmatmul.mubr.f32.gmra.mrb[0].mxu0 %v989
    %v1057 = vpop.f32.mrb[0].mxu0
    %v1058 = vadd.f32 0.0, %v1057
    %v1059 = vpop.f32.mrb[0].mxu0
    %1060 = vdwg.mxu0
    %v1062 = vsel %vm191, %v1058, 0
    %1064 = vmatprep.subr.mxu0 0.0
    %1065 = vmatpush1.msra.mxu0 %v176
    %1066 = vmatprep.subr.mxu0 0.0
    %1067 = vmatpush1.msra.mxu0 0.0
    %1068 = vmatprep.subr.mxu0 0.0
    %1069 = vmatpush1.msra.mxu0 0.0
    %1070 = vmatprep.subr.mxu0 0.0
    %1071 = vmatpush1.msra.mxu0 0.0
    %1072 = vmatprep.subr.mxu0 0.0
    %1073 = vmatpush1.msra.mxu0 0.0
    %1074 = vmatprep.subr.mxu0 0.0
    %1075 = vmatpush1.msra.mxu0 0.0
    %1076 = vmatprep.subr.mxu0 0.0
    %1077 = vmatpush1.msra.mxu0 0.0
    %1078 = vmatprep.subr.mxu0 0.0
    %1079 = vmatpush1.msra.mxu0 0.0
    %1080 = vmatprep.subr.mxu0 0.0
    %1081 = vmatpush1.msra.mxu0 0.0
    %1082 = vmatprep.subr.mxu0 0.0
    %1083 = vmatpush1.msra.mxu0 0.0
    %1084 = vmatprep.subr.mxu0 0.0
    %1085 = vmatpush1.msra.mxu0 0.0
    %1086 = vmatprep.subr.mxu0 0.0
    %1087 = vmatpush1.msra.mxu0 0.0
    %1088 = vmatprep.subr.mxu0 0.0
    %1089 = vmatpush1.msra.mxu0 0.0
    %1090 = vmatprep.subr.mxu0 0.0
    %1091 = vmatpush1.msra.mxu0 0.0
    %1092 = vmatprep.subr.mxu0 0.0
    %1093 = vmatpush1.msra.mxu0 0.0
    %1094 = vmatprep.subr.mxu0 0.0
    %1095 = vmatpush1.msra.mxu0 0.0
    %1096 = vmatprep.subr.mxu0 0.0
    %1097 = vmatpush1.msra.mxu0 0.0
    %1098 = vmatprep.subr.mxu0 0.0
    %1099 = vmatpush1.msra.mxu0 0.0
    %1100 = vmatprep.subr.mxu0 0.0
    %1101 = vmatpush1.msra.mxu0 0.0
    %1102 = vmatprep.subr.mxu0 0.0
    %1103 = vmatpush1.msra.mxu0 0.0
    %1104 = vmatprep.subr.mxu0 0.0
    %1105 = vmatpush1.msra.mxu0 0.0
    %1106 = vmatprep.subr.mxu0 0.0
    %1107 = vmatpush1.msra.mxu0 0.0
    %1108 = vmatprep.subr.mxu0 0.0
    %1109 = vmatpush1.msra.mxu0 0.0
    %1110 = vmatprep.subr.mxu0 0.0
    %1111 = vmatpush1.msra.mxu0 0.0
    %1112 = vmatprep.subr.mxu0 0.0
    %1113 = vmatpush1.msra.mxu0 0.0
    %1114 = vmatprep.subr.mxu0 0.0
    %1115 = vmatpush1.msra.mxu0 0.0
    %1116 = vmatprep.subr.mxu0 0.0
    %1117 = vmatpush1.msra.mxu0 0.0
    %1118 = vmatprep.subr.mxu0 0.0
    %1119 = vmatpush1.msra.mxu0 0.0
    %1120 = vmatprep.subr.mxu0 0.0
    %1121 = vmatpush1.msra.mxu0 0.0
    %1122 = vmatprep.subr.mxu0 0.0
    %1123 = vmatpush1.msra.mxu0 0.0
    %1124 = vmatprep.subr.mxu0 0.0
    %1125 = vmatpush1.msra.mxu0 0.0
    %1126 = vmatprep.subr.mxu0 0.0
    %1127 = vmatpush1.msra.mxu0 0.0
    %1128 = vmatprep.mubr.f32.mxu0 0.0
    %1129 = vmatmul.mubr.f32.gmra.mrb[0].mxu0 %v1062
    %v1130 = vpop.f32.mrb[0].mxu0
    %v1131 = vadd.f32 0.0, %v1130
    %v1132 = vpop.f32.mrb[0].mxu0
    %1133 = vdwg.mxu0
    %v1135 = vsel %vm191, %v982, 0
    %1137 = vmatprep.subr.mxu0 0.0
    %1138 = vmatpush1.msra.mxu0 %v175
    %1139 = vmatprep.subr.mxu0 0.0
    %1140 = vmatpush1.msra.mxu0 0.0
    %1141 = vmatprep.subr.mxu0 0.0
    %1142 = vmatpush1.msra.mxu0 0.0
    %1143 = vmatprep.subr.mxu0 0.0
    %1144 = vmatpush1.msra.mxu0 0.0
    %1145 = vmatprep.subr.mxu0 0.0
    %1146 = vmatpush1.msra.mxu0 0.0
    %1147 = vmatprep.subr.mxu0 0.0
    %1148 = vmatpush1.msra.mxu0 0.0
    %1149 = vmatprep.subr.mxu0 0.0
    %1150 = vmatpush1.msra.mxu0 0.0
    %1151 = vmatprep.subr.mxu0 0.0
    %1152 = vmatpush1.msra.mxu0 0.0
    %1153 = vmatprep.subr.mxu0 0.0
    %1154 = vmatpush1.msra.mxu0 0.0
    %1155 = vmatprep.subr.mxu0 0.0
    %1156 = vmatpush1.msra.mxu0 0.0
    %1157 = vmatprep.subr.mxu0 0.0
    %1158 = vmatpush1.msra.mxu0 0.0
    %1159 = vmatprep.subr.mxu0 0.0
    %1160 = vmatpush1.msra.mxu0 0.0
    %1161 = vmatprep.subr.mxu0 0.0
    %1162 = vmatpush1.msra.mxu0 0.0
    %1163 = vmatprep.subr.mxu0 0.0
    %1164 = vmatpush1.msra.mxu0 0.0
    %1165 = vmatprep.subr.mxu0 0.0
    %1166 = vmatpush1.msra.mxu0 0.0
    %1167 = vmatprep.subr.mxu0 0.0
    %1168 = vmatpush1.msra.mxu0 0.0
    %1169 = vmatprep.subr.mxu0 0.0
    %1170 = vmatpush1.msra.mxu0 0.0
    %1171 = vmatprep.subr.mxu0 0.0
    %1172 = vmatpush1.msra.mxu0 0.0
    %1173 = vmatprep.subr.mxu0 0.0
    %1174 = vmatpush1.msra.mxu0 0.0
    %1175 = vmatprep.subr.mxu0 0.0
    %1176 = vmatpush1.msra.mxu0 0.0
    %1177 = vmatprep.subr.mxu0 0.0
    %1178 = vmatpush1.msra.mxu0 0.0
    %1179 = vmatprep.subr.mxu0 0.0
    %1180 = vmatpush1.msra.mxu0 0.0
    %1181 = vmatprep.subr.mxu0 0.0
    %1182 = vmatpush1.msra.mxu0 0.0
    %1183 = vmatprep.subr.mxu0 0.0
    %1184 = vmatpush1.msra.mxu0 0.0
    %1185 = vmatprep.subr.mxu0 0.0
    %1186 = vmatpush1.msra.mxu0 0.0
    %1187 = vmatprep.subr.mxu0 0.0
    %1188 = vmatpush1.msra.mxu0 0.0
    %1189 = vmatprep.subr.mxu0 0.0
    %1190 = vmatpush1.msra.mxu0 0.0
    %1191 = vmatprep.subr.mxu0 0.0
    %1192 = vmatpush1.msra.mxu0 0.0
    %1193 = vmatprep.subr.mxu0 0.0
    %1194 = vmatpush1.msra.mxu0 0.0
    %1195 = vmatprep.subr.mxu0 0.0
    %1196 = vmatpush1.msra.mxu0 0.0
    %1197 = vmatprep.subr.mxu0 0.0
    %1198 = vmatpush1.msra.mxu0 0.0
    %1199 = vmatprep.subr.mxu0 0.0
    %1200 = vmatpush1.msra.mxu0 0.0
    %1201 = vmatprep.mubr.f32.mxu0 0.0
    %1202 = vmatmul.mubr.f32.gmra.mrb[0].mxu0 %v1135
    %v1203 = vpop.f32.mrb[0].mxu0
    %v1204 = vadd.f32 %v1131, %v1203
    %v1205 = vpop.f32.mrb[0].mxu0
    %1206 = vdwg.mxu0
    %1207 = vrot.lane.b32.xlu0 %v165, 48
    %v1208 = vpop.permute.xlu0 %1207
    %v1211 = vsel %vm191, %v903, 0
    %1213 = vmatprep.subr.mxu0 0.0
    %1214 = vmatpush1.msra.mxu0 %v1208
    %1215 = vmatprep.subr.mxu0 0.0
    %1216 = vmatpush1.msra.mxu0 0.0
    %1217 = vmatprep.subr.mxu0 0.0
    %1218 = vmatpush1.msra.mxu0 0.0
    %1219 = vmatprep.subr.mxu0 0.0
    %1220 = vmatpush1.msra.mxu0 0.0
    %1221 = vmatprep.subr.mxu0 0.0
    %1222 = vmatpush1.msra.mxu0 0.0
    %1223 = vmatprep.subr.mxu0 0.0
    %1224 = vmatpush1.msra.mxu0 0.0
    %1225 = vmatprep.subr.mxu0 0.0
    %1226 = vmatpush1.msra.mxu0 0.0
    %1227 = vmatprep.subr.mxu0 0.0
    %1228 = vmatpush1.msra.mxu0 0.0
    %1229 = vmatprep.subr.mxu0 0.0
    %1230 = vmatpush1.msra.mxu0 0.0
    %1231 = vmatprep.subr.mxu0 0.0
    %1232 = vmatpush1.msra.mxu0 0.0
    %1233 = vmatprep.subr.mxu0 0.0
    %1234 = vmatpush1.msra.mxu0 0.0
    %1235 = vmatprep.subr.mxu0 0.0
    %1236 = vmatpush1.msra.mxu0 0.0
    %1237 = vmatprep.subr.mxu0 0.0
    %1238 = vmatpush1.msra.mxu0 0.0
    %1239 = vmatprep.subr.mxu0 0.0
    %1240 = vmatpush1.msra.mxu0 0.0
    %1241 = vmatprep.subr.mxu0 0.0
    %1242 = vmatpush1.msra.mxu0 0.0
    %1243 = vmatprep.subr.mxu0 0.0
    %1244 = vmatpush1.msra.mxu0 0.0
    %1245 = vmatprep.subr.mxu0 0.0
    %1246 = vmatpush1.msra.mxu0 0.0
    %1247 = vmatprep.subr.mxu0 0.0
    %1248 = vmatpush1.msra.mxu0 0.0
    %1249 = vmatprep.subr.mxu0 0.0
    %1250 = vmatpush1.msra.mxu0 0.0
    %1251 = vmatprep.subr.mxu0 0.0
    %1252 = vmatpush1.msra.mxu0 0.0
    %1253 = vmatprep.subr.mxu0 0.0
    %1254 = vmatpush1.msra.mxu0 0.0
    %1255 = vmatprep.subr.mxu0 0.0
    %1256 = vmatpush1.msra.mxu0 0.0
    %1257 = vmatprep.subr.mxu0 0.0
    %1258 = vmatpush1.msra.mxu0 0.0
    %1259 = vmatprep.subr.mxu0 0.0
    %1260 = vmatpush1.msra.mxu0 0.0
    %1261 = vmatprep.subr.mxu0 0.0
    %1262 = vmatpush1.msra.mxu0 0.0
    %1263 = vmatprep.subr.mxu0 0.0
    %1264 = vmatpush1.msra.mxu0 0.0
    %1265 = vmatprep.subr.mxu0 0.0
    %1266 = vmatpush1.msra.mxu0 0.0
    %1267 = vmatprep.subr.mxu0 0.0
    %1268 = vmatpush1.msra.mxu0 0.0
    %1269 = vmatprep.subr.mxu0 0.0
    %1270 = vmatpush1.msra.mxu0 0.0
    %1271 = vmatprep.subr.mxu0 0.0
    %1272 = vmatpush1.msra.mxu0 0.0
    %1273 = vmatprep.subr.mxu0 0.0
    %1274 = vmatpush1.msra.mxu0 0.0
    %1275 = vmatprep.subr.mxu0 0.0
    %1276 = vmatpush1.msra.mxu0 0.0
    %1277 = vmatprep.mubr.f32.mxu0 0.0
    %1278 = vmatmul.mubr.f32.gmra.mrb[0].mxu0 %v1211
    %v1279 = vpop.f32.mrb[0].mxu0
    %v1280 = vadd.f32 0.0, %v1279
    %v1281 = vpop.f32.mrb[0].mxu0
    %1282 = vdwg.mxu0
    %v1284 = vsel %vm191, %v1280, 0
    %1286 = vmatprep.subr.mxu0 0.0
    %1287 = vmatpush1.msra.mxu0 %v177
    %1288 = vmatprep.subr.mxu0 0.0
    %1289 = vmatpush1.msra.mxu0 0.0
    %1290 = vmatprep.subr.mxu0 0.0
    %1291 = vmatpush1.msra.mxu0 0.0
    %1292 = vmatprep.subr.mxu0 0.0
    %1293 = vmatpush1.msra.mxu0 0.0
    %1294 = vmatprep.subr.mxu0 0.0
    %1295 = vmatpush1.msra.mxu0 0.0
    %1296 = vmatprep.subr.mxu0 0.0
    %1297 = vmatpush1.msra.mxu0 0.0
    %1298 = vmatprep.subr.mxu0 0.0
    %1299 = vmatpush1.msra.mxu0 0.0
    %1300 = vmatprep.subr.mxu0 0.0
    %1301 = vmatpush1.msra.mxu0 0.0
    %1302 = vmatprep.subr.mxu0 0.0
    %1303 = vmatpush1.msra.mxu0 0.0
    %1304 = vmatprep.subr.mxu0 0.0
    %1305 = vmatpush1.msra.mxu0 0.0
    %1306 = vmatprep.subr.mxu0 0.0
    %1307 = vmatpush1.msra.mxu0 0.0
    %1308 = vmatprep.subr.mxu0 0.0
    %1309 = vmatpush1.msra.mxu0 0.0
    %1310 = vmatprep.subr.mxu0 0.0
    %1311 = vmatpush1.msra.mxu0 0.0
    %1312 = vmatprep.subr.mxu0 0.0
    %1313 = vmatpush1.msra.mxu0 0.0
    %1314 = vmatprep.subr.mxu0 0.0
    %1315 = vmatpush1.msra.mxu0 0.0
    %1316 = vmatprep.subr.mxu0 0.0
    %1317 = vmatpush1.msra.mxu0 0.0
    %1318 = vmatprep.subr.mxu0 0.0
    %1319 = vmatpush1.msra.mxu0 0.0
    %1320 = vmatprep.subr.mxu0 0.0
    %1321 = vmatpush1.msra.mxu0 0.0
    %1322 = vmatprep.subr.mxu0 0.0
    %1323 = vmatpush1.msra.mxu0 0.0
    %1324 = vmatprep.subr.mxu0 0.0
    %1325 = vmatpush1.msra.mxu0 0.0
    %1326 = vmatprep.subr.mxu0 0.0
    %1327 = vmatpush1.msra.mxu0 0.0
    %1328 = vmatprep.subr.mxu0 0.0
    %1329 = vmatpush1.msra.mxu0 0.0
    %1330 = vmatprep.subr.mxu0 0.0
    %1331 = vmatpush1.msra.mxu0 0.0
    %1332 = vmatprep.subr.mxu0 0.0
    %1333 = vmatpush1.msra.mxu0 0.0
    %1334 = vmatprep.subr.mxu0 0.0
    %1335 = vmatpush1.msra.mxu0 0.0
    %1336 = vmatprep.subr.mxu0 0.0
    %1337 = vmatpush1.msra.mxu0 0.0
    %1338 = vmatprep.subr.mxu0 0.0
    %1339 = vmatpush1.msra.mxu0 0.0
    %1340 = vmatprep.subr.mxu0 0.0
    %1341 = vmatpush1.msra.mxu0 0.0
    %1342 = vmatprep.subr.mxu0 0.0
    %1343 = vmatpush1.msra.mxu0 0.0
    %1344 = vmatprep.subr.mxu0 0.0
    %1345 = vmatpush1.msra.mxu0 0.0
    %1346 = vmatprep.subr.mxu0 0.0
    %1347 = vmatpush1.msra.mxu0 0.0
    %1348 = vmatprep.subr.mxu0 0.0
    %1349 = vmatpush1.msra.mxu0 0.0
    %1350 = vmatprep.mubr.f32.mxu0 0.0
    %1351 = vmatmul.mubr.f32.gmra.mrb[0].mxu0 %v1284
    %v1352 = vpop.f32.mrb[0].mxu0
    %v1353 = vadd.f32 0.0, %v1352
    %v1354 = vpop.f32.mrb[0].mxu0
    %1355 = vdwg.mxu0
    %v1356 = vadd.f32 %v1204, %v1353
    %1357 = vrot.lane.b32.xlu0 %v165, 40
    %v1358 = vpop.permute.xlu0 %1357
    %v1361 = vsel %vm191, %v904, 0
    %1363 = vmatprep.subr.mxu0 0.0
    %1364 = vmatpush1.msra.mxu0 %v1358
    %1365 = vmatprep.subr.mxu0 0.0
    %1366 = vmatpush1.msra.mxu0 0.0
    %1367 = vmatprep.subr.mxu0 0.0
    %1368 = vmatpush1.msra.mxu0 0.0
    %1369 = vmatprep.subr.mxu0 0.0
    %1370 = vmatpush1.msra.mxu0 0.0
    %1371 = vmatprep.subr.mxu0 0.0
    %1372 = vmatpush1.msra.mxu0 0.0
    %1373 = vmatprep.subr.mxu0 0.0
    %1374 = vmatpush1.msra.mxu0 0.0
    %1375 = vmatprep.subr.mxu0 0.0
    %1376 = vmatpush1.msra.mxu0 0.0
    %1377 = vmatprep.subr.mxu0 0.0
    %1378 = vmatpush1.msra.mxu0 0.0
    %1379 = vmatprep.subr.mxu0 0.0
    %1380 = vmatpush1.msra.mxu0 0.0
    %1381 = vmatprep.subr.mxu0 0.0
    %1382 = vmatpush1.msra.mxu0 0.0
    %1383 = vmatprep.subr.mxu0 0.0
    %1384 = vmatpush1.msra.mxu0 0.0
    %1385 = vmatprep.subr.mxu0 0.0
    %1386 = vmatpush1.msra.mxu0 0.0
    %1387 = vmatprep.subr.mxu0 0.0
    %1388 = vmatpush1.msra.mxu0 0.0
    %1389 = vmatprep.subr.mxu0 0.0
    %1390 = vmatpush1.msra.mxu0 0.0
    %1391 = vmatprep.subr.mxu0 0.0
    %1392 = vmatpush1.msra.mxu0 0.0
    %1393 = vmatprep.subr.mxu0 0.0
    %1394 = vmatpush1.msra.mxu0 0.0
    %1395 = vmatprep.subr.mxu0 0.0
    %1396 = vmatpush1.msra.mxu0 0.0
    %1397 = vmatprep.subr.mxu0 0.0
    %1398 = vmatpush1.msra.mxu0 0.0
    %1399 = vmatprep.subr.mxu0 0.0
    %1400 = vmatpush1.msra.mxu0 0.0
    %1401 = vmatprep.subr.mxu0 0.0
    %1402 = vmatpush1.msra.mxu0 0.0
    %1403 = vmatprep.subr.mxu0 0.0
    %1404 = vmatpush1.msra.mxu0 0.0
    %1405 = vmatprep.subr.mxu0 0.0
    %1406 = vmatpush1.msra.mxu0 0.0
    %1407 = vmatprep.subr.mxu0 0.0
    %1408 = vmatpush1.msra.mxu0 0.0
    %1409 = vmatprep.subr.mxu0 0.0
    %1410 = vmatpush1.msra.mxu0 0.0
    %1411 = vmatprep.subr.mxu0 0.0
    %1412 = vmatpush1.msra.mxu0 0.0
    %1413 = vmatprep.subr.mxu0 0.0
    %1414 = vmatpush1.msra.mxu0 0.0
    %1415 = vmatprep.subr.mxu0 0.0
    %1416 = vmatpush1.msra.mxu0 0.0
    %1417 = vmatprep.subr.mxu0 0.0
    %1418 = vmatpush1.msra.mxu0 0.0
    %1419 = vmatprep.subr.mxu0 0.0
    %1420 = vmatpush1.msra.mxu0 0.0
    %1421 = vmatprep.subr.mxu0 0.0
    %1422 = vmatpush1.msra.mxu0 0.0
    %1423 = vmatprep.subr.mxu0 0.0
    %1424 = vmatpush1.msra.mxu0 0.0
    %1425 = vmatprep.subr.mxu0 0.0
    %1426 = vmatpush1.msra.mxu0 0.0
    %1427 = vmatprep.mubr.f32.mxu0 0.0
    %1428 = vmatmul.mubr.f32.gmra.mrb[0].mxu0 %v1361
    %v1429 = vpop.f32.mrb[0].mxu0
    %v1430 = vadd.f32 0.0, %v1429
    %v1431 = vpop.f32.mrb[0].mxu0
    %1432 = vdwg.mxu0
    %v1434 = vsel %vm191, %v1430, 0
    %1436 = vmatprep.subr.mxu0 0.0
    %1437 = vmatpush1.msra.mxu0 %v178
    %1438 = vmatprep.subr.mxu0 0.0
    %1439 = vmatpush1.msra.mxu0 0.0
    %1440 = vmatprep.subr.mxu0 0.0
    %1441 = vmatpush1.msra.mxu0 0.0
    %1442 = vmatprep.subr.mxu0 0.0
    %1443 = vmatpush1.msra.mxu0 0.0
    %1444 = vmatprep.subr.mxu0 0.0
    %1445 = vmatpush1.msra.mxu0 0.0
    %1446 = vmatprep.subr.mxu0 0.0
    %1447 = vmatpush1.msra.mxu0 0.0
    %1448 = vmatprep.subr.mxu0 0.0
    %1449 = vmatpush1.msra.mxu0 0.0
    %1450 = vmatprep.subr.mxu0 0.0
    %1451 = vmatpush1.msra.mxu0 0.0
    %1452 = vmatprep.subr.mxu0 0.0
    %1453 = vmatpush1.msra.mxu0 0.0
    %1454 = vmatprep.subr.mxu0 0.0
    %1455 = vmatpush1.msra.mxu0 0.0
    %1456 = vmatprep.subr.mxu0 0.0
    %1457 = vmatpush1.msra.mxu0 0.0
    %1458 = vmatprep.subr.mxu0 0.0
    %1459 = vmatpush1.msra.mxu0 0.0
    %1460 = vmatprep.subr.mxu0 0.0
    %1461 = vmatpush1.msra.mxu0 0.0
    %1462 = vmatprep.subr.mxu0 0.0
    %1463 = vmatpush1.msra.mxu0 0.0
    %1464 = vmatprep.subr.mxu0 0.0
    %1465 = vmatpush1.msra.mxu0 0.0
    %1466 = vmatprep.subr.mxu0 0.0
    %1467 = vmatpush1.msra.mxu0 0.0
    %1468 = vmatprep.subr.mxu0 0.0
    %1469 = vmatpush1.msra.mxu0 0.0
    %1470 = vmatprep.subr.mxu0 0.0
    %1471 = vmatpush1.msra.mxu0 0.0
    %1472 = vmatprep.subr.mxu0 0.0
    %1473 = vmatpush1.msra.mxu0 0.0
    %1474 = vmatprep.subr.mxu0 0.0
    %1475 = vmatpush1.msra.mxu0 0.0
    %1476 = vmatprep.subr.mxu0 0.0
    %1477 = vmatpush1.msra.mxu0 0.0
    %1478 = vmatprep.subr.mxu0 0.0
    %1479 = vmatpush1.msra.mxu0 0.0
    %1480 = vmatprep.subr.mxu0 0.0
    %1481 = vmatpush1.msra.mxu0 0.0
    %1482 = vmatprep.subr.mxu0 0.0
    %1483 = vmatpush1.msra.mxu0 0.0
    %1484 = vmatprep.subr.mxu0 0.0
    %1485 = vmatpush1.msra.mxu0 0.0
    %1486 = vmatprep.subr.mxu0 0.0
    %1487 = vmatpush1.msra.mxu0 0.0
    %1488 = vmatprep.subr.mxu0 0.0
    %1489 = vmatpush1.msra.mxu0 0.0
    %1490 = vmatprep.subr.mxu0 0.0
    %1491 = vmatpush1.msra.mxu0 0.0
    %1492 = vmatprep.subr.mxu0 0.0
    %1493 = vmatpush1.msra.mxu0 0.0
    %1494 = vmatprep.subr.mxu0 0.0
    %1495 = vmatpush1.msra.mxu0 0.0
    %1496 = vmatprep.subr.mxu0 0.0
    %1497 = vmatpush1.msra.mxu0 0.0
    %1498 = vmatprep.subr.mxu0 0.0
    %1499 = vmatpush1.msra.mxu0 0.0
    %1500 = vmatprep.mubr.f32.mxu0 0.0
    %1501 = vmatmul.mubr.f32.gmra.mrb[0].mxu0 %v1434
    %v1502 = vpop.f32.mrb[0].mxu0
    %v1503 = vadd.f32 0.0, %v1502
    %v1504 = vpop.f32.mrb[0].mxu0
    %1505 = vdwg.mxu0
    %v1506 = vadd.f32 %v1356, %v1503
    %1507 = vrot.lane.b32.xlu0 %v170, 64
    %v1508 = vpop.permute.xlu0 %1507
    %v1511 = vsel %vm191, %v905, 0
    %1513 = vmatprep.subr.mxu0 0.0
    %1514 = vmatpush1.msra.mxu0 %v1508
    %1515 = vmatprep.subr.mxu0 0.0
    %1516 = vmatpush1.msra.mxu0 0.0
    %1517 = vmatprep.subr.mxu0 0.0
    %1518 = vmatpush1.msra.mxu0 0.0
    %1519 = vmatprep.subr.mxu0 0.0
    %1520 = vmatpush1.msra.mxu0 0.0
    %1521 = vmatprep.subr.mxu0 0.0
    %1522 = vmatpush1.msra.mxu0 0.0
    %1523 = vmatprep.subr.mxu0 0.0
    %1524 = vmatpush1.msra.mxu0 0.0
    %1525 = vmatprep.subr.mxu0 0.0
    %1526 = vmatpush1.msra.mxu0 0.0
    %1527 = vmatprep.subr.mxu0 0.0
    %1528 = vmatpush1.msra.mxu0 0.0
    %1529 = vmatprep.subr.mxu0 0.0
    %1530 = vmatpush1.msra.mxu0 0.0
    %1531 = vmatprep.subr.mxu0 0.0
    %1532 = vmatpush1.msra.mxu0 0.0
    %1533 = vmatprep.subr.mxu0 0.0
    %1534 = vmatpush1.msra.mxu0 0.0
    %1535 = vmatprep.subr.mxu0 0.0
    %1536 = vmatpush1.msra.mxu0 0.0
    %1537 = vmatprep.subr.mxu0 0.0
    %1538 = vmatpush1.msra.mxu0 0.0
    %1539 = vmatprep.subr.mxu0 0.0
    %1540 = vmatpush1.msra.mxu0 0.0
    %1541 = vmatprep.subr.mxu0 0.0
    %1542 = vmatpush1.msra.mxu0 0.0
    %1543 = vmatprep.subr.mxu0 0.0
    %1544 = vmatpush1.msra.mxu0 0.0
    %1545 = vmatprep.subr.mxu0 0.0
    %1546 = vmatpush1.msra.mxu0 0.0
    %1547 = vmatprep.subr.mxu0 0.0
    %1548 = vmatpush1.msra.mxu0 0.0
    %1549 = vmatprep.subr.mxu0 0.0
    %1550 = vmatpush1.msra.mxu0 0.0
    %1551 = vmatprep.subr.mxu0 0.0
    %1552 = vmatpush1.msra.mxu0 0.0
    %1553 = vmatprep.subr.mxu0 0.0
    %1554 = vmatpush1.msra.mxu0 0.0
    %1555 = vmatprep.subr.mxu0 0.0
    %1556 = vmatpush1.msra.mxu0 0.0
    %1557 = vmatprep.subr.mxu0 0.0
    %1558 = vmatpush1.msra.mxu0 0.0
    %1559 = vmatprep.subr.mxu0 0.0
    %1560 = vmatpush1.msra.mxu0 0.0
    %1561 = vmatprep.subr.mxu0 0.0
    %1562 = vmatpush1.msra.mxu0 0.0
    %1563 = vmatprep.subr.mxu0 0.0
    %1564 = vmatpush1.msra.mxu0 0.0
    %1565 = vmatprep.subr.mxu0 0.0
    %1566 = vmatpush1.msra.mxu0 0.0
    %1567 = vmatprep.subr.mxu0 0.0
    %1568 = vmatpush1.msra.mxu0 0.0
    %1569 = vmatprep.subr.mxu0 0.0
    %1570 = vmatpush1.msra.mxu0 0.0
    %1571 = vmatprep.subr.mxu0 0.0
    %1572 = vmatpush1.msra.mxu0 0.0
    %1573 = vmatprep.subr.mxu0 0.0
    %1574 = vmatpush1.msra.mxu0 0.0
    %1575 = vmatprep.subr.mxu0 0.0
    %1576 = vmatpush1.msra.mxu0 0.0
    %1577 = vmatprep.mubr.f32.mxu0 0.0
    %1578 = vmatmul.mubr.f32.gmra.mrb[0].mxu0 %v1511
    %v1579 = vpop.f32.mrb[0].mxu0
    %v1580 = vadd.f32 0.0, %v1579
    %v1581 = vpop.f32.mrb[0].mxu0
    %1582 = vdwg.mxu0
    %1583 = vrot.lane.b32.xlu0 %v170, 56
    %v1584 = vpop.permute.xlu0 %1583
    %v1587 = vsel %vm191, %v906, 0
    %1589 = vmatprep.subr.mxu0 0.0
    %1590 = vmatpush1.msra.mxu0 %v1584
    %1591 = vmatprep.subr.mxu0 0.0
    %1592 = vmatpush1.msra.mxu0 0.0
    %1593 = vmatprep.subr.mxu0 0.0
    %1594 = vmatpush1.msra.mxu0 0.0
    %1595 = vmatprep.subr.mxu0 0.0
    %1596 = vmatpush1.msra.mxu0 0.0
    %1597 = vmatprep.subr.mxu0 0.0
    %1598 = vmatpush1.msra.mxu0 0.0
    %1599 = vmatprep.subr.mxu0 0.0
    %1600 = vmatpush1.msra.mxu0 0.0
    %1601 = vmatprep.subr.mxu0 0.0
    %1602 = vmatpush1.msra.mxu0 0.0
    %1603 = vmatprep.subr.mxu0 0.0
    %1604 = vmatpush1.msra.mxu0 0.0
    %1605 = vmatprep.subr.mxu0 0.0
    %1606 = vmatpush1.msra.mxu0 0.0
    %1607 = vmatprep.subr.mxu0 0.0
    %1608 = vmatpush1.msra.mxu0 0.0
    %1609 = vmatprep.subr.mxu0 0.0
    %1610 = vmatpush1.msra.mxu0 0.0
    %1611 = vmatprep.subr.mxu0 0.0
    %1612 = vmatpush1.msra.mxu0 0.0
    %1613 = vmatprep.subr.mxu0 0.0
    %1614 = vmatpush1.msra.mxu0 0.0
    %1615 = vmatprep.subr.mxu0 0.0
    %1616 = vmatpush1.msra.mxu0 0.0
    %1617 = vmatprep.subr.mxu0 0.0
    %1618 = vmatpush1.msra.mxu0 0.0
    %1619 = vmatprep.subr.mxu0 0.0
    %1620 = vmatpush1.msra.mxu0 0.0
    %1621 = vmatprep.subr.mxu0 0.0
    %1622 = vmatpush1.msra.mxu0 0.0
    %1623 = vmatprep.subr.mxu0 0.0
    %1624 = vmatpush1.msra.mxu0 0.0
    %1625 = vmatprep.subr.mxu0 0.0
    %1626 = vmatpush1.msra.mxu0 0.0
    %1627 = vmatprep.subr.mxu0 0.0
    %1628 = vmatpush1.msra.mxu0 0.0
    %1629 = vmatprep.subr.mxu0 0.0
    %1630 = vmatpush1.msra.mxu0 0.0
    %1631 = vmatprep.subr.mxu0 0.0
    %1632 = vmatpush1.msra.mxu0 0.0
    %1633 = vmatprep.subr.mxu0 0.0
    %1634 = vmatpush1.msra.mxu0 0.0
    %1635 = vmatprep.subr.mxu0 0.0
    %1636 = vmatpush1.msra.mxu0 0.0
    %1637 = vmatprep.subr.mxu0 0.0
    %1638 = vmatpush1.msra.mxu0 0.0
    %1639 = vmatprep.subr.mxu0 0.0
    %1640 = vmatpush1.msra.mxu0 0.0
    %1641 = vmatprep.subr.mxu0 0.0
    %1642 = vmatpush1.msra.mxu0 0.0
    %1643 = vmatprep.subr.mxu0 0.0
    %1644 = vmatpush1.msra.mxu0 0.0
    %1645 = vmatprep.subr.mxu0 0.0
    %1646 = vmatpush1.msra.mxu0 0.0
    %1647 = vmatprep.subr.mxu0 0.0
    %1648 = vmatpush1.msra.mxu0 0.0
    %1649 = vmatprep.subr.mxu0 0.0
    %1650 = vmatpush1.msra.mxu0 0.0
    %1651 = vmatprep.subr.mxu0 0.0
    %1652 = vmatpush1.msra.mxu0 0.0
    %1653 = vmatprep.mubr.f32.mxu0 0.0
    %1654 = vmatmul.mubr.f32.gmra.mrb[0].mxu0 %v1587
    %v1655 = vpop.f32.mrb[0].mxu0
    %v1656 = vadd.f32 0.0, %v1655
    %v1657 = vpop.f32.mrb[0].mxu0
    %1658 = vdwg.mxu0
    %v1660 = vsel %vm191, %v1656, 0
    %1662 = vmatprep.subr.mxu0 0.0
    %1663 = vmatpush1.msra.mxu0 %v176
    %1664 = vmatprep.subr.mxu0 0.0
    %1665 = vmatpush1.msra.mxu0 0.0
    %1666 = vmatprep.subr.mxu0 0.0
    %1667 = vmatpush1.msra.mxu0 0.0
    %1668 = vmatprep.subr.mxu0 0.0
    %1669 = vmatpush1.msra.mxu0 0.0
    %1670 = vmatprep.subr.mxu0 0.0
    %1671 = vmatpush1.msra.mxu0 0.0
    %1672 = vmatprep.subr.mxu0 0.0
    %1673 = vmatpush1.msra.mxu0 0.0
    %1674 = vmatprep.subr.mxu0 0.0
    %1675 = vmatpush1.msra.mxu0 0.0
    %1676 = vmatprep.subr.mxu0 0.0
    %1677 = vmatpush1.msra.mxu0 0.0
    %1678 = vmatprep.subr.mxu0 0.0
    %1679 = vmatpush1.msra.mxu0 0.0
    %1680 = vmatprep.subr.mxu0 0.0
    %1681 = vmatpush1.msra.mxu0 0.0
    %1682 = vmatprep.subr.mxu0 0.0
    %1683 = vmatpush1.msra.mxu0 0.0
    %1684 = vmatprep.subr.mxu0 0.0
    %1685 = vmatpush1.msra.mxu0 0.0
    %1686 = vmatprep.subr.mxu0 0.0
    %1687 = vmatpush1.msra.mxu0 0.0
    %1688 = vmatprep.subr.mxu0 0.0
    %1689 = vmatpush1.msra.mxu0 0.0
    %1690 = vmatprep.subr.mxu0 0.0
    %1691 = vmatpush1.msra.mxu0 0.0
    %1692 = vmatprep.subr.mxu0 0.0
    %1693 = vmatpush1.msra.mxu0 0.0
    %1694 = vmatprep.subr.mxu0 0.0
    %1695 = vmatpush1.msra.mxu0 0.0
    %1696 = vmatprep.subr.mxu0 0.0
    %1697 = vmatpush1.msra.mxu0 0.0
    %1698 = vmatprep.subr.mxu0 0.0
    %1699 = vmatpush1.msra.mxu0 0.0
    %1700 = vmatprep.subr.mxu0 0.0
    %1701 = vmatpush1.msra.mxu0 0.0
    %1702 = vmatprep.subr.mxu0 0.0
    %1703 = vmatpush1.msra.mxu0 0.0
    %1704 = vmatprep.subr.mxu0 0.0
    %1705 = vmatpush1.msra.mxu0 0.0
    %1706 = vmatprep.subr.mxu0 0.0
    %1707 = vmatpush1.msra.mxu0 0.0
    %1708 = vmatprep.subr.mxu0 0.0
    %1709 = vmatpush1.msra.mxu0 0.0
    %1710 = vmatprep.subr.mxu0 0.0
    %1711 = vmatpush1.msra.mxu0 0.0
    %1712 = vmatprep.subr.mxu0 0.0
    %1713 = vmatpush1.msra.mxu0 0.0
    %1714 = vmatprep.subr.mxu0 0.0
    %1715 = vmatpush1.msra.mxu0 0.0
    %1716 = vmatprep.subr.mxu0 0.0
    %1717 = vmatpush1.msra.mxu0 0.0
    %1718 = vmatprep.subr.mxu0 0.0
    %1719 = vmatpush1.msra.mxu0 0.0
    %1720 = vmatprep.subr.mxu0 0.0
    %1721 = vmatpush1.msra.mxu0 0.0
    %1722 = vmatprep.subr.mxu0 0.0
    %1723 = vmatpush1.msra.mxu0 0.0
    %1724 = vmatprep.subr.mxu0 0.0
    %1725 = vmatpush1.msra.mxu0 0.0
    %1726 = vmatprep.mubr.f32.mxu0 0.0
    %1727 = vmatmul.mubr.f32.gmra.mrb[0].mxu0 %v1660
    %v1728 = vpop.f32.mrb[0].mxu0
    %v1729 = vadd.f32 0.0, %v1728
    %v1730 = vpop.f32.mrb[0].mxu0
    %1731 = vdwg.mxu0
    %v1733 = vsel %vm191, %v1580, 0
    %1735 = vmatprep.subr.mxu0 0.0
    %1736 = vmatpush1.msra.mxu0 %v175
    %1737 = vmatprep.subr.mxu0 0.0
    %1738 = vmatpush1.msra.mxu0 0.0
    %1739 = vmatprep.subr.mxu0 0.0
    %1740 = vmatpush1.msra.mxu0 0.0
    %1741 = vmatprep.subr.mxu0 0.0
    %1742 = vmatpush1.msra.mxu0 0.0
    %1743 = vmatprep.subr.mxu0 0.0
    %1744 = vmatpush1.msra.mxu0 0.0
    %1745 = vmatprep.subr.mxu0 0.0
    %1746 = vmatpush1.msra.mxu0 0.0
    %1747 = vmatprep.subr.mxu0 0.0
    %1748 = vmatpush1.msra.mxu0 0.0
    %1749 = vmatprep.subr.mxu0 0.0
    %1750 = vmatpush1.msra.mxu0 0.0
    %1751 = vmatprep.subr.mxu0 0.0
    %1752 = vmatpush1.msra.mxu0 0.0
    %1753 = vmatprep.subr.mxu0 0.0
    %1754 = vmatpush1.msra.mxu0 0.0
    %1755 = vmatprep.subr.mxu0 0.0
    %1756 = vmatpush1.msra.mxu0 0.0
    %1757 = vmatprep.subr.mxu0 0.0
    %1758 = vmatpush1.msra.mxu0 0.0
    %1759 = vmatprep.subr.mxu0 0.0
    %1760 = vmatpush1.msra.mxu0 0.0
    %1761 = vmatprep.subr.mxu0 0.0
    %1762 = vmatpush1.msra.mxu0 0.0
    %1763 = vmatprep.subr.mxu0 0.0
    %1764 = vmatpush1.msra.mxu0 0.0
    %1765 = vmatprep.subr.mxu0 0.0
    %1766 = vmatpush1.msra.mxu0 0.0
    %1767 = vmatprep.subr.mxu0 0.0
    %1768 = vmatpush1.msra.mxu0 0.0
    %1769 = vmatprep.subr.mxu0 0.0
    %1770 = vmatpush1.msra.mxu0 0.0
    %1771 = vmatprep.subr.mxu0 0.0
    %1772 = vmatpush1.msra.mxu0 0.0
    %1773 = vmatprep.subr.mxu0 0.0
    %1774 = vmatpush1.msra.mxu0 0.0
    %1775 = vmatprep.subr.mxu0 0.0
    %1776 = vmatpush1.msra.mxu0 0.0
    %1777 = vmatprep.subr.mxu0 0.0
    %1778 = vmatpush1.msra.mxu0 0.0
    %1779 = vmatprep.subr.mxu0 0.0
    %1780 = vmatpush1.msra.mxu0 0.0
    %1781 = vmatprep.subr.mxu0 0.0
    %1782 = vmatpush1.msra.mxu0 0.0
    %1783 = vmatprep.subr.mxu0 0.0
    %1784 = vmatpush1.msra.mxu0 0.0
    %1785 = vmatprep.subr.mxu0 0.0
    %1786 = vmatpush1.msra.mxu0 0.0
    %1787 = vmatprep.subr.mxu0 0.0
    %1788 = vmatpush1.msra.mxu0 0.0
    %1789 = vmatprep.subr.mxu0 0.0
    %1790 = vmatpush1.msra.mxu0 0.0
    %1791 = vmatprep.subr.mxu0 0.0
    %1792 = vmatpush1.msra.mxu0 0.0
    %1793 = vmatprep.subr.mxu0 0.0
    %1794 = vmatpush1.msra.mxu0 0.0
    %1795 = vmatprep.subr.mxu0 0.0
    %1796 = vmatpush1.msra.mxu0 0.0
    %1797 = vmatprep.subr.mxu0 0.0
    %1798 = vmatpush1.msra.mxu0 0.0
    %1799 = vmatprep.mubr.f32.mxu0 0.0
    %1800 = vmatmul.mubr.f32.gmra.mrb[0].mxu0 %v1733
    %v1801 = vpop.f32.mrb[0].mxu0
    %v1802 = vadd.f32 %v1729, %v1801
    %v1803 = vpop.f32.mrb[0].mxu0
    %1804 = vdwg.mxu0
    %1805 = vrot.lane.b32.xlu0 %v170, 48
    %v1806 = vpop.permute.xlu0 %1805
    %v1809 = vsel %vm191, %v907, 0
    %1811 = vmatprep.subr.mxu0 0.0
    %1812 = vmatpush1.msra.mxu0 %v1806
    %1813 = vmatprep.subr.mxu0 0.0
    %1814 = vmatpush1.msra.mxu0 0.0
    %1815 = vmatprep.subr.mxu0 0.0
    %1816 = vmatpush1.msra.mxu0 0.0
    %1817 = vmatprep.subr.mxu0 0.0
    %1818 = vmatpush1.msra.mxu0 0.0
    %1819 = vmatprep.subr.mxu0 0.0
    %1820 = vmatpush1.msra.mxu0 0.0
    %1821 = vmatprep.subr.mxu0 0.0
    %1822 = vmatpush1.msra.mxu0 0.0
    %1823 = vmatprep.subr.mxu0 0.0
    %1824 = vmatpush1.msra.mxu0 0.0
    %1825 = vmatprep.subr.mxu0 0.0
    %1826 = vmatpush1.msra.mxu0 0.0
    %1827 = vmatprep.subr.mxu0 0.0
    %1828 = vmatpush1.msra.mxu0 0.0
    %1829 = vmatprep.subr.mxu0 0.0
    %1830 = vmatpush1.msra.mxu0 0.0
    %1831 = vmatprep.subr.mxu0 0.0
    %1832 = vmatpush1.msra.mxu0 0.0
    %1833 = vmatprep.subr.mxu0 0.0
    %1834 = vmatpush1.msra.mxu0 0.0
    %1835 = vmatprep.subr.mxu0 0.0
    %1836 = vmatpush1.msra.mxu0 0.0
    %1837 = vmatprep.subr.mxu0 0.0
    %1838 = vmatpush1.msra.mxu0 0.0
    %1839 = vmatprep.subr.mxu0 0.0
    %1840 = vmatpush1.msra.mxu0 0.0
    %1841 = vmatprep.subr.mxu0 0.0
    %1842 = vmatpush1.msra.mxu0 0.0
    %1843 = vmatprep.subr.mxu0 0.0
    %1844 = vmatpush1.msra.mxu0 0.0
    %1845 = vmatprep.subr.mxu0 0.0
    %1846 = vmatpush1.msra.mxu0 0.0
    %1847 = vmatprep.subr.mxu0 0.0
    %1848 = vmatpush1.msra.mxu0 0.0
    %1849 = vmatprep.subr.mxu0 0.0
    %1850 = vmatpush1.msra.mxu0 0.0
    %1851 = vmatprep.subr.mxu0 0.0
    %1852 = vmatpush1.msra.mxu0 0.0
    %1853 = vmatprep.subr.mxu0 0.0
    %1854 = vmatpush1.msra.mxu0 0.0
    %1855 = vmatprep.subr.mxu0 0.0
    %1856 = vmatpush1.msra.mxu0 0.0
    %1857 = vmatprep.subr.mxu0 0.0
    %1858 = vmatpush1.msra.mxu0 0.0
    %1859 = vmatprep.subr.mxu0 0.0
    %1860 = vmatpush1.msra.mxu0 0.0
    %1861 = vmatprep.subr.mxu0 0.0
    %1862 = vmatpush1.msra.mxu0 0.0
    %1863 = vmatprep.subr.mxu0 0.0
    %1864 = vmatpush1.msra.mxu0 0.0
    %1865 = vmatprep.subr.mxu0 0.0
    %1866 = vmatpush1.msra.mxu0 0.0
    %1867 = vmatprep.subr.mxu0 0.0
    %1868 = vmatpush1.msra.mxu0 0.0
    %1869 = vmatprep.subr.mxu0 0.0
    %1870 = vmatpush1.msra.mxu0 0.0
    %1871 = vmatprep.subr.mxu0 0.0
    %1872 = vmatpush1.msra.mxu0 0.0
    %1873 = vmatprep.subr.mxu0 0.0
    %1874 = vmatpush1.msra.mxu0 0.0
    %1875 = vmatprep.mubr.f32.mxu0 0.0
    %1876 = vmatmul.mubr.f32.gmra.mrb[0].mxu0 %v1809
    %v1877 = vpop.f32.mrb[0].mxu0
    %v1878 = vadd.f32 0.0, %v1877
    %v1879 = vpop.f32.mrb[0].mxu0
    %1880 = vdwg.mxu0
    %v1882 = vsel %vm191, %v1878, 0
    %1884 = vmatprep.subr.mxu0 0.0
    %1885 = vmatpush1.msra.mxu0 %v177
    %1886 = vmatprep.subr.mxu0 0.0
    %1887 = vmatpush1.msra.mxu0 0.0
    %1888 = vmatprep.subr.mxu0 0.0
    %1889 = vmatpush1.msra.mxu0 0.0
    %1890 = vmatprep.subr.mxu0 0.0
    %1891 = vmatpush1.msra.mxu0 0.0
    %1892 = vmatprep.subr.mxu0 0.0
    %1893 = vmatpush1.msra.mxu0 0.0
    %1894 = vmatprep.subr.mxu0 0.0
    %1895 = vmatpush1.msra.mxu0 0.0
    %1896 = vmatprep.subr.mxu0 0.0
    %1897 = vmatpush1.msra.mxu0 0.0
    %1898 = vmatprep.subr.mxu0 0.0
    %1899 = vmatpush1.msra.mxu0 0.0
    %1900 = vmatprep.subr.mxu0 0.0
    %1901 = vmatpush1.msra.mxu0 0.0
    %1902 = vmatprep.subr.mxu0 0.0
    %1903 = vmatpush1.msra.mxu0 0.0
    %1904 = vmatprep.subr.mxu0 0.0
    %1905 = vmatpush1.msra.mxu0 0.0
    %1906 = vmatprep.subr.mxu0 0.0
    %1907 = vmatpush1.msra.mxu0 0.0
    %1908 = vmatprep.subr.mxu0 0.0
    %1909 = vmatpush1.msra.mxu0 0.0
    %1910 = vmatprep.subr.mxu0 0.0
    %1911 = vmatpush1.msra.mxu0 0.0
    %1912 = vmatprep.subr.mxu0 0.0
    %1913 = vmatpush1.msra.mxu0 0.0
    %1914 = vmatprep.subr.mxu0 0.0
    %1915 = vmatpush1.msra.mxu0 0.0
    %1916 = vmatprep.subr.mxu0 0.0
    %1917 = vmatpush1.msra.mxu0 0.0
    %1918 = vmatprep.subr.mxu0 0.0
    %1919 = vmatpush1.msra.mxu0 0.0
    %1920 = vmatprep.subr.mxu0 0.0
    %1921 = vmatpush1.msra.mxu0 0.0
    %1922 = vmatprep.subr.mxu0 0.0
    %1923 = vmatpush1.msra.mxu0 0.0
    %1924 = vmatprep.subr.mxu0 0.0
    %1925 = vmatpush1.msra.mxu0 0.0
    %1926 = vmatprep.subr.mxu0 0.0
    %1927 = vmatpush1.msra.mxu0 0.0
    %1928 = vmatprep.subr.mxu0 0.0
    %1929 = vmatpush1.msra.mxu0 0.0
    %1930 = vmatprep.subr.mxu0 0.0
    %1931 = vmatpush1.msra.mxu0 0.0
    %1932 = vmatprep.subr.mxu0 0.0
    %1933 = vmatpush1.msra.mxu0 0.0
    %1934 = vmatprep.subr.mxu0 0.0
    %1935 = vmatpush1.msra.mxu0 0.0
    %1936 = vmatprep.subr.mxu0 0.0
    %1937 = vmatpush1.msra.mxu0 0.0
    %1938 = vmatprep.subr.mxu0 0.0
    %1939 = vmatpush1.msra.mxu0 0.0
    %1940 = vmatprep.subr.mxu0 0.0
    %1941 = vmatpush1.msra.mxu0 0.0
    %1942 = vmatprep.subr.mxu0 0.0
    %1943 = vmatpush1.msra.mxu0 0.0
    %1944 = vmatprep.subr.mxu0 0.0
    %1945 = vmatpush1.msra.mxu0 0.0
    %1946 = vmatprep.subr.mxu0 0.0
    %1947 = vmatpush1.msra.mxu0 0.0
    %1948 = vmatprep.mubr.f32.mxu0 0.0
    %1949 = vmatmul.mubr.f32.gmra.mrb[0].mxu0 %v1882
    %v1950 = vpop.f32.mrb[0].mxu0
    %v1951 = vadd.f32 0.0, %v1950
    %v1952 = vpop.f32.mrb[0].mxu0
    %1953 = vdwg.mxu0
    %v1954 = vadd.f32 %v1802, %v1951
    %1955 = vrot.lane.b32.xlu0 %v170, 40
    %v1956 = vpop.permute.xlu0 %1955
    %v1959 = vsel %vm191, %v908, 0
    %1961 = vmatprep.subr.mxu0 0.0
    %1962 = vmatpush1.msra.mxu0 %v1956
    %1963 = vmatprep.subr.mxu0 0.0
    %1964 = vmatpush1.msra.mxu0 0.0
    %1965 = vmatprep.subr.mxu0 0.0
    %1966 = vmatpush1.msra.mxu0 0.0
    %1967 = vmatprep.subr.mxu0 0.0
    %1968 = vmatpush1.msra.mxu0 0.0
    %1969 = vmatprep.subr.mxu0 0.0
    %1970 = vmatpush1.msra.mxu0 0.0
    %1971 = vmatprep.subr.mxu0 0.0
    %1972 = vmatpush1.msra.mxu0 0.0
    %1973 = vmatprep.subr.mxu0 0.0
    %1974 = vmatpush1.msra.mxu0 0.0
    %1975 = vmatprep.subr.mxu0 0.0
    %1976 = vmatpush1.msra.mxu0 0.0
    %1977 = vmatprep.subr.mxu0 0.0
    %1978 = vmatpush1.msra.mxu0 0.0
    %1979 = vmatprep.subr.mxu0 0.0
    %1980 = vmatpush1.msra.mxu0 0.0
    %1981 = vmatprep.subr.mxu0 0.0
    %1982 = vmatpush1.msra.mxu0 0.0
    %1983 = vmatprep.subr.mxu0 0.0
    %1984 = vmatpush1.msra.mxu0 0.0
    %1985 = vmatprep.subr.mxu0 0.0
    %1986 = vmatpush1.msra.mxu0 0.0
    %1987 = vmatprep.subr.mxu0 0.0
    %1988 = vmatpush1.msra.mxu0 0.0
    %1989 = vmatprep.subr.mxu0 0.0
    %1990 = vmatpush1.msra.mxu0 0.0
    %1991 = vmatprep.subr.mxu0 0.0
    %1992 = vmatpush1.msra.mxu0 0.0
    %1993 = vmatprep.subr.mxu0 0.0
    %1994 = vmatpush1.msra.mxu0 0.0
    %1995 = vmatprep.subr.mxu0 0.0
    %1996 = vmatpush1.msra.mxu0 0.0
    %1997 = vmatprep.subr.mxu0 0.0
    %1998 = vmatpush1.msra.mxu0 0.0
    %1999 = vmatprep.subr.mxu0 0.0
    %2000 = vmatpush1.msra.mxu0 0.0
    %2001 = vmatprep.subr.mxu0 0.0
    %2002 = vmatpush1.msra.mxu0 0.0
    %2003 = vmatprep.subr.mxu0 0.0
    %2004 = vmatpush1.msra.mxu0 0.0
    %2005 = vmatprep.subr.mxu0 0.0
    %2006 = vmatpush1.msra.mxu0 0.0
    %2007 = vmatprep.subr.mxu0 0.0
    %2008 = vmatpush1.msra.mxu0 0.0
    %2009 = vmatprep.subr.mxu0 0.0
    %2010 = vmatpush1.msra.mxu0 0.0
    %2011 = vmatprep.subr.mxu0 0.0
    %2012 = vmatpush1.msra.mxu0 0.0
    %2013 = vmatprep.subr.mxu0 0.0
    %2014 = vmatpush1.msra.mxu0 0.0
    %2015 = vmatprep.subr.mxu0 0.0
    %2016 = vmatpush1.msra.mxu0 0.0
    %2017 = vmatprep.subr.mxu0 0.0
    %2018 = vmatpush1.msra.mxu0 0.0
    %2019 = vmatprep.subr.mxu0 0.0
    %2020 = vmatpush1.msra.mxu0 0.0
    %2021 = vmatprep.subr.mxu0 0.0
    %2022 = vmatpush1.msra.mxu0 0.0
    %2023 = vmatprep.subr.mxu0 0.0
    %2024 = vmatpush1.msra.mxu0 0.0
    %2025 = vmatprep.mubr.f32.mxu0 0.0
    %2026 = vmatmul.mubr.f32.gmra.mrb[0].mxu0 %v1959
    %v2027 = vpop.f32.mrb[0].mxu0
    %v2028 = vadd.f32 0.0, %v2027
    %v2029 = vpop.f32.mrb[0].mxu0
    %2030 = vdwg.mxu0
    %v2032 = vsel %vm191, %v2028, 0
    %2034 = vmatprep.subr.mxu0 0.0
    %2035 = vmatpush1.msra.mxu0 %v178
    %2036 = vmatprep.subr.mxu0 0.0
    %2037 = vmatpush1.msra.mxu0 0.0
    %2038 = vmatprep.subr.mxu0 0.0
    %2039 = vmatpush1.msra.mxu0 0.0
    %2040 = vmatprep.subr.mxu0 0.0
    %2041 = vmatpush1.msra.mxu0 0.0
    %2042 = vmatprep.subr.mxu0 0.0
    %2043 = vmatpush1.msra.mxu0 0.0
    %2044 = vmatprep.subr.mxu0 0.0
    %2045 = vmatpush1.msra.mxu0 0.0
    %2046 = vmatprep.subr.mxu0 0.0
    %2047 = vmatpush1.msra.mxu0 0.0
    %2048 = vmatprep.subr.mxu0 0.0
    %2049 = vmatpush1.msra.mxu0 0.0
    %2050 = vmatprep.subr.mxu0 0.0
    %2051 = vmatpush1.msra.mxu0 0.0
    %2052 = vmatprep.subr.mxu0 0.0
    %2053 = vmatpush1.msra.mxu0 0.0
    %2054 = vmatprep.subr.mxu0 0.0
    %2055 = vmatpush1.msra.mxu0 0.0
    %2056 = vmatprep.subr.mxu0 0.0
    %2057 = vmatpush1.msra.mxu0 0.0
    %2058 = vmatprep.subr.mxu0 0.0
    %2059 = vmatpush1.msra.mxu0 0.0
    %2060 = vmatprep.subr.mxu0 0.0
    %2061 = vmatpush1.msra.mxu0 0.0
    %2062 = vmatprep.subr.mxu0 0.0
    %2063 = vmatpush1.msra.mxu0 0.0
    %2064 = vmatprep.subr.mxu0 0.0
    %2065 = vmatpush1.msra.mxu0 0.0
    %2066 = vmatprep.subr.mxu0 0.0
    %2067 = vmatpush1.msra.mxu0 0.0
    %2068 = vmatprep.subr.mxu0 0.0
    %2069 = vmatpush1.msra.mxu0 0.0
    %2070 = vmatprep.subr.mxu0 0.0
    %2071 = vmatpush1.msra.mxu0 0.0
    %2072 = vmatprep.subr.mxu0 0.0
    %2073 = vmatpush1.msra.mxu0 0.0
    %2074 = vmatprep.subr.mxu0 0.0
    %2075 = vmatpush1.msra.mxu0 0.0
    %2076 = vmatprep.subr.mxu0 0.0
    %2077 = vmatpush1.msra.mxu0 0.0
    %2078 = vmatprep.subr.mxu0 0.0
    %2079 = vmatpush1.msra.mxu0 0.0
    %2080 = vmatprep.subr.mxu0 0.0
    %2081 = vmatpush1.msra.mxu0 0.0
    %2082 = vmatprep.subr.mxu0 0.0
    %2083 = vmatpush1.msra.mxu0 0.0
    %2084 = vmatprep.subr.mxu0 0.0
    %2085 = vmatpush1.msra.mxu0 0.0
    %2086 = vmatprep.subr.mxu0 0.0
    %2087 = vmatpush1.msra.mxu0 0.0
    %2088 = vmatprep.subr.mxu0 0.0
    %2089 = vmatpush1.msra.mxu0 0.0
    %2090 = vmatprep.subr.mxu0 0.0
    %2091 = vmatpush1.msra.mxu0 0.0
    %2092 = vmatprep.subr.mxu0 0.0
    %2093 = vmatpush1.msra.mxu0 0.0
    %2094 = vmatprep.subr.mxu0 0.0
    %2095 = vmatpush1.msra.mxu0 0.0
    %2096 = vmatprep.subr.mxu0 0.0
    %2097 = vmatpush1.msra.mxu0 0.0
    %2098 = vmatprep.mubr.f32.mxu0 0.0
    %2099 = vmatmul.mubr.f32.gmra.mrb[0].mxu0 %v2032
    %v2100 = vpop.f32.mrb[0].mxu0
    %v2101 = vadd.f32 0.0, %v2100
    %v2102 = vpop.f32.mrb[0].mxu0
    %2103 = vdwg.mxu0
    %v2104 = vadd.f32 %v1954, %v2101
    %v2106 = vlaneseq
    %v2107 = vshrl.u32 %v2106, 7
    %v2108 = vsub.s32 0, %v2107
    %v2109 = vrot.slane %v179, %v2108
    %v2111 = vadd.f32 %v1506, %v2109
    %v2112 = vadd.f32 %v2104, %v2109
    %v2113 = vadd.f32 %v83, %v2111
    %v2114 = vadd.f32 %v84, %v2112
    %v2115 = vld [vmem:[%s7] sm:$0x1]
    %v2116 = vld [vmem:[%s8] sm:$0x1]
    %v2117 = vsel %vm91, %v2113, 0.0
    %2118 = vadd.xlane.f32.xlu0 %v2117
    %v2119 = vpop.xlane.xlu0 %2118
    %v2120 = vsel %vm91, %v2114, 0.0
    %2121 = vadd.xlane.f32.xlu0 %v2120
    %v2122 = vpop.xlane.xlu0 %2121
    %v2123 = vrcp.pop 32.0
    %v2124 = vmul.f32 %v2119, %v2123
    %v2125 = vmul.f32 %v2122, %v2123
    %v2126 = vsub.f32 %v2113, %v2124
    %v2127 = vsub.f32 %v2114, %v2125
    %v2128 = vmul.f32 %v2126, %v2126
    %v2129 = vmul.f32 %v2127, %v2127
    %v2130 = vsel %vm91, %v2128, 0.0
    %2131 = vadd.xlane.f32.xlu0 %v2130
    %v2132 = vpop.xlane.xlu0 %2131
    %v2133 = vsel %vm91, %v2129, 0.0
    %2134 = vadd.xlane.f32.xlu0 %v2133
    %v2135 = vpop.xlane.xlu0 %2134
    %v2136 = vmul.f32 %v2132, %v2123
    %v2137 = vmul.f32 %v2135, %v2123
    %v2138 = vadd.f32 %v2136, 1e-05
    %v2139 = vadd.f32 %v2137, 1e-05
    %v2140 = vrsqrt.pop %v2138
    %v2141 = vrsqrt.pop %v2139
    %v2142 = vmul.f32 %v2126, %v2140
    %v2143 = vmul.f32 %v2127, %v2141
    %v2145 = vlaneseq
    %v2146 = vshrl.u32 %v2145, 7
    %v2147 = vsub.s32 0, %v2146
    %v2148 = vrot.slane %v2115, %v2147
    %v2150 = vmul.f32 %v2142, %v2148
    %v2151 = vmul.f32 %v2143, %v2148
    %v2153 = vlaneseq
    %v2154 = vshrl.u32 %v2153, 7
    %v2155 = vsub.s32 0, %v2154
    %v2156 = vrot.slane %v2116, %v2155
    %v2158 = vadd.f32 %v2150, %v2156
    %v2159 = vadd.f32 %v2151, %v2156
    %v2160 = vld [vmem:[%s9] sm:$0xff]
    %v2161 = vld [vmem:[%s9 + $0x8] sm:$0xff]
    %v2162 = vld [vmem:[%s9 + $0x10] sm:$0xff]
    %v2163 = vld [vmem:[%s9 + $0x18] sm:$0xff]
    %v2165 = vsel %vm91, %v2158, 0
    %v2168 = vsel %vm91, %v2159, 0
    %2170 = vmatprep.subr.mxu0 0.0
    %2171 = vmatpush1.msra.mxu0 %v2160
    %2172 = vmatprep.subr.mxu0 0.0
    %2173 = vmatpush1.msra.mxu0 %v2161
    %2174 = vmatprep.subr.mxu0 0.0
    %2175 = vmatpush1.msra.mxu0 %v2162
    %2176 = vmatprep.subr.mxu0 0.0
    %2177 = vmatpush1.msra.mxu0 %v2163
    %2178 = vmatprep.subr.mxu0 0.0
    %2179 = vmatpush1.msra.mxu0 0.0
    %2180 = vmatprep.subr.mxu0 0.0
    %2181 = vmatpush1.msra.mxu0 0.0
    %2182 = vmatprep.subr.mxu0 0.0
    %2183 = vmatpush1.msra.mxu0 0.0
    %2184 = vmatprep.subr.mxu0 0.0
    %2185 = vmatpush1.msra.mxu0 0.0
    %2186 = vmatprep.subr.mxu0 0.0
    %2187 = vmatpush1.msra.mxu0 0.0
    %2188 = vmatprep.subr.mxu0 0.0
    %2189 = vmatpush1.msra.mxu0 0.0
    %2190 = vmatprep.subr.mxu0 0.0
    %2191 = vmatpush1.msra.mxu0 0.0
    %2192 = vmatprep.subr.mxu0 0.0
    %2193 = vmatpush1.msra.mxu0 0.0
    %2194 = vmatprep.subr.mxu0 0.0
    %2195 = vmatpush1.msra.mxu0 0.0
    %2196 = vmatprep.subr.mxu0 0.0
    %2197 = vmatpush1.msra.mxu0 0.0
    %2198 = vmatprep.subr.mxu0 0.0
    %2199 = vmatpush1.msra.mxu0 0.0
    %2200 = vmatprep.subr.mxu0 0.0
    %2201 = vmatpush1.msra.mxu0 0.0
    %2202 = vmatprep.subr.mxu0 0.0
    %2203 = vmatpush1.msra.mxu0 0.0
    %2204 = vmatprep.subr.mxu0 0.0
    %2205 = vmatpush1.msra.mxu0 0.0
    %2206 = vmatprep.subr.mxu0 0.0
    %2207 = vmatpush1.msra.mxu0 0.0
    %2208 = vmatprep.subr.mxu0 0.0
    %2209 = vmatpush1.msra.mxu0 0.0
    %2210 = vmatprep.subr.mxu0 0.0
    %2211 = vmatpush1.msra.mxu0 0.0
    %2212 = vmatprep.subr.mxu0 0.0
    %2213 = vmatpush1.msra.mxu0 0.0
    %2214 = vmatprep.subr.mxu0 0.0
    %2215 = vmatpush1.msra.mxu0 0.0
    %2216 = vmatprep.subr.mxu0 0.0
    %2217 = vmatpush1.msra.mxu0 0.0
    %2218 = vmatprep.subr.mxu0 0.0
    %2219 = vmatpush1.msra.mxu0 0.0
    %2220 = vmatprep.subr.mxu0 0.0
    %2221 = vmatpush1.msra.mxu0 0.0
    %2222 = vmatprep.subr.mxu0 0.0
    %2223 = vmatpush1.msra.mxu0 0.0
    %2224 = vmatprep.subr.mxu0 0.0
    %2225 = vmatpush1.msra.mxu0 0.0
    %2226 = vmatprep.subr.mxu0 0.0
    %2227 = vmatpush1.msra.mxu0 0.0
    %2228 = vmatprep.subr.mxu0 0.0
    %2229 = vmatpush1.msra.mxu0 0.0
    %2230 = vmatprep.subr.mxu0 0.0
    %2231 = vmatpush1.msra.mxu0 0.0
    %2232 = vmatprep.subr.mxu0 0.0
    %2233 = vmatpush1.msra.mxu0 0.0
    %2234 = vmatprep.mubr.f32.mxu0 0.0
    %2235 = vmatmul.mubr.f32.gmra.mrb[0].mxu0 %v2165
    %v2236 = vpop.f32.mrb[0].mxu0
    %v2237 = vadd.f32 0.0, %v2236
    %v2238 = vpop.f32.mrb[0].mxu0
    %2239 = vmatprep.mubr.f32.mxu0 0.0
    %2240 = vmatmul.mubr.f32.gmra.mrb[0].mxu0 %v2168
    %v2241 = vpop.f32.mrb[0].mxu0
    %v2242 = vadd.f32 0.0, %v2241
    %v2243 = vpop.f32.mrb[0].mxu0
    %2244 = vdwg.mxu0
    %v2245 = vmul.f32 %v2237, 0.35355338
    %v2246 = vmul.f32 %v2242, 0.35355338
    %v2247 = vld [vmem:[%s10] sm:$0xff]
    %v2248 = vld [vmem:[%s10 + $0x8] sm:$0xff]
    %v2249 = vld [vmem:[%s10 + $0x10] sm:$0xff]
    %v2250 = vld [vmem:[%s10 + $0x18] sm:$0xff]
    %v2252 = vsel %vm91, %v85, 0
    %v2255 = vsel %vm91, %v86, 0
    %2257 = vmatprep.subr.mxu0 0.0
    %2258 = vmatpush1.msra.mxu0 %v2247
    %2259 = vmatprep.subr.mxu0 0.0
    %2260 = vmatpush1.msra.mxu0 %v2248
    %2261 = vmatprep.subr.mxu0 0.0
    %2262 = vmatpush1.msra.mxu0 %v2249
    %2263 = vmatprep.subr.mxu0 0.0
    %2264 = vmatpush1.msra.mxu0 %v2250
    %2265 = vmatprep.subr.mxu0 0.0
    %2266 = vmatpush1.msra.mxu0 0.0
    %2267 = vmatprep.subr.mxu0 0.0
    %2268 = vmatpush1.msra.mxu0 0.0
    %2269 = vmatprep.subr.mxu0 0.0
    %2270 = vmatpush1.msra.mxu0 0.0
    %2271 = vmatprep.subr.mxu0 0.0
    %2272 = vmatpush1.msra.mxu0 0.0
    %2273 = vmatprep.subr.mxu0 0.0
    %2274 = vmatpush1.msra.mxu0 0.0
    %2275 = vmatprep.subr.mxu0 0.0
    %2276 = vmatpush1.msra.mxu0 0.0
    %2277 = vmatprep.subr.mxu0 0.0
    %2278 = vmatpush1.msra.mxu0 0.0
    %2279 = vmatprep.subr.mxu0 0.0
    %2280 = vmatpush1.msra.mxu0 0.0
    %2281 = vmatprep.subr.mxu0 0.0
    %2282 = vmatpush1.msra.mxu0 0.0
    %2283 = vmatprep.subr.mxu0 0.0
    %2284 = vmatpush1.msra.mxu0 0.0
    %2285 = vmatprep.subr.mxu0 0.0
    %2286 = vmatpush1.msra.mxu0 0.0
    %2287 = vmatprep.subr.mxu0 0.0
    %2288 = vmatpush1.msra.mxu0 0.0
    %2289 = vmatprep.subr.mxu0 0.0
    %2290 = vmatpush1.msra.mxu0 0.0
    %2291 = vmatprep.subr.mxu0 0.0
    %2292 = vmatpush1.msra.mxu0 0.0
    %2293 = vmatprep.subr.mxu0 0.0
    %2294 = vmatpush1.msra.mxu0 0.0
    %2295 = vmatprep.subr.mxu0 0.0
    %2296 = vmatpush1.msra.mxu0 0.0
    %2297 = vmatprep.subr.mxu0 0.0
    %2298 = vmatpush1.msra.mxu0 0.0
    %2299 = vmatprep.subr.mxu0 0.0
    %2300 = vmatpush1.msra.mxu0 0.0
    %2301 = vmatprep.subr.mxu0 0.0
    %2302 = vmatpush1.msra.mxu0 0.0
    %2303 = vmatprep.subr.mxu0 0.0
    %2304 = vmatpush1.msra.mxu0 0.0
    %2305 = vmatprep.subr.mxu0 0.0
    %2306 = vmatpush1.msra.mxu0 0.0
    %2307 = vmatprep.subr.mxu0 0.0
    %2308 = vmatpush1.msra.mxu0 0.0
    %2309 = vmatprep.subr.mxu0 0.0
    %2310 = vmatpush1.msra.mxu0 0.0
    %2311 = vmatprep.subr.mxu0 0.0
    %2312 = vmatpush1.msra.mxu0 0.0
    %2313 = vmatprep.subr.mxu0 0.0
    %2314 = vmatpush1.msra.mxu0 0.0
    %2315 = vmatprep.subr.mxu0 0.0
    %2316 = vmatpush1.msra.mxu0 0.0
    %2317 = vmatprep.subr.mxu0 0.0
    %2318 = vmatpush1.msra.mxu0 0.0
    %2319 = vmatprep.subr.mxu0 0.0
    %2320 = vmatpush1.msra.mxu0 0.0
    %2321 = vmatprep.mubr.f32.mxu0 0.0
    %2322 = vmatmul.mubr.f32.gmra.mrb[0].mxu0 %v2252
    %v2323 = vpop.f32.mrb[0].mxu0
    %v2324 = vadd.f32 0.0, %v2323
    %v2325 = vpop.f32.mrb[0].mxu0
    %2326 = vmatprep.mubr.f32.mxu0 0.0
    %2327 = vmatmul.mubr.f32.gmra.mrb[0].mxu0 %v2255
    %v2328 = vpop.f32.mrb[0].mxu0
    %v2329 = vadd.f32 0.0, %v2328
    %v2330 = vpop.f32.mrb[0].mxu0
    %2331 = vdwg.mxu0
    %v2332 = vld [vmem:[%s11] sm:$0xff]
    %v2333 = vld [vmem:[%s11 + $0x8] sm:$0xff]
    %v2334 = vld [vmem:[%s11 + $0x10] sm:$0xff]
    %v2335 = vld [vmem:[%s11 + $0x18] sm:$0xff]
    %v2336 = vld [vmem:[%s12] sm:$0x1]
    %v2337 = vld [vmem:[%s3] sm:$0xff]
    %v2338 = vld [vmem:[%s3 + $0x8] sm:$0xff]
    %v2339 = vld [vmem:[%s3 + $0x10] sm:$0xff]
    %v2340 = vld [vmem:[%s3 + $0x18] sm:$0xff]
    %v2341 = vld [vmem:[%s3 + $0x20] sm:$0xff]
    %v2342 = vld [vmem:[%s3 + $0x28] sm:$0xff]
    %v2343 = vld [vmem:[%s3 + $0x30] sm:$0xff]
    %v2344 = vld [vmem:[%s3 + $0x38] sm:$0xff]
    %v2346 = vsel %vm191, %v2245, 0
    %v2349 = vsel %vm191, %v2324, 0
    %2351 = vmatprep.subr.mxu0 0.0
    %2352 = vmatpush1.xpose.msra.mxu0 %v2349
    %2353 = vmatprep.subr.mxu0 0.0
    %2354 = vmatpush1.xpose.msra.mxu0 0.0
    %2355 = vmatprep.subr.mxu0 0.0
    %2356 = vmatpush1.xpose.msra.mxu0 0.0
    %2357 = vmatprep.subr.mxu0 0.0
    %2358 = vmatpush1.xpose.msra.mxu0 0.0
    %2359 = vmatprep.subr.mxu0 0.0
    %2360 = vmatpush1.xpose.msra.mxu0 0.0
    %2361 = vmatprep.subr.mxu0 0.0
    %2362 = vmatpush1.xpose.msra.mxu0 0.0
    %2363 = vmatprep.subr.mxu0 0.0
    %2364 = vmatpush1.xpose.msra.mxu0 0.0
    %2365 = vmatprep.subr.mxu0 0.0
    %2366 = vmatpush1.xpose.msra.mxu0 0.0
    %2367 = vmatprep.subr.mxu0 0.0
    %2368 = vmatpush1.xpose.msra.mxu0 0.0
    %2369 = vmatprep.subr.mxu0 0.0
    %2370 = vmatpush1.xpose.msra.mxu0 0.0
    %2371 = vmatprep.subr.mxu0 0.0
    %2372 = vmatpush1.xpose.msra.mxu0 0.0
    %2373 = vmatprep.subr.mxu0 0.0
    %2374 = vmatpush1.xpose.msra.mxu0 0.0
    %2375 = vmatprep.subr.mxu0 0.0
    %2376 = vmatpush1.xpose.msra.mxu0 0.0
    %2377 = vmatprep.subr.mxu0 0.0
    %2378 = vmatpush1.xpose.msra.mxu0 0.0
    %2379 = vmatprep.subr.mxu0 0.0
    %2380 = vmatpush1.xpose.msra.mxu0 0.0
    %2381 = vmatprep.subr.mxu0 0.0
    %2382 = vmatpush1.xpose.msra.mxu0 0.0
    %2383 = vmatprep.subr.mxu0 0.0
    %2384 = vmatpush1.xpose.msra.mxu0 0.0
    %2385 = vmatprep.subr.mxu0 0.0
    %2386 = vmatpush1.xpose.msra.mxu0 0.0
    %2387 = vmatprep.subr.mxu0 0.0
    %2388 = vmatpush1.xpose.msra.mxu0 0.0
    %2389 = vmatprep.subr.mxu0 0.0
    %2390 = vmatpush1.xpose.msra.mxu0 0.0
    %2391 = vmatprep.subr.mxu0 0.0
    %2392 = vmatpush1.xpose.msra.mxu0 0.0
    %2393 = vmatprep.subr.mxu0 0.0
    %2394 = vmatpush1.xpose.msra.mxu0 0.0
    %2395 = vmatprep.subr.mxu0 0.0
    %2396 = vmatpush1.xpose.msra.mxu0 0.0
    %2397 = vmatprep.subr.mxu0 0.0
    %2398 = vmatpush1.xpose.msra.mxu0 0.0
    %2399 = vmatprep.subr.mxu0 0.0
    %2400 = vmatpush1.xpose.msra.mxu0 0.0
    %2401 = vmatprep.subr.mxu0 0.0
    %2402 = vmatpush1.xpose.msra.mxu0 0.0
    %2403 = vmatprep.subr.mxu0 0.0
    %2404 = vmatpush1.xpose.msra.mxu0 0.0
    %2405 = vmatprep.subr.mxu0 0.0
    %2406 = vmatpush1.xpose.msra.mxu0 0.0
    %2407 = vmatprep.subr.mxu0 0.0
    %2408 = vmatpush1.xpose.msra.mxu0 0.0
    %2409 = vmatprep.subr.mxu0 0.0
    %2410 = vmatpush1.xpose.msra.mxu0 0.0
    %2411 = vmatprep.subr.mxu0 0.0
    %2412 = vmatpush1.xpose.msra.mxu0 0.0
    %2413 = vmatprep.subr.mxu0 0.0
    %2414 = vmatpush1.xpose.msra.mxu0 0.0
    %2415 = vmatprep.mubr.f32.mxu0 0.0
    %2416 = vmatmul.mubr.f32.gmra.mrb[0].mxu0 %v2346
    %v2417 = vpop.f32.mrb[0].mxu0
    %v2418 = vadd.f32 0.0, %v2417
    %v2419 = vpop.f32.mrb[0].mxu0
    %2420 = vdwg.mxu0
    %2421 = vrot.lane.b32.xlu0 %v2245, 120
    %v2422 = vpop.permute.xlu0 %2421
    %2423 = vrot.lane.b32.xlu0 %v2324, 120
    %v2424 = vpop.permute.xlu0 %2423
    %v2425 = vsel %vm191, %v2422, 0
    %v2427 = vsel %vm191, %v2424, 0
    %2429 = vmatprep.subr.mxu0 0.0
    %2430 = vmatpush1.xpose.msra.mxu0 %v2427
    %2431 = vmatprep.subr.mxu0 0.0
    %2432 = vmatpush1.xpose.msra.mxu0 0.0
    %2433 = vmatprep.subr.mxu0 0.0
    %2434 = vmatpush1.xpose.msra.mxu0 0.0
    %2435 = vmatprep.subr.mxu0 0.0
    %2436 = vmatpush1.xpose.msra.mxu0 0.0
    %2437 = vmatprep.subr.mxu0 0.0
    %2438 = vmatpush1.xpose.msra.mxu0 0.0
    %2439 = vmatprep.subr.mxu0 0.0
    %2440 = vmatpush1.xpose.msra.mxu0 0.0
    %2441 = vmatprep.subr.mxu0 0.0
    %2442 = vmatpush1.xpose.msra.mxu0 0.0
    %2443 = vmatprep.subr.mxu0 0.0
    %2444 = vmatpush1.xpose.msra.mxu0 0.0
    %2445 = vmatprep.subr.mxu0 0.0
    %2446 = vmatpush1.xpose.msra.mxu0 0.0
    %2447 = vmatprep.subr.mxu0 0.0
    %2448 = vmatpush1.xpose.msra.mxu0 0.0
    %2449 = vmatprep.subr.mxu0 0.0
    %2450 = vmatpush1.xpose.msra.mxu0 0.0
    %2451 = vmatprep.subr.mxu0 0.0
    %2452 = vmatpush1.xpose.msra.mxu0 0.0
    %2453 = vmatprep.subr.mxu0 0.0
    %2454 = vmatpush1.xpose.msra.mxu0 0.0
    %2455 = vmatprep.subr.mxu0 0.0
    %2456 = vmatpush1.xpose.msra.mxu0 0.0
    %2457 = vmatprep.subr.mxu0 0.0
    %2458 = vmatpush1.xpose.msra.mxu0 0.0
    %2459 = vmatprep.subr.mxu0 0.0
    %2460 = vmatpush1.xpose.msra.mxu0 0.0
    %2461 = vmatprep.subr.mxu0 0.0
    %2462 = vmatpush1.xpose.msra.mxu0 0.0
    %2463 = vmatprep.subr.mxu0 0.0
    %2464 = vmatpush1.xpose.msra.mxu0 0.0
    %2465 = vmatprep.subr.mxu0 0.0
    %2466 = vmatpush1.xpose.msra.mxu0 0.0
    %2467 = vmatprep.subr.mxu0 0.0
    %2468 = vmatpush1.xpose.msra.mxu0 0.0
    %2469 = vmatprep.subr.mxu0 0.0
    %2470 = vmatpush1.xpose.msra.mxu0 0.0
    %2471 = vmatprep.subr.mxu0 0.0
    %2472 = vmatpush1.xpose.msra.mxu0 0.0
    %2473 = vmatprep.subr.mxu0 0.0
    %2474 = vmatpush1.xpose.msra.mxu0 0.0
    %2475 = vmatprep.subr.mxu0 0.0
    %2476 = vmatpush1.xpose.msra.mxu0 0.0
    %2477 = vmatprep.subr.mxu0 0.0
    %2478 = vmatpush1.xpose.msra.mxu0 0.0
    %2479 = vmatprep.subr.mxu0 0.0
    %2480 = vmatpush1.xpose.msra.mxu0 0.0
    %2481 = vmatprep.subr.mxu0 0.0
    %2482 = vmatpush1.xpose.msra.mxu0 0.0
    %2483 = vmatprep.subr.mxu0 0.0
    %2484 = vmatpush1.xpose.msra.mxu0 0.0
    %2485 = vmatprep.subr.mxu0 0.0
    %2486 = vmatpush1.xpose.msra.mxu0 0.0
    %2487 = vmatprep.subr.mxu0 0.0
    %2488 = vmatpush1.xpose.msra.mxu0 0.0
    %2489 = vmatprep.subr.mxu0 0.0
    %2490 = vmatpush1.xpose.msra.mxu0 0.0
    %2491 = vmatprep.subr.mxu0 0.0
    %2492 = vmatpush1.xpose.msra.mxu0 0.0
    %2493 = vmatprep.mubr.f32.mxu0 0.0
    %2494 = vmatmul.mubr.f32.gmra.mrb[0].mxu0 %v2425
    %v2495 = vpop.f32.mrb[0].mxu0
    %v2496 = vadd.f32 0.0, %v2495
    %v2497 = vpop.f32.mrb[0].mxu0
    %2498 = vdwg.mxu0
    %2499 = vrot.lane.b32.xlu0 %v2245, 112
    %v2500 = vpop.permute.xlu0 %2499
    %2501 = vrot.lane.b32.xlu0 %v2324, 112
    %v2502 = vpop.permute.xlu0 %2501
    %v2503 = vsel %vm191, %v2500, 0
    %v2505 = vsel %vm191, %v2502, 0
    %2507 = vmatprep.subr.mxu0 0.0
    %2508 = vmatpush1.xpose.msra.mxu0 %v2505
    %2509 = vmatprep.subr.mxu0 0.0
    %2510 = vmatpush1.xpose.msra.mxu0 0.0
    %2511 = vmatprep.subr.mxu0 0.0
    %2512 = vmatpush1.xpose.msra.mxu0 0.0
    %2513 = vmatprep.subr.mxu0 0.0
    %2514 = vmatpush1.xpose.msra.mxu0 0.0
    %2515 = vmatprep.subr.mxu0 0.0
    %2516 = vmatpush1.xpose.msra.mxu0 0.0
    %2517 = vmatprep.subr.mxu0 0.0
    %2518 = vmatpush1.xpose.msra.mxu0 0.0
    %2519 = vmatprep.subr.mxu0 0.0
    %2520 = vmatpush1.xpose.msra.mxu0 0.0
    %2521 = vmatprep.subr.mxu0 0.0
    %2522 = vmatpush1.xpose.msra.mxu0 0.0
    %2523 = vmatprep.subr.mxu0 0.0
    %2524 = vmatpush1.xpose.msra.mxu0 0.0
    %2525 = vmatprep.subr.mxu0 0.0
    %2526 = vmatpush1.xpose.msra.mxu0 0.0
    %2527 = vmatprep.subr.mxu0 0.0
    %2528 = vmatpush1.xpose.msra.mxu0 0.0
    %2529 = vmatprep.subr.mxu0 0.0
    %2530 = vmatpush1.xpose.msra.mxu0 0.0
    %2531 = vmatprep.subr.mxu0 0.0
    %2532 = vmatpush1.xpose.msra.mxu0 0.0
    %2533 = vmatprep.subr.mxu0 0.0
    %2534 = vmatpush1.xpose.msra.mxu0 0.0
    %2535 = vmatprep.subr.mxu0 0.0
    %2536 = vmatpush1.xpose.msra.mxu0 0.0
    %2537 = vmatprep.subr.mxu0 0.0
    %2538 = vmatpush1.xpose.msra.mxu0 0.0
    %2539 = vmatprep.subr.mxu0 0.0
    %2540 = vmatpush1.xpose.msra.mxu0 0.0
    %2541 = vmatprep.subr.mxu0 0.0
    %2542 = vmatpush1.xpose.msra.mxu0 0.0
    %2543 = vmatprep.subr.mxu0 0.0
    %2544 = vmatpush1.xpose.msra.mxu0 0.0
    %2545 = vmatprep.subr.mxu0 0.0
    %2546 = vmatpush1.xpose.msra.mxu0 0.0
    %2547 = vmatprep.subr.mxu0 0.0
    %2548 = vmatpush1.xpose.msra.mxu0 0.0
    %2549 = vmatprep.subr.mxu0 0.0
    %2550 = vmatpush1.xpose.msra.mxu0 0.0
    %2551 = vmatprep.subr.mxu0 0.0
    %2552 = vmatpush1.xpose.msra.mxu0 0.0
    %2553 = vmatprep.subr.mxu0 0.0
    %2554 = vmatpush1.xpose.msra.mxu0 0.0
    %2555 = vmatprep.subr.mxu0 0.0
    %2556 = vmatpush1.xpose.msra.mxu0 0.0
    %2557 = vmatprep.subr.mxu0 0.0
    %2558 = vmatpush1.xpose.msra.mxu0 0.0
    %2559 = vmatprep.subr.mxu0 0.0
    %2560 = vmatpush1.xpose.msra.mxu0 0.0
    %2561 = vmatprep.subr.mxu0 0.0
    %2562 = vmatpush1.xpose.msra.mxu0 0.0
    %2563 = vmatprep.subr.mxu0 0.0
    %2564 = vmatpush1.xpose.msra.mxu0 0.0
    %2565 = vmatprep.subr.mxu0 0.0
    %2566 = vmatpush1.xpose.msra.mxu0 0.0
    %2567 = vmatprep.subr.mxu0 0.0
    %2568 = vmatpush1.xpose.msra.mxu0 0.0
    %2569 = vmatprep.subr.mxu0 0.0
    %2570 = vmatpush1.xpose.msra.mxu0 0.0
    %2571 = vmatprep.mubr.f32.mxu0 0.0
    %2572 = vmatmul.mubr.f32.gmra.mrb[0].mxu0 %v2503
    %v2573 = vpop.f32.mrb[0].mxu0
    %v2574 = vadd.f32 0.0, %v2573
    %v2575 = vpop.f32.mrb[0].mxu0
    %2576 = vdwg.mxu0
    %2577 = vrot.lane.b32.xlu0 %v2245, 104
    %v2578 = vpop.permute.xlu0 %2577
    %2579 = vrot.lane.b32.xlu0 %v2324, 104
    %v2580 = vpop.permute.xlu0 %2579
    %v2581 = vsel %vm191, %v2578, 0
    %v2583 = vsel %vm191, %v2580, 0
    %2585 = vmatprep.subr.mxu0 0.0
    %2586 = vmatpush1.xpose.msra.mxu0 %v2583
    %2587 = vmatprep.subr.mxu0 0.0
    %2588 = vmatpush1.xpose.msra.mxu0 0.0
    %2589 = vmatprep.subr.mxu0 0.0
    %2590 = vmatpush1.xpose.msra.mxu0 0.0
    %2591 = vmatprep.subr.mxu0 0.0
    %2592 = vmatpush1.xpose.msra.mxu0 0.0
    %2593 = vmatprep.subr.mxu0 0.0
    %2594 = vmatpush1.xpose.msra.mxu0 0.0
    %2595 = vmatprep.subr.mxu0 0.0
    %2596 = vmatpush1.xpose.msra.mxu0 0.0
    %2597 = vmatprep.subr.mxu0 0.0
    %2598 = vmatpush1.xpose.msra.mxu0 0.0
    %2599 = vmatprep.subr.mxu0 0.0
    %2600 = vmatpush1.xpose.msra.mxu0 0.0
    %2601 = vmatprep.subr.mxu0 0.0
    %2602 = vmatpush1.xpose.msra.mxu0 0.0
    %2603 = vmatprep.subr.mxu0 0.0
    %2604 = vmatpush1.xpose.msra.mxu0 0.0
    %2605 = vmatprep.subr.mxu0 0.0
    %2606 = vmatpush1.xpose.msra.mxu0 0.0
    %2607 = vmatprep.subr.mxu0 0.0
    %2608 = vmatpush1.xpose.msra.mxu0 0.0
    %2609 = vmatprep.subr.mxu0 0.0
    %2610 = vmatpush1.xpose.msra.mxu0 0.0
    %2611 = vmatprep.subr.mxu0 0.0
    %2612 = vmatpush1.xpose.msra.mxu0 0.0
    %2613 = vmatprep.subr.mxu0 0.0
    %2614 = vmatpush1.xpose.msra.mxu0 0.0
    %2615 = vmatprep.subr.mxu0 0.0
    %2616 = vmatpush1.xpose.msra.mxu0 0.0
    %2617 = vmatprep.subr.mxu0 0.0
    %2618 = vmatpush1.xpose.msra.mxu0 0.0
    %2619 = vmatprep.subr.mxu0 0.0
    %2620 = vmatpush1.xpose.msra.mxu0 0.0
    %2621 = vmatprep.subr.mxu0 0.0
    %2622 = vmatpush1.xpose.msra.mxu0 0.0
    %2623 = vmatprep.subr.mxu0 0.0
    %2624 = vmatpush1.xpose.msra.mxu0 0.0
    %2625 = vmatprep.subr.mxu0 0.0
    %2626 = vmatpush1.xpose.msra.mxu0 0.0
    %2627 = vmatprep.subr.mxu0 0.0
    %2628 = vmatpush1.xpose.msra.mxu0 0.0
    %2629 = vmatprep.subr.mxu0 0.0
    %2630 = vmatpush1.xpose.msra.mxu0 0.0
    %2631 = vmatprep.subr.mxu0 0.0
    %2632 = vmatpush1.xpose.msra.mxu0 0.0
    %2633 = vmatprep.subr.mxu0 0.0
    %2634 = vmatpush1.xpose.msra.mxu0 0.0
    %2635 = vmatprep.subr.mxu0 0.0
    %2636 = vmatpush1.xpose.msra.mxu0 0.0
    %2637 = vmatprep.subr.mxu0 0.0
    %2638 = vmatpush1.xpose.msra.mxu0 0.0
    %2639 = vmatprep.subr.mxu0 0.0
    %2640 = vmatpush1.xpose.msra.mxu0 0.0
    %2641 = vmatprep.subr.mxu0 0.0
    %2642 = vmatpush1.xpose.msra.mxu0 0.0
    %2643 = vmatprep.subr.mxu0 0.0
    %2644 = vmatpush1.xpose.msra.mxu0 0.0
    %2645 = vmatprep.subr.mxu0 0.0
    %2646 = vmatpush1.xpose.msra.mxu0 0.0
    %2647 = vmatprep.subr.mxu0 0.0
    %2648 = vmatpush1.xpose.msra.mxu0 0.0
    %2649 = vmatprep.mubr.f32.mxu0 0.0
    %2650 = vmatmul.mubr.f32.gmra.mrb[0].mxu0 %v2581
    %v2651 = vpop.f32.mrb[0].mxu0
    %v2652 = vadd.f32 0.0, %v2651
    %v2653 = vpop.f32.mrb[0].mxu0
    %2654 = vdwg.mxu0
    %v2656 = vsel %vm191, %v2246, 0
    %v2659 = vsel %vm191, %v2329, 0
    %2661 = vmatprep.subr.mxu0 0.0
    %2662 = vmatpush1.xpose.msra.mxu0 %v2659
    %2663 = vmatprep.subr.mxu0 0.0
    %2664 = vmatpush1.xpose.msra.mxu0 0.0
    %2665 = vmatprep.subr.mxu0 0.0
    %2666 = vmatpush1.xpose.msra.mxu0 0.0
    %2667 = vmatprep.subr.mxu0 0.0
    %2668 = vmatpush1.xpose.msra.mxu0 0.0
    %2669 = vmatprep.subr.mxu0 0.0
    %2670 = vmatpush1.xpose.msra.mxu0 0.0
    %2671 = vmatprep.subr.mxu0 0.0
    %2672 = vmatpush1.xpose.msra.mxu0 0.0
    %2673 = vmatprep.subr.mxu0 0.0
    %2674 = vmatpush1.xpose.msra.mxu0 0.0
    %2675 = vmatprep.subr.mxu0 0.0
    %2676 = vmatpush1.xpose.msra.mxu0 0.0
    %2677 = vmatprep.subr.mxu0 0.0
    %2678 = vmatpush1.xpose.msra.mxu0 0.0
    %2679 = vmatprep.subr.mxu0 0.0
    %2680 = vmatpush1.xpose.msra.mxu0 0.0
    %2681 = vmatprep.subr.mxu0 0.0
    %2682 = vmatpush1.xpose.msra.mxu0 0.0
    %2683 = vmatprep.subr.mxu0 0.0
    %2684 = vmatpush1.xpose.msra.mxu0 0.0
    %2685 = vmatprep.subr.mxu0 0.0
    %2686 = vmatpush1.xpose.msra.mxu0 0.0
    %2687 = vmatprep.subr.mxu0 0.0
    %2688 = vmatpush1.xpose.msra.mxu0 0.0
    %2689 = vmatprep.subr.mxu0 0.0
    %2690 = vmatpush1.xpose.msra.mxu0 0.0
    %2691 = vmatprep.subr.mxu0 0.0
    %2692 = vmatpush1.xpose.msra.mxu0 0.0
    %2693 = vmatprep.subr.mxu0 0.0
    %2694 = vmatpush1.xpose.msra.mxu0 0.0
    %2695 = vmatprep.subr.mxu0 0.0
    %2696 = vmatpush1.xpose.msra.mxu0 0.0
    %2697 = vmatprep.subr.mxu0 0.0
    %2698 = vmatpush1.xpose.msra.mxu0 0.0
    %2699 = vmatprep.subr.mxu0 0.0
    %2700 = vmatpush1.xpose.msra.mxu0 0.0
    %2701 = vmatprep.subr.mxu0 0.0
    %2702 = vmatpush1.xpose.msra.mxu0 0.0
    %2703 = vmatprep.subr.mxu0 0.0
    %2704 = vmatpush1.xpose.msra.mxu0 0.0
    %2705 = vmatprep.subr.mxu0 0.0
    %2706 = vmatpush1.xpose.msra.mxu0 0.0
    %2707 = vmatprep.subr.mxu0 0.0
    %2708 = vmatpush1.xpose.msra.mxu0 0.0
    %2709 = vmatprep.subr.mxu0 0.0
    %2710 = vmatpush1.xpose.msra.mxu0 0.0
    %2711 = vmatprep.subr.mxu0 0.0
    %2712 = vmatpush1.xpose.msra.mxu0 0.0
    %2713 = vmatprep.subr.mxu0 0.0
    %2714 = vmatpush1.xpose.msra.mxu0 0.0
    %2715 = vmatprep.subr.mxu0 0.0
    %2716 = vmatpush1.xpose.msra.mxu0 0.0
    %2717 = vmatprep.subr.mxu0 0.0
    %2718 = vmatpush1.xpose.msra.mxu0 0.0
    %2719 = vmatprep.subr.mxu0 0.0
    %2720 = vmatpush1.xpose.msra.mxu0 0.0
    %2721 = vmatprep.subr.mxu0 0.0
    %2722 = vmatpush1.xpose.msra.mxu0 0.0
    %2723 = vmatprep.subr.mxu0 0.0
    %2724 = vmatpush1.xpose.msra.mxu0 0.0
    %2725 = vmatprep.mubr.f32.mxu0 0.0
    %2726 = vmatmul.mubr.f32.gmra.mrb[0].mxu0 %v2656
    %v2727 = vpop.f32.mrb[0].mxu0
    %v2728 = vadd.f32 0.0, %v2727
    %v2729 = vpop.f32.mrb[0].mxu0
    %2730 = vdwg.mxu0
    %2731 = vrot.lane.b32.xlu0 %v2246, 120
    %v2732 = vpop.permute.xlu0 %2731
    %2733 = vrot.lane.b32.xlu0 %v2329, 120
    %v2734 = vpop.permute.xlu0 %2733
    %v2735 = vsel %vm191, %v2732, 0
    %v2737 = vsel %vm191, %v2734, 0
    %2739 = vmatprep.subr.mxu0 0.0
    %2740 = vmatpush1.xpose.msra.mxu0 %v2737
    %2741 = vmatprep.subr.mxu0 0.0
    %2742 = vmatpush1.xpose.msra.mxu0 0.0
    %2743 = vmatprep.subr.mxu0 0.0
    %2744 = vmatpush1.xpose.msra.mxu0 0.0
    %2745 = vmatprep.subr.mxu0 0.0
    %2746 = vmatpush1.xpose.msra.mxu0 0.0
    %2747 = vmatprep.subr.mxu0 0.0
    %2748 = vmatpush1.xpose.msra.mxu0 0.0
    %2749 = vmatprep.subr.mxu0 0.0
    %2750 = vmatpush1.xpose.msra.mxu0 0.0
    %2751 = vmatprep.subr.mxu0 0.0
    %2752 = vmatpush1.xpose.msra.mxu0 0.0
    %2753 = vmatprep.subr.mxu0 0.0
    %2754 = vmatpush1.xpose.msra.mxu0 0.0
    %2755 = vmatprep.subr.mxu0 0.0
    %2756 = vmatpush1.xpose.msra.mxu0 0.0
    %2757 = vmatprep.subr.mxu0 0.0
    %2758 = vmatpush1.xpose.msra.mxu0 0.0
    %2759 = vmatprep.subr.mxu0 0.0
    %2760 = vmatpush1.xpose.msra.mxu0 0.0
    %2761 = vmatprep.subr.mxu0 0.0
    %2762 = vmatpush1.xpose.msra.mxu0 0.0
    %2763 = vmatprep.subr.mxu0 0.0
    %2764 = vmatpush1.xpose.msra.mxu0 0.0
    %2765 = vmatprep.subr.mxu0 0.0
    %2766 = vmatpush1.xpose.msra.mxu0 0.0
    %2767 = vmatprep.subr.mxu0 0.0
    %2768 = vmatpush1.xpose.msra.mxu0 0.0
    %2769 = vmatprep.subr.mxu0 0.0
    %2770 = vmatpush1.xpose.msra.mxu0 0.0
    %2771 = vmatprep.subr.mxu0 0.0
    %2772 = vmatpush1.xpose.msra.mxu0 0.0
    %2773 = vmatprep.subr.mxu0 0.0
    %2774 = vmatpush1.xpose.msra.mxu0 0.0
    %2775 = vmatprep.subr.mxu0 0.0
    %2776 = vmatpush1.xpose.msra.mxu0 0.0
    %2777 = vmatprep.subr.mxu0 0.0
    %2778 = vmatpush1.xpose.msra.mxu0 0.0
    %2779 = vmatprep.subr.mxu0 0.0
    %2780 = vmatpush1.xpose.msra.mxu0 0.0
    %2781 = vmatprep.subr.mxu0 0.0
    %2782 = vmatpush1.xpose.msra.mxu0 0.0
    %2783 = vmatprep.subr.mxu0 0.0
    %2784 = vmatpush1.xpose.msra.mxu0 0.0
    %2785 = vmatprep.subr.mxu0 0.0
    %2786 = vmatpush1.xpose.msra.mxu0 0.0
    %2787 = vmatprep.subr.mxu0 0.0
    %2788 = vmatpush1.xpose.msra.mxu0 0.0
    %2789 = vmatprep.subr.mxu0 0.0
    %2790 = vmatpush1.xpose.msra.mxu0 0.0
    %2791 = vmatprep.subr.mxu0 0.0
    %2792 = vmatpush1.xpose.msra.mxu0 0.0
    %2793 = vmatprep.subr.mxu0 0.0
    %2794 = vmatpush1.xpose.msra.mxu0 0.0
    %2795 = vmatprep.subr.mxu0 0.0
    %2796 = vmatpush1.xpose.msra.mxu0 0.0
    %2797 = vmatprep.subr.mxu0 0.0
    %2798 = vmatpush1.xpose.msra.mxu0 0.0
    %2799 = vmatprep.subr.mxu0 0.0
    %2800 = vmatpush1.xpose.msra.mxu0 0.0
    %2801 = vmatprep.subr.mxu0 0.0
    %2802 = vmatpush1.xpose.msra.mxu0 0.0
    %2803 = vmatprep.mubr.f32.mxu0 0.0
    %2804 = vmatmul.mubr.f32.gmra.mrb[0].mxu0 %v2735
    %v2805 = vpop.f32.mrb[0].mxu0
    %v2806 = vadd.f32 0.0, %v2805
    %v2807 = vpop.f32.mrb[0].mxu0
    %2808 = vdwg.mxu0
    %2809 = vrot.lane.b32.xlu0 %v2246, 112
    %v2810 = vpop.permute.xlu0 %2809
    %2811 = vrot.lane.b32.xlu0 %v2329, 112
    %v2812 = vpop.permute.xlu0 %2811
    %v2813 = vsel %vm191, %v2810, 0
    %v2815 = vsel %vm191, %v2812, 0
    %2817 = vmatprep.subr.mxu0 0.0
    %2818 = vmatpush1.xpose.msra.mxu0 %v2815
    %2819 = vmatprep.subr.mxu0 0.0
    %2820 = vmatpush1.xpose.msra.mxu0 0.0
    %2821 = vmatprep.subr.mxu0 0.0
    %2822 = vmatpush1.xpose.msra.mxu0 0.0
    %2823 = vmatprep.subr.mxu0 0.0
    %2824 = vmatpush1.xpose.msra.mxu0 0.0
    %2825 = vmatprep.subr.mxu0 0.0
    %2826 = vmatpush1.xpose.msra.mxu0 0.0
    %2827 = vmatprep.subr.mxu0 0.0
    %2828 = vmatpush1.xpose.msra.mxu0 0.0
    %2829 = vmatprep.subr.mxu0 0.0
    %2830 = vmatpush1.xpose.msra.mxu0 0.0
    %2831 = vmatprep.subr.mxu0 0.0
    %2832 = vmatpush1.xpose.msra.mxu0 0.0
    %2833 = vmatprep.subr.mxu0 0.0
    %2834 = vmatpush1.xpose.msra.mxu0 0.0
    %2835 = vmatprep.subr.mxu0 0.0
    %2836 = vmatpush1.xpose.msra.mxu0 0.0
    %2837 = vmatprep.subr.mxu0 0.0
    %2838 = vmatpush1.xpose.msra.mxu0 0.0
    %2839 = vmatprep.subr.mxu0 0.0
    %2840 = vmatpush1.xpose.msra.mxu0 0.0
    %2841 = vmatprep.subr.mxu0 0.0
    %2842 = vmatpush1.xpose.msra.mxu0 0.0
    %2843 = vmatprep.subr.mxu0 0.0
    %2844 = vmatpush1.xpose.msra.mxu0 0.0
    %2845 = vmatprep.subr.mxu0 0.0
    %2846 = vmatpush1.xpose.msra.mxu0 0.0
    %2847 = vmatprep.subr.mxu0 0.0
    %2848 = vmatpush1.xpose.msra.mxu0 0.0
    %2849 = vmatprep.subr.mxu0 0.0
    %2850 = vmatpush1.xpose.msra.mxu0 0.0
    %2851 = vmatprep.subr.mxu0 0.0
    %2852 = vmatpush1.xpose.msra.mxu0 0.0
    %2853 = vmatprep.subr.mxu0 0.0
    %2854 = vmatpush1.xpose.msra.mxu0 0.0
    %2855 = vmatprep.subr.mxu0 0.0
    %2856 = vmatpush1.xpose.msra.mxu0 0.0
    %2857 = vmatprep.subr.mxu0 0.0
    %2858 = vmatpush1.xpose.msra.mxu0 0.0
    %2859 = vmatprep.subr.mxu0 0.0
    %2860 = vmatpush1.xpose.msra.mxu0 0.0
    %2861 = vmatprep.subr.mxu0 0.0
    %2862 = vmatpush1.xpose.msra.mxu0 0.0
    %2863 = vmatprep.subr.mxu0 0.0
    %2864 = vmatpush1.xpose.msra.mxu0 0.0
    %2865 = vmatprep.subr.mxu0 0.0
    %2866 = vmatpush1.xpose.msra.mxu0 0.0
    %2867 = vmatprep.subr.mxu0 0.0
    %2868 = vmatpush1.xpose.msra.mxu0 0.0
    %2869 = vmatprep.subr.mxu0 0.0
    %2870 = vmatpush1.xpose.msra.mxu0 0.0
    %2871 = vmatprep.subr.mxu0 0.0
    %2872 = vmatpush1.xpose.msra.mxu0 0.0
    %2873 = vmatprep.subr.mxu0 0.0
    %2874 = vmatpush1.xpose.msra.mxu0 0.0
    %2875 = vmatprep.subr.mxu0 0.0
    %2876 = vmatpush1.xpose.msra.mxu0 0.0
    %2877 = vmatprep.subr.mxu0 0.0
    %2878 = vmatpush1.xpose.msra.mxu0 0.0
    %2879 = vmatprep.subr.mxu0 0.0
    %2880 = vmatpush1.xpose.msra.mxu0 0.0
    %2881 = vmatprep.mubr.f32.mxu0 0.0
    %2882 = vmatmul.mubr.f32.gmra.mrb[0].mxu0 %v2813
    %v2883 = vpop.f32.mrb[0].mxu0
    %v2884 = vadd.f32 0.0, %v2883
    %v2885 = vpop.f32.mrb[0].mxu0
    %2886 = vdwg.mxu0
    %2887 = vrot.lane.b32.xlu0 %v2246, 104
    %v2888 = vpop.permute.xlu0 %2887
    %2889 = vrot.lane.b32.xlu0 %v2329, 104
    %v2890 = vpop.permute.xlu0 %2889
    %v2891 = vsel %vm191, %v2888, 0
    %v2893 = vsel %vm191, %v2890, 0
    %2895 = vmatprep.subr.mxu0 0.0
    %2896 = vmatpush1.xpose.msra.mxu0 %v2893
    %2897 = vmatprep.subr.mxu0 0.0
    %2898 = vmatpush1.xpose.msra.mxu0 0.0
    %2899 = vmatprep.subr.mxu0 0.0
    %2900 = vmatpush1.xpose.msra.mxu0 0.0
    %2901 = vmatprep.subr.mxu0 0.0
    %2902 = vmatpush1.xpose.msra.mxu0 0.0
    %2903 = vmatprep.subr.mxu0 0.0
    %2904 = vmatpush1.xpose.msra.mxu0 0.0
    %2905 = vmatprep.subr.mxu0 0.0
    %2906 = vmatpush1.xpose.msra.mxu0 0.0
    %2907 = vmatprep.subr.mxu0 0.0
    %2908 = vmatpush1.xpose.msra.mxu0 0.0
    %2909 = vmatprep.subr.mxu0 0.0
    %2910 = vmatpush1.xpose.msra.mxu0 0.0
    %2911 = vmatprep.subr.mxu0 0.0
    %2912 = vmatpush1.xpose.msra.mxu0 0.0
    %2913 = vmatprep.subr.mxu0 0.0
    %2914 = vmatpush1.xpose.msra.mxu0 0.0
    %2915 = vmatprep.subr.mxu0 0.0
    %2916 = vmatpush1.xpose.msra.mxu0 0.0
    %2917 = vmatprep.subr.mxu0 0.0
    %2918 = vmatpush1.xpose.msra.mxu0 0.0
    %2919 = vmatprep.subr.mxu0 0.0
    %2920 = vmatpush1.xpose.msra.mxu0 0.0
    %2921 = vmatprep.subr.mxu0 0.0
    %2922 = vmatpush1.xpose.msra.mxu0 0.0
    %2923 = vmatprep.subr.mxu0 0.0
    %2924 = vmatpush1.xpose.msra.mxu0 0.0
    %2925 = vmatprep.subr.mxu0 0.0
    %2926 = vmatpush1.xpose.msra.mxu0 0.0
    %2927 = vmatprep.subr.mxu0 0.0
    %2928 = vmatpush1.xpose.msra.mxu0 0.0
    %2929 = vmatprep.subr.mxu0 0.0
    %2930 = vmatpush1.xpose.msra.mxu0 0.0
    %2931 = vmatprep.subr.mxu0 0.0
    %2932 = vmatpush1.xpose.msra.mxu0 0.0
    %2933 = vmatprep.subr.mxu0 0.0
    %2934 = vmatpush1.xpose.msra.mxu0 0.0
    %2935 = vmatprep.subr.mxu0 0.0
    %2936 = vmatpush1.xpose.msra.mxu0 0.0
    %2937 = vmatprep.subr.mxu0 0.0
    %2938 = vmatpush1.xpose.msra.mxu0 0.0
    %2939 = vmatprep.subr.mxu0 0.0
    %2940 = vmatpush1.xpose.msra.mxu0 0.0
    %2941 = vmatprep.subr.mxu0 0.0
    %2942 = vmatpush1.xpose.msra.mxu0 0.0
    %2943 = vmatprep.subr.mxu0 0.0
    %2944 = vmatpush1.xpose.msra.mxu0 0.0
    %2945 = vmatprep.subr.mxu0 0.0
    %2946 = vmatpush1.xpose.msra.mxu0 0.0
    %2947 = vmatprep.subr.mxu0 0.0
    %2948 = vmatpush1.xpose.msra.mxu0 0.0
    %2949 = vmatprep.subr.mxu0 0.0
    %2950 = vmatpush1.xpose.msra.mxu0 0.0
    %2951 = vmatprep.subr.mxu0 0.0
    %2952 = vmatpush1.xpose.msra.mxu0 0.0
    %2953 = vmatprep.subr.mxu0 0.0
    %2954 = vmatpush1.xpose.msra.mxu0 0.0
    %2955 = vmatprep.subr.mxu0 0.0
    %2956 = vmatpush1.xpose.msra.mxu0 0.0
    %2957 = vmatprep.subr.mxu0 0.0
    %2958 = vmatpush1.xpose.msra.mxu0 0.0
    %2959 = vmatprep.mubr.f32.mxu0 0.0
    %2960 = vmatmul.mubr.f32.gmra.mrb[0].mxu0 %v2891
    %v2961 = vpop.f32.mrb[0].mxu0
    %v2962 = vadd.f32 0.0, %v2961
    %v2963 = vpop.f32.mrb[0].mxu0
    %2964 = vdwg.mxu0
    %v2965 = vadd.f32 %v2418, %v2337
    %v2966 = vadd.f32 %v2496, %v2338
    %v2967 = vadd.f32 %v2574, %v2339
    %v2968 = vadd.f32 %v2652, %v2340
    %v2969 = vadd.f32 %v2728, %v2341
    %v2970 = vadd.f32 %v2806, %v2342
    %v2971 = vadd.f32 %v2884, %v2343
    %v2972 = vadd.f32 %v2962, %v2344
    %v2973 = vsel %vm191, %v2965, -inf
    %2974 = vmax.xlane.f32.xlu0 %v2973
    %v2975 = vpop.xlane.xlu0 %2974
    %v2976 = vsel %vm191, %v2966, -inf
    %2977 = vmax.xlane.f32.xlu0 %v2976
    %v2978 = vpop.xlane.xlu0 %2977
    %v2979 = vsel %vm191, %v2967, -inf
    %2980 = vmax.xlane.f32.xlu0 %v2979
    %v2981 = vpop.xlane.xlu0 %2980
    %v2982 = vsel %vm191, %v2968, -inf
    %2983 = vmax.xlane.f32.xlu0 %v2982
    %v2984 = vpop.xlane.xlu0 %2983
    %v2985 = vsel %vm191, %v2969, -inf
    %2986 = vmax.xlane.f32.xlu0 %v2985
    %v2987 = vpop.xlane.xlu0 %2986
    %v2988 = vsel %vm191, %v2970, -inf
    %2989 = vmax.xlane.f32.xlu0 %v2988
    %v2990 = vpop.xlane.xlu0 %2989
    %v2991 = vsel %vm191, %v2971, -inf
    %2992 = vmax.xlane.f32.xlu0 %v2991
    %v2993 = vpop.xlane.xlu0 %2992
    %v2994 = vsel %vm191, %v2972, -inf
    %2995 = vmax.xlane.f32.xlu0 %v2994
    %v2996 = vpop.xlane.xlu0 %2995
    %v2997 = vsub.f32 %v2965, %v2975
    %v2998 = vsub.f32 %v2966, %v2978
    %v2999 = vsub.f32 %v2967, %v2981
    %v3000 = vsub.f32 %v2968, %v2984
    %v3001 = vsub.f32 %v2969, %v2987
    %v3002 = vsub.f32 %v2970, %v2990
    %v3003 = vsub.f32 %v2971, %v2993
    %v3004 = vsub.f32 %v2972, %v2996
    %v3005 = vmul.f32 %v2997, 1.442695
    %v3006 = vpow.pop %v3005
    %v3007 = vmul.f32 %v2998, 1.442695
    %v3008 = vpow.pop %v3007
    %v3009 = vmul.f32 %v2999, 1.442695
    %v3010 = vpow.pop %v3009
    %v3011 = vmul.f32 %v3000, 1.442695
    %v3012 = vpow.pop %v3011
    %v3013 = vmul.f32 %v3001, 1.442695
    %v3014 = vpow.pop %v3013
    %v3015 = vmul.f32 %v3002, 1.442695
    %v3016 = vpow.pop %v3015
    %v3017 = vmul.f32 %v3003, 1.442695
    %v3018 = vpow.pop %v3017
    %v3019 = vmul.f32 %v3004, 1.442695
    %v3020 = vpow.pop %v3019
    %v3021 = vsel %vm191, %v3006, 0.0
    %3022 = vadd.xlane.f32.xlu0 %v3021
    %v3023 = vpop.xlane.xlu0 %3022
    %v3024 = vsel %vm191, %v3008, 0.0
    %3025 = vadd.xlane.f32.xlu0 %v3024
    %v3026 = vpop.xlane.xlu0 %3025
    %v3027 = vsel %vm191, %v3010, 0.0
    %3028 = vadd.xlane.f32.xlu0 %v3027
    %v3029 = vpop.xlane.xlu0 %3028
    %v3030 = vsel %vm191, %v3012, 0.0
    %3031 = vadd.xlane.f32.xlu0 %v3030
    %v3032 = vpop.xlane.xlu0 %3031
    %v3033 = vsel %vm191, %v3014, 0.0
    %3034 = vadd.xlane.f32.xlu0 %v3033
    %v3035 = vpop.xlane.xlu0 %3034
    %v3036 = vsel %vm191, %v3016, 0.0
    %3037 = vadd.xlane.f32.xlu0 %v3036
    %v3038 = vpop.xlane.xlu0 %3037
    %v3039 = vsel %vm191, %v3018, 0.0
    %3040 = vadd.xlane.f32.xlu0 %v3039
    %v3041 = vpop.xlane.xlu0 %3040
    %v3042 = vsel %vm191, %v3020, 0.0
    %3043 = vadd.xlane.f32.xlu0 %v3042
    %v3044 = vpop.xlane.xlu0 %3043
    %v3045 = vrcp.pop %v3023
    %v3046 = vrcp.pop %v3026
    %v3047 = vrcp.pop %v3029
    %v3048 = vrcp.pop %v3032
    %v3049 = vrcp.pop %v3035
    %v3050 = vrcp.pop %v3038
    %v3051 = vrcp.pop %v3041
    %v3052 = vrcp.pop %v3044
    %v3053 = vmul.f32 %v3006, %v3045
    %v3054 = vmul.f32 %v3008, %v3046
    %v3055 = vmul.f32 %v3010, %v3047
    %v3056 = vmul.f32 %v3012, %v3048
    %v3057 = vmul.f32 %v3014, %v3049
    %v3058 = vmul.f32 %v3016, %v3050
    %v3059 = vmul.f32 %v3018, %v3051
    %v3060 = vmul.f32 %v3020, %v3052
    %3061 = vrot.lane.b32.xlu0 %v2324, 96
    %v3062 = vpop.permute.xlu0 %3061
    %v3065 = vsel %vm191, %v3053, 0
    %3067 = vmatprep.subr.mxu0 0.0
    %3068 = vmatpush1.msra.mxu0 %v3062
    %3069 = vmatprep.subr.mxu0 0.0
    %3070 = vmatpush1.msra.mxu0 0.0
    %3071 = vmatprep.subr.mxu0 0.0
    %3072 = vmatpush1.msra.mxu0 0.0
    %3073 = vmatprep.subr.mxu0 0.0
    %3074 = vmatpush1.msra.mxu0 0.0
    %3075 = vmatprep.subr.mxu0 0.0
    %3076 = vmatpush1.msra.mxu0 0.0
    %3077 = vmatprep.subr.mxu0 0.0
    %3078 = vmatpush1.msra.mxu0 0.0
    %3079 = vmatprep.subr.mxu0 0.0
    %3080 = vmatpush1.msra.mxu0 0.0
    %3081 = vmatprep.subr.mxu0 0.0
    %3082 = vmatpush1.msra.mxu0 0.0
    %3083 = vmatprep.subr.mxu0 0.0
    %3084 = vmatpush1.msra.mxu0 0.0
    %3085 = vmatprep.subr.mxu0 0.0
    %3086 = vmatpush1.msra.mxu0 0.0
    %3087 = vmatprep.subr.mxu0 0.0
    %3088 = vmatpush1.msra.mxu0 0.0
    %3089 = vmatprep.subr.mxu0 0.0
    %3090 = vmatpush1.msra.mxu0 0.0
    %3091 = vmatprep.subr.mxu0 0.0
    %3092 = vmatpush1.msra.mxu0 0.0
    %3093 = vmatprep.subr.mxu0 0.0
    %3094 = vmatpush1.msra.mxu0 0.0
    %3095 = vmatprep.subr.mxu0 0.0
    %3096 = vmatpush1.msra.mxu0 0.0
    %3097 = vmatprep.subr.mxu0 0.0
    %3098 = vmatpush1.msra.mxu0 0.0
    %3099 = vmatprep.subr.mxu0 0.0
    %3100 = vmatpush1.msra.mxu0 0.0
    %3101 = vmatprep.subr.mxu0 0.0
    %3102 = vmatpush1.msra.mxu0 0.0
    %3103 = vmatprep.subr.mxu0 0.0
    %3104 = vmatpush1.msra.mxu0 0.0
    %3105 = vmatprep.subr.mxu0 0.0
    %3106 = vmatpush1.msra.mxu0 0.0
    %3107 = vmatprep.subr.mxu0 0.0
    %3108 = vmatpush1.msra.mxu0 0.0
    %3109 = vmatprep.subr.mxu0 0.0
    %3110 = vmatpush1.msra.mxu0 0.0
    %3111 = vmatprep.subr.mxu0 0.0
    %3112 = vmatpush1.msra.mxu0 0.0
    %3113 = vmatprep.subr.mxu0 0.0
    %3114 = vmatpush1.msra.mxu0 0.0
    %3115 = vmatprep.subr.mxu0 0.0
    %3116 = vmatpush1.msra.mxu0 0.0
    %3117 = vmatprep.subr.mxu0 0.0
    %3118 = vmatpush1.msra.mxu0 0.0
    %3119 = vmatprep.subr.mxu0 0.0
    %3120 = vmatpush1.msra.mxu0 0.0
    %3121 = vmatprep.subr.mxu0 0.0
    %3122 = vmatpush1.msra.mxu0 0.0
    %3123 = vmatprep.subr.mxu0 0.0
    %3124 = vmatpush1.msra.mxu0 0.0
    %3125 = vmatprep.subr.mxu0 0.0
    %3126 = vmatpush1.msra.mxu0 0.0
    %3127 = vmatprep.subr.mxu0 0.0
    %3128 = vmatpush1.msra.mxu0 0.0
    %3129 = vmatprep.subr.mxu0 0.0
    %3130 = vmatpush1.msra.mxu0 0.0
    %3131 = vmatprep.mubr.f32.mxu0 0.0
    %3132 = vmatmul.mubr.f32.gmra.mrb[0].mxu0 %v3065
    %v3133 = vpop.f32.mrb[0].mxu0
    %v3134 = vadd.f32 0.0, %v3133
    %v3135 = vpop.f32.mrb[0].mxu0
    %3136 = vdwg.mxu0
    %3137 = vrot.lane.b32.xlu0 %v2324, 88
    %v3138 = vpop.permute.xlu0 %3137
    %v3141 = vsel %vm191, %v3054, 0
    %3143 = vmatprep.subr.mxu0 0.0
    %3144 = vmatpush1.msra.mxu0 %v3138
    %3145 = vmatprep.subr.mxu0 0.0
    %3146 = vmatpush1.msra.mxu0 0.0
    %3147 = vmatprep.subr.mxu0 0.0
    %3148 = vmatpush1.msra.mxu0 0.0
    %3149 = vmatprep.subr.mxu0 0.0
    %3150 = vmatpush1.msra.mxu0 0.0
    %3151 = vmatprep.subr.mxu0 0.0
    %3152 = vmatpush1.msra.mxu0 0.0
    %3153 = vmatprep.subr.mxu0 0.0
    %3154 = vmatpush1.msra.mxu0 0.0
    %3155 = vmatprep.subr.mxu0 0.0
    %3156 = vmatpush1.msra.mxu0 0.0
    %3157 = vmatprep.subr.mxu0 0.0
    %3158 = vmatpush1.msra.mxu0 0.0
    %3159 = vmatprep.subr.mxu0 0.0
    %3160 = vmatpush1.msra.mxu0 0.0
    %3161 = vmatprep.subr.mxu0 0.0
    %3162 = vmatpush1.msra.mxu0 0.0
    %3163 = vmatprep.subr.mxu0 0.0
    %3164 = vmatpush1.msra.mxu0 0.0
    %3165 = vmatprep.subr.mxu0 0.0
    %3166 = vmatpush1.msra.mxu0 0.0
    %3167 = vmatprep.subr.mxu0 0.0
    %3168 = vmatpush1.msra.mxu0 0.0
    %3169 = vmatprep.subr.mxu0 0.0
    %3170 = vmatpush1.msra.mxu0 0.0
    %3171 = vmatprep.subr.mxu0 0.0
    %3172 = vmatpush1.msra.mxu0 0.0
    %3173 = vmatprep.subr.mxu0 0.0
    %3174 = vmatpush1.msra.mxu0 0.0
    %3175 = vmatprep.subr.mxu0 0.0
    %3176 = vmatpush1.msra.mxu0 0.0
    %3177 = vmatprep.subr.mxu0 0.0
    %3178 = vmatpush1.msra.mxu0 0.0
    %3179 = vmatprep.subr.mxu0 0.0
    %3180 = vmatpush1.msra.mxu0 0.0
    %3181 = vmatprep.subr.mxu0 0.0
    %3182 = vmatpush1.msra.mxu0 0.0
    %3183 = vmatprep.subr.mxu0 0.0
    %3184 = vmatpush1.msra.mxu0 0.0
    %3185 = vmatprep.subr.mxu0 0.0
    %3186 = vmatpush1.msra.mxu0 0.0
    %3187 = vmatprep.subr.mxu0 0.0
    %3188 = vmatpush1.msra.mxu0 0.0
    %3189 = vmatprep.subr.mxu0 0.0
    %3190 = vmatpush1.msra.mxu0 0.0
    %3191 = vmatprep.subr.mxu0 0.0
    %3192 = vmatpush1.msra.mxu0 0.0
    %3193 = vmatprep.subr.mxu0 0.0
    %3194 = vmatpush1.msra.mxu0 0.0
    %3195 = vmatprep.subr.mxu0 0.0
    %3196 = vmatpush1.msra.mxu0 0.0
    %3197 = vmatprep.subr.mxu0 0.0
    %3198 = vmatpush1.msra.mxu0 0.0
    %3199 = vmatprep.subr.mxu0 0.0
    %3200 = vmatpush1.msra.mxu0 0.0
    %3201 = vmatprep.subr.mxu0 0.0
    %3202 = vmatpush1.msra.mxu0 0.0
    %3203 = vmatprep.subr.mxu0 0.0
    %3204 = vmatpush1.msra.mxu0 0.0
    %3205 = vmatprep.subr.mxu0 0.0
    %3206 = vmatpush1.msra.mxu0 0.0
    %3207 = vmatprep.mubr.f32.mxu0 0.0
    %3208 = vmatmul.mubr.f32.gmra.mrb[0].mxu0 %v3141
    %v3209 = vpop.f32.mrb[0].mxu0
    %v3210 = vadd.f32 0.0, %v3209
    %v3211 = vpop.f32.mrb[0].mxu0
    %3212 = vdwg.mxu0
    %v3214 = vsel %vm191, %v3210, 0
    %3216 = vmatprep.subr.mxu0 0.0
    %3217 = vmatpush1.msra.mxu0 %v2333
    %3218 = vmatprep.subr.mxu0 0.0
    %3219 = vmatpush1.msra.mxu0 0.0
    %3220 = vmatprep.subr.mxu0 0.0
    %3221 = vmatpush1.msra.mxu0 0.0
    %3222 = vmatprep.subr.mxu0 0.0
    %3223 = vmatpush1.msra.mxu0 0.0
    %3224 = vmatprep.subr.mxu0 0.0
    %3225 = vmatpush1.msra.mxu0 0.0
    %3226 = vmatprep.subr.mxu0 0.0
    %3227 = vmatpush1.msra.mxu0 0.0
    %3228 = vmatprep.subr.mxu0 0.0
    %3229 = vmatpush1.msra.mxu0 0.0
    %3230 = vmatprep.subr.mxu0 0.0
    %3231 = vmatpush1.msra.mxu0 0.0
    %3232 = vmatprep.subr.mxu0 0.0
    %3233 = vmatpush1.msra.mxu0 0.0
    %3234 = vmatprep.subr.mxu0 0.0
    %3235 = vmatpush1.msra.mxu0 0.0
    %3236 = vmatprep.subr.mxu0 0.0
    %3237 = vmatpush1.msra.mxu0 0.0
    %3238 = vmatprep.subr.mxu0 0.0
    %3239 = vmatpush1.msra.mxu0 0.0
    %3240 = vmatprep.subr.mxu0 0.0
    %3241 = vmatpush1.msra.mxu0 0.0
    %3242 = vmatprep.subr.mxu0 0.0
    %3243 = vmatpush1.msra.mxu0 0.0
    %3244 = vmatprep.subr.mxu0 0.0
    %3245 = vmatpush1.msra.mxu0 0.0
    %3246 = vmatprep.subr.mxu0 0.0
    %3247 = vmatpush1.msra.mxu0 0.0
    %3248 = vmatprep.subr.mxu0 0.0
    %3249 = vmatpush1.msra.mxu0 0.0
    %3250 = vmatprep.subr.mxu0 0.0
    %3251 = vmatpush1.msra.mxu0 0.0
    %3252 = vmatprep.subr.mxu0 0.0
    %3253 = vmatpush1.msra.mxu0 0.0
    %3254 = vmatprep.subr.mxu0 0.0
    %3255 = vmatpush1.msra.mxu0 0.0
    %3256 = vmatprep.subr.mxu0 0.0
    %3257 = vmatpush1.msra.mxu0 0.0
    %3258 = vmatprep.subr.mxu0 0.0
    %3259 = vmatpush1.msra.mxu0 0.0
    %3260 = vmatprep.subr.mxu0 0.0
    %3261 = vmatpush1.msra.mxu0 0.0
    %3262 = vmatprep.subr.mxu0 0.0
    %3263 = vmatpush1.msra.mxu0 0.0
    %3264 = vmatprep.subr.mxu0 0.0
    %3265 = vmatpush1.msra.mxu0 0.0
    %3266 = vmatprep.subr.mxu0 0.0
    %3267 = vmatpush1.msra.mxu0 0.0
    %3268 = vmatprep.subr.mxu0 0.0
    %3269 = vmatpush1.msra.mxu0 0.0
    %3270 = vmatprep.subr.mxu0 0.0
    %3271 = vmatpush1.msra.mxu0 0.0
    %3272 = vmatprep.subr.mxu0 0.0
    %3273 = vmatpush1.msra.mxu0 0.0
    %3274 = vmatprep.subr.mxu0 0.0
    %3275 = vmatpush1.msra.mxu0 0.0
    %3276 = vmatprep.subr.mxu0 0.0
    %3277 = vmatpush1.msra.mxu0 0.0
    %3278 = vmatprep.subr.mxu0 0.0
    %3279 = vmatpush1.msra.mxu0 0.0
    %3280 = vmatprep.mubr.f32.mxu0 0.0
    %3281 = vmatmul.mubr.f32.gmra.mrb[0].mxu0 %v3214
    %v3282 = vpop.f32.mrb[0].mxu0
    %v3283 = vadd.f32 0.0, %v3282
    %v3284 = vpop.f32.mrb[0].mxu0
    %3285 = vdwg.mxu0
    %v3287 = vsel %vm191, %v3134, 0
    %3289 = vmatprep.subr.mxu0 0.0
    %3290 = vmatpush1.msra.mxu0 %v2332
    %3291 = vmatprep.subr.mxu0 0.0
    %3292 = vmatpush1.msra.mxu0 0.0
    %3293 = vmatprep.subr.mxu0 0.0
    %3294 = vmatpush1.msra.mxu0 0.0
    %3295 = vmatprep.subr.mxu0 0.0
    %3296 = vmatpush1.msra.mxu0 0.0
    %3297 = vmatprep.subr.mxu0 0.0
    %3298 = vmatpush1.msra.mxu0 0.0
    %3299 = vmatprep.subr.mxu0 0.0
    %3300 = vmatpush1.msra.mxu0 0.0
    %3301 = vmatprep.subr.mxu0 0.0
    %3302 = vmatpush1.msra.mxu0 0.0
    %3303 = vmatprep.subr.mxu0 0.0
    %3304 = vmatpush1.msra.mxu0 0.0
    %3305 = vmatprep.subr.mxu0 0.0
    %3306 = vmatpush1.msra.mxu0 0.0
    %3307 = vmatprep.subr.mxu0 0.0
    %3308 = vmatpush1.msra.mxu0 0.0
    %3309 = vmatprep.subr.mxu0 0.0
    %3310 = vmatpush1.msra.mxu0 0.0
    %3311 = vmatprep.subr.mxu0 0.0
    %3312 = vmatpush1.msra.mxu0 0.0
    %3313 = vmatprep.subr.mxu0 0.0
    %3314 = vmatpush1.msra.mxu0 0.0
    %3315 = vmatprep.subr.mxu0 0.0
    %3316 = vmatpush1.msra.mxu0 0.0
    %3317 = vmatprep.subr.mxu0 0.0
    %3318 = vmatpush1.msra.mxu0 0.0
    %3319 = vmatprep.subr.mxu0 0.0
    %3320 = vmatpush1.msra.mxu0 0.0
    %3321 = vmatprep.subr.mxu0 0.0
    %3322 = vmatpush1.msra.mxu0 0.0
    %3323 = vmatprep.subr.mxu0 0.0
    %3324 = vmatpush1.msra.mxu0 0.0
    %3325 = vmatprep.subr.mxu0 0.0
    %3326 = vmatpush1.msra.mxu0 0.0
    %3327 = vmatprep.subr.mxu0 0.0
    %3328 = vmatpush1.msra.mxu0 0.0
    %3329 = vmatprep.subr.mxu0 0.0
    %3330 = vmatpush1.msra.mxu0 0.0
    %3331 = vmatprep.subr.mxu0 0.0
    %3332 = vmatpush1.msra.mxu0 0.0
    %3333 = vmatprep.subr.mxu0 0.0
    %3334 = vmatpush1.msra.mxu0 0.0
    %3335 = vmatprep.subr.mxu0 0.0
    %3336 = vmatpush1.msra.mxu0 0.0
    %3337 = vmatprep.subr.mxu0 0.0
    %3338 = vmatpush1.msra.mxu0 0.0
    %3339 = vmatprep.subr.mxu0 0.0
    %3340 = vmatpush1.msra.mxu0 0.0
    %3341 = vmatprep.subr.mxu0 0.0
    %3342 = vmatpush1.msra.mxu0 0.0
    %3343 = vmatprep.subr.mxu0 0.0
    %3344 = vmatpush1.msra.mxu0 0.0
    %3345 = vmatprep.subr.mxu0 0.0
    %3346 = vmatpush1.msra.mxu0 0.0
    %3347 = vmatprep.subr.mxu0 0.0
    %3348 = vmatpush1.msra.mxu0 0.0
    %3349 = vmatprep.subr.mxu0 0.0
    %3350 = vmatpush1.msra.mxu0 0.0
    %3351 = vmatprep.subr.mxu0 0.0
    %3352 = vmatpush1.msra.mxu0 0.0
    %3353 = vmatprep.mubr.f32.mxu0 0.0
    %3354 = vmatmul.mubr.f32.gmra.mrb[0].mxu0 %v3287
    %v3355 = vpop.f32.mrb[0].mxu0
    %v3356 = vadd.f32 %v3283, %v3355
    %v3357 = vpop.f32.mrb[0].mxu0
    %3358 = vdwg.mxu0
    %3359 = vrot.lane.b32.xlu0 %v2324, 80
    %v3360 = vpop.permute.xlu0 %3359
    %v3363 = vsel %vm191, %v3055, 0
    %3365 = vmatprep.subr.mxu0 0.0
    %3366 = vmatpush1.msra.mxu0 %v3360
    %3367 = vmatprep.subr.mxu0 0.0
    %3368 = vmatpush1.msra.mxu0 0.0
    %3369 = vmatprep.subr.mxu0 0.0
    %3370 = vmatpush1.msra.mxu0 0.0
    %3371 = vmatprep.subr.mxu0 0.0
    %3372 = vmatpush1.msra.mxu0 0.0
    %3373 = vmatprep.subr.mxu0 0.0
    %3374 = vmatpush1.msra.mxu0 0.0
    %3375 = vmatprep.subr.mxu0 0.0
    %3376 = vmatpush1.msra.mxu0 0.0
    %3377 = vmatprep.subr.mxu0 0.0
    %3378 = vmatpush1.msra.mxu0 0.0
    %3379 = vmatprep.subr.mxu0 0.0
    %3380 = vmatpush1.msra.mxu0 0.0
    %3381 = vmatprep.subr.mxu0 0.0
    %3382 = vmatpush1.msra.mxu0 0.0
    %3383 = vmatprep.subr.mxu0 0.0
    %3384 = vmatpush1.msra.mxu0 0.0
    %3385 = vmatprep.subr.mxu0 0.0
    %3386 = vmatpush1.msra.mxu0 0.0
    %3387 = vmatprep.subr.mxu0 0.0
    %3388 = vmatpush1.msra.mxu0 0.0
    %3389 = vmatprep.subr.mxu0 0.0
    %3390 = vmatpush1.msra.mxu0 0.0
    %3391 = vmatprep.subr.mxu0 0.0
    %3392 = vmatpush1.msra.mxu0 0.0
    %3393 = vmatprep.subr.mxu0 0.0
    %3394 = vmatpush1.msra.mxu0 0.0
    %3395 = vmatprep.subr.mxu0 0.0
    %3396 = vmatpush1.msra.mxu0 0.0
    %3397 = vmatprep.subr.mxu0 0.0
    %3398 = vmatpush1.msra.mxu0 0.0
    %3399 = vmatprep.subr.mxu0 0.0
    %3400 = vmatpush1.msra.mxu0 0.0
    %3401 = vmatprep.subr.mxu0 0.0
    %3402 = vmatpush1.msra.mxu0 0.0
    %3403 = vmatprep.subr.mxu0 0.0
    %3404 = vmatpush1.msra.mxu0 0.0
    %3405 = vmatprep.subr.mxu0 0.0
    %3406 = vmatpush1.msra.mxu0 0.0
    %3407 = vmatprep.subr.mxu0 0.0
    %3408 = vmatpush1.msra.mxu0 0.0
    %3409 = vmatprep.subr.mxu0 0.0
    %3410 = vmatpush1.msra.mxu0 0.0
    %3411 = vmatprep.subr.mxu0 0.0
    %3412 = vmatpush1.msra.mxu0 0.0
    %3413 = vmatprep.subr.mxu0 0.0
    %3414 = vmatpush1.msra.mxu0 0.0
    %3415 = vmatprep.subr.mxu0 0.0
    %3416 = vmatpush1.msra.mxu0 0.0
    %3417 = vmatprep.subr.mxu0 0.0
    %3418 = vmatpush1.msra.mxu0 0.0
    %3419 = vmatprep.subr.mxu0 0.0
    %3420 = vmatpush1.msra.mxu0 0.0
    %3421 = vmatprep.subr.mxu0 0.0
    %3422 = vmatpush1.msra.mxu0 0.0
    %3423 = vmatprep.subr.mxu0 0.0
    %3424 = vmatpush1.msra.mxu0 0.0
    %3425 = vmatprep.subr.mxu0 0.0
    %3426 = vmatpush1.msra.mxu0 0.0
    %3427 = vmatprep.subr.mxu0 0.0
    %3428 = vmatpush1.msra.mxu0 0.0
    %3429 = vmatprep.mubr.f32.mxu0 0.0
    %3430 = vmatmul.mubr.f32.gmra.mrb[0].mxu0 %v3363
    %v3431 = vpop.f32.mrb[0].mxu0
    %v3432 = vadd.f32 0.0, %v3431
    %v3433 = vpop.f32.mrb[0].mxu0
    %3434 = vdwg.mxu0
    %v3436 = vsel %vm191, %v3432, 0
    %3438 = vmatprep.subr.mxu0 0.0
    %3439 = vmatpush1.msra.mxu0 %v2334
    %3440 = vmatprep.subr.mxu0 0.0
    %3441 = vmatpush1.msra.mxu0 0.0
    %3442 = vmatprep.subr.mxu0 0.0
    %3443 = vmatpush1.msra.mxu0 0.0
    %3444 = vmatprep.subr.mxu0 0.0
    %3445 = vmatpush1.msra.mxu0 0.0
    %3446 = vmatprep.subr.mxu0 0.0
    %3447 = vmatpush1.msra.mxu0 0.0
    %3448 = vmatprep.subr.mxu0 0.0
    %3449 = vmatpush1.msra.mxu0 0.0
    %3450 = vmatprep.subr.mxu0 0.0
    %3451 = vmatpush1.msra.mxu0 0.0
    %3452 = vmatprep.subr.mxu0 0.0
    %3453 = vmatpush1.msra.mxu0 0.0
    %3454 = vmatprep.subr.mxu0 0.0
    %3455 = vmatpush1.msra.mxu0 0.0
    %3456 = vmatprep.subr.mxu0 0.0
    %3457 = vmatpush1.msra.mxu0 0.0
    %3458 = vmatprep.subr.mxu0 0.0
    %3459 = vmatpush1.msra.mxu0 0.0
    %3460 = vmatprep.subr.mxu0 0.0
    %3461 = vmatpush1.msra.mxu0 0.0
    %3462 = vmatprep.subr.mxu0 0.0
    %3463 = vmatpush1.msra.mxu0 0.0
    %3464 = vmatprep.subr.mxu0 0.0
    %3465 = vmatpush1.msra.mxu0 0.0
    %3466 = vmatprep.subr.mxu0 0.0
    %3467 = vmatpush1.msra.mxu0 0.0
    %3468 = vmatprep.subr.mxu0 0.0
    %3469 = vmatpush1.msra.mxu0 0.0
    %3470 = vmatprep.subr.mxu0 0.0
    %3471 = vmatpush1.msra.mxu0 0.0
    %3472 = vmatprep.subr.mxu0 0.0
    %3473 = vmatpush1.msra.mxu0 0.0
    %3474 = vmatprep.subr.mxu0 0.0
    %3475 = vmatpush1.msra.mxu0 0.0
    %3476 = vmatprep.subr.mxu0 0.0
    %3477 = vmatpush1.msra.mxu0 0.0
    %3478 = vmatprep.subr.mxu0 0.0
    %3479 = vmatpush1.msra.mxu0 0.0
    %3480 = vmatprep.subr.mxu0 0.0
    %3481 = vmatpush1.msra.mxu0 0.0
    %3482 = vmatprep.subr.mxu0 0.0
    %3483 = vmatpush1.msra.mxu0 0.0
    %3484 = vmatprep.subr.mxu0 0.0
    %3485 = vmatpush1.msra.mxu0 0.0
    %3486 = vmatprep.subr.mxu0 0.0
    %3487 = vmatpush1.msra.mxu0 0.0
    %3488 = vmatprep.subr.mxu0 0.0
    %3489 = vmatpush1.msra.mxu0 0.0
    %3490 = vmatprep.subr.mxu0 0.0
    %3491 = vmatpush1.msra.mxu0 0.0
    %3492 = vmatprep.subr.mxu0 0.0
    %3493 = vmatpush1.msra.mxu0 0.0
    %3494 = vmatprep.subr.mxu0 0.0
    %3495 = vmatpush1.msra.mxu0 0.0
    %3496 = vmatprep.subr.mxu0 0.0
    %3497 = vmatpush1.msra.mxu0 0.0
    %3498 = vmatprep.subr.mxu0 0.0
    %3499 = vmatpush1.msra.mxu0 0.0
    %3500 = vmatprep.subr.mxu0 0.0
    %3501 = vmatpush1.msra.mxu0 0.0
    %3502 = vmatprep.mubr.f32.mxu0 0.0
    %3503 = vmatmul.mubr.f32.gmra.mrb[0].mxu0 %v3436
    %v3504 = vpop.f32.mrb[0].mxu0
    %v3505 = vadd.f32 0.0, %v3504
    %v3506 = vpop.f32.mrb[0].mxu0
    %3507 = vdwg.mxu0
    %v3508 = vadd.f32 %v3356, %v3505
    %3509 = vrot.lane.b32.xlu0 %v2324, 72
    %v3510 = vpop.permute.xlu0 %3509
    %v3513 = vsel %vm191, %v3056, 0
    %3515 = vmatprep.subr.mxu0 0.0
    %3516 = vmatpush1.msra.mxu0 %v3510
    %3517 = vmatprep.subr.mxu0 0.0
    %3518 = vmatpush1.msra.mxu0 0.0
    %3519 = vmatprep.subr.mxu0 0.0
    %3520 = vmatpush1.msra.mxu0 0.0
    %3521 = vmatprep.subr.mxu0 0.0
    %3522 = vmatpush1.msra.mxu0 0.0
    %3523 = vmatprep.subr.mxu0 0.0
    %3524 = vmatpush1.msra.mxu0 0.0
    %3525 = vmatprep.subr.mxu0 0.0
    %3526 = vmatpush1.msra.mxu0 0.0
    %3527 = vmatprep.subr.mxu0 0.0
    %3528 = vmatpush1.msra.mxu0 0.0
    %3529 = vmatprep.subr.mxu0 0.0
    %3530 = vmatpush1.msra.mxu0 0.0
    %3531 = vmatprep.subr.mxu0 0.0
    %3532 = vmatpush1.msra.mxu0 0.0
    %3533 = vmatprep.subr.mxu0 0.0
    %3534 = vmatpush1.msra.mxu0 0.0
    %3535 = vmatprep.subr.mxu0 0.0
    %3536 = vmatpush1.msra.mxu0 0.0
    %3537 = vmatprep.subr.mxu0 0.0
    %3538 = vmatpush1.msra.mxu0 0.0
    %3539 = vmatprep.subr.mxu0 0.0
    %3540 = vmatpush1.msra.mxu0 0.0
    %3541 = vmatprep.subr.mxu0 0.0
    %3542 = vmatpush1.msra.mxu0 0.0
    %3543 = vmatprep.subr.mxu0 0.0
    %3544 = vmatpush1.msra.mxu0 0.0
    %3545 = vmatprep.subr.mxu0 0.0
    %3546 = vmatpush1.msra.mxu0 0.0
    %3547 = vmatprep.subr.mxu0 0.0
    %3548 = vmatpush1.msra.mxu0 0.0
    %3549 = vmatprep.subr.mxu0 0.0
    %3550 = vmatpush1.msra.mxu0 0.0
    %3551 = vmatprep.subr.mxu0 0.0
    %3552 = vmatpush1.msra.mxu0 0.0
    %3553 = vmatprep.subr.mxu0 0.0
    %3554 = vmatpush1.msra.mxu0 0.0
    %3555 = vmatprep.subr.mxu0 0.0
    %3556 = vmatpush1.msra.mxu0 0.0
    %3557 = vmatprep.subr.mxu0 0.0
    %3558 = vmatpush1.msra.mxu0 0.0
    %3559 = vmatprep.subr.mxu0 0.0
    %3560 = vmatpush1.msra.mxu0 0.0
    %3561 = vmatprep.subr.mxu0 0.0
    %3562 = vmatpush1.msra.mxu0 0.0
    %3563 = vmatprep.subr.mxu0 0.0
    %3564 = vmatpush1.msra.mxu0 0.0
    %3565 = vmatprep.subr.mxu0 0.0
    %3566 = vmatpush1.msra.mxu0 0.0
    %3567 = vmatprep.subr.mxu0 0.0
    %3568 = vmatpush1.msra.mxu0 0.0
    %3569 = vmatprep.subr.mxu0 0.0
    %3570 = vmatpush1.msra.mxu0 0.0
    %3571 = vmatprep.subr.mxu0 0.0
    %3572 = vmatpush1.msra.mxu0 0.0
    %3573 = vmatprep.subr.mxu0 0.0
    %3574 = vmatpush1.msra.mxu0 0.0
    %3575 = vmatprep.subr.mxu0 0.0
    %3576 = vmatpush1.msra.mxu0 0.0
    %3577 = vmatprep.subr.mxu0 0.0
    %3578 = vmatpush1.msra.mxu0 0.0
    %3579 = vmatprep.mubr.f32.mxu0 0.0
    %3580 = vmatmul.mubr.f32.gmra.mrb[0].mxu0 %v3513
    %v3581 = vpop.f32.mrb[0].mxu0
    %v3582 = vadd.f32 0.0, %v3581
    %v3583 = vpop.f32.mrb[0].mxu0
    %3584 = vdwg.mxu0
    %v3586 = vsel %vm191, %v3582, 0
    %3588 = vmatprep.subr.mxu0 0.0
    %3589 = vmatpush1.msra.mxu0 %v2335
    %3590 = vmatprep.subr.mxu0 0.0
    %3591 = vmatpush1.msra.mxu0 0.0
    %3592 = vmatprep.subr.mxu0 0.0
    %3593 = vmatpush1.msra.mxu0 0.0
    %3594 = vmatprep.subr.mxu0 0.0
    %3595 = vmatpush1.msra.mxu0 0.0
    %3596 = vmatprep.subr.mxu0 0.0
    %3597 = vmatpush1.msra.mxu0 0.0
    %3598 = vmatprep.subr.mxu0 0.0
    %3599 = vmatpush1.msra.mxu0 0.0
    %3600 = vmatprep.subr.mxu0 0.0
    %3601 = vmatpush1.msra.mxu0 0.0
    %3602 = vmatprep.subr.mxu0 0.0
    %3603 = vmatpush1.msra.mxu0 0.0
    %3604 = vmatprep.subr.mxu0 0.0
    %3605 = vmatpush1.msra.mxu0 0.0
    %3606 = vmatprep.subr.mxu0 0.0
    %3607 = vmatpush1.msra.mxu0 0.0
    %3608 = vmatprep.subr.mxu0 0.0
    %3609 = vmatpush1.msra.mxu0 0.0
    %3610 = vmatprep.subr.mxu0 0.0
    %3611 = vmatpush1.msra.mxu0 0.0
    %3612 = vmatprep.subr.mxu0 0.0
    %3613 = vmatpush1.msra.mxu0 0.0
    %3614 = vmatprep.subr.mxu0 0.0
    %3615 = vmatpush1.msra.mxu0 0.0
    %3616 = vmatprep.subr.mxu0 0.0
    %3617 = vmatpush1.msra.mxu0 0.0
    %3618 = vmatprep.subr.mxu0 0.0
    %3619 = vmatpush1.msra.mxu0 0.0
    %3620 = vmatprep.subr.mxu0 0.0
    %3621 = vmatpush1.msra.mxu0 0.0
    %3622 = vmatprep.subr.mxu0 0.0
    %3623 = vmatpush1.msra.mxu0 0.0
    %3624 = vmatprep.subr.mxu0 0.0
    %3625 = vmatpush1.msra.mxu0 0.0
    %3626 = vmatprep.subr.mxu0 0.0
    %3627 = vmatpush1.msra.mxu0 0.0
    %3628 = vmatprep.subr.mxu0 0.0
    %3629 = vmatpush1.msra.mxu0 0.0
    %3630 = vmatprep.subr.mxu0 0.0
    %3631 = vmatpush1.msra.mxu0 0.0
    %3632 = vmatprep.subr.mxu0 0.0
    %3633 = vmatpush1.msra.mxu0 0.0
    %3634 = vmatprep.subr.mxu0 0.0
    %3635 = vmatpush1.msra.mxu0 0.0
    %3636 = vmatprep.subr.mxu0 0.0
    %3637 = vmatpush1.msra.mxu0 0.0
    %3638 = vmatprep.subr.mxu0 0.0
    %3639 = vmatpush1.msra.mxu0 0.0
    %3640 = vmatprep.subr.mxu0 0.0
    %3641 = vmatpush1.msra.mxu0 0.0
    %3642 = vmatprep.subr.mxu0 0.0
    %3643 = vmatpush1.msra.mxu0 0.0
    %3644 = vmatprep.subr.mxu0 0.0
    %3645 = vmatpush1.msra.mxu0 0.0
    %3646 = vmatprep.subr.mxu0 0.0
    %3647 = vmatpush1.msra.mxu0 0.0
    %3648 = vmatprep.subr.mxu0 0.0
    %3649 = vmatpush1.msra.mxu0 0.0
    %3650 = vmatprep.subr.mxu0 0.0
    %3651 = vmatpush1.msra.mxu0 0.0
    %3652 = vmatprep.mubr.f32.mxu0 0.0
    %3653 = vmatmul.mubr.f32.gmra.mrb[0].mxu0 %v3586
    %v3654 = vpop.f32.mrb[0].mxu0
    %v3655 = vadd.f32 0.0, %v3654
    %v3656 = vpop.f32.mrb[0].mxu0
    %3657 = vdwg.mxu0
    %v3658 = vadd.f32 %v3508, %v3655
    %3659 = vrot.lane.b32.xlu0 %v2329, 96
    %v3660 = vpop.permute.xlu0 %3659
    %v3663 = vsel %vm191, %v3057, 0
    %3665 = vmatprep.subr.mxu0 0.0
    %3666 = vmatpush1.msra.mxu0 %v3660
    %3667 = vmatprep.subr.mxu0 0.0
    %3668 = vmatpush1.msra.mxu0 0.0
    %3669 = vmatprep.subr.mxu0 0.0
    %3670 = vmatpush1.msra.mxu0 0.0
    %3671 = vmatprep.subr.mxu0 0.0
    %3672 = vmatpush1.msra.mxu0 0.0
    %3673 = vmatprep.subr.mxu0 0.0
    %3674 = vmatpush1.msra.mxu0 0.0
    %3675 = vmatprep.subr.mxu0 0.0
    %3676 = vmatpush1.msra.mxu0 0.0
    %3677 = vmatprep.subr.mxu0 0.0
    %3678 = vmatpush1.msra.mxu0 0.0
    %3679 = vmatprep.subr.mxu0 0.0
    %3680 = vmatpush1.msra.mxu0 0.0
    %3681 = vmatprep.subr.mxu0 0.0
    %3682 = vmatpush1.msra.mxu0 0.0
    %3683 = vmatprep.subr.mxu0 0.0
    %3684 = vmatpush1.msra.mxu0 0.0
    %3685 = vmatprep.subr.mxu0 0.0
    %3686 = vmatpush1.msra.mxu0 0.0
    %3687 = vmatprep.subr.mxu0 0.0
    %3688 = vmatpush1.msra.mxu0 0.0
    %3689 = vmatprep.subr.mxu0 0.0
    %3690 = vmatpush1.msra.mxu0 0.0
    %3691 = vmatprep.subr.mxu0 0.0
    %3692 = vmatpush1.msra.mxu0 0.0
    %3693 = vmatprep.subr.mxu0 0.0
    %3694 = vmatpush1.msra.mxu0 0.0
    %3695 = vmatprep.subr.mxu0 0.0
    %3696 = vmatpush1.msra.mxu0 0.0
    %3697 = vmatprep.subr.mxu0 0.0
    %3698 = vmatpush1.msra.mxu0 0.0
    %3699 = vmatprep.subr.mxu0 0.0
    %3700 = vmatpush1.msra.mxu0 0.0
    %3701 = vmatprep.subr.mxu0 0.0
    %3702 = vmatpush1.msra.mxu0 0.0
    %3703 = vmatprep.subr.mxu0 0.0
    %3704 = vmatpush1.msra.mxu0 0.0
    %3705 = vmatprep.subr.mxu0 0.0
    %3706 = vmatpush1.msra.mxu0 0.0
    %3707 = vmatprep.subr.mxu0 0.0
    %3708 = vmatpush1.msra.mxu0 0.0
    %3709 = vmatprep.subr.mxu0 0.0
    %3710 = vmatpush1.msra.mxu0 0.0
    %3711 = vmatprep.subr.mxu0 0.0
    %3712 = vmatpush1.msra.mxu0 0.0
    %3713 = vmatprep.subr.mxu0 0.0
    %3714 = vmatpush1.msra.mxu0 0.0
    %3715 = vmatprep.subr.mxu0 0.0
    %3716 = vmatpush1.msra.mxu0 0.0
    %3717 = vmatprep.subr.mxu0 0.0
    %3718 = vmatpush1.msra.mxu0 0.0
    %3719 = vmatprep.subr.mxu0 0.0
    %3720 = vmatpush1.msra.mxu0 0.0
    %3721 = vmatprep.subr.mxu0 0.0
    %3722 = vmatpush1.msra.mxu0 0.0
    %3723 = vmatprep.subr.mxu0 0.0
    %3724 = vmatpush1.msra.mxu0 0.0
    %3725 = vmatprep.subr.mxu0 0.0
    %3726 = vmatpush1.msra.mxu0 0.0
    %3727 = vmatprep.subr.mxu0 0.0
    %3728 = vmatpush1.msra.mxu0 0.0
    %3729 = vmatprep.mubr.f32.mxu0 0.0
    %3730 = vmatmul.mubr.f32.gmra.mrb[0].mxu0 %v3663
    %v3731 = vpop.f32.mrb[0].mxu0
    %v3732 = vadd.f32 0.0, %v3731
    %v3733 = vpop.f32.mrb[0].mxu0
    %3734 = vdwg.mxu0
    %3735 = vrot.lane.b32.xlu0 %v2329, 88
    %v3736 = vpop.permute.xlu0 %3735
    %v3739 = vsel %vm191, %v3058, 0
    %3741 = vmatprep.subr.mxu0 0.0
    %3742 = vmatpush1.msra.mxu0 %v3736
    %3743 = vmatprep.subr.mxu0 0.0
    %3744 = vmatpush1.msra.mxu0 0.0
    %3745 = vmatprep.subr.mxu0 0.0
    %3746 = vmatpush1.msra.mxu0 0.0
    %3747 = vmatprep.subr.mxu0 0.0
    %3748 = vmatpush1.msra.mxu0 0.0
    %3749 = vmatprep.subr.mxu0 0.0
    %3750 = vmatpush1.msra.mxu0 0.0
    %3751 = vmatprep.subr.mxu0 0.0
    %3752 = vmatpush1.msra.mxu0 0.0
    %3753 = vmatprep.subr.mxu0 0.0
    %3754 = vmatpush1.msra.mxu0 0.0
    %3755 = vmatprep.subr.mxu0 0.0
    %3756 = vmatpush1.msra.mxu0 0.0
    %3757 = vmatprep.subr.mxu0 0.0
    %3758 = vmatpush1.msra.mxu0 0.0
    %3759 = vmatprep.subr.mxu0 0.0
    %3760 = vmatpush1.msra.mxu0 0.0
    %3761 = vmatprep.subr.mxu0 0.0
    %3762 = vmatpush1.msra.mxu0 0.0
    %3763 = vmatprep.subr.mxu0 0.0
    %3764 = vmatpush1.msra.mxu0 0.0
    %3765 = vmatprep.subr.mxu0 0.0
    %3766 = vmatpush1.msra.mxu0 0.0
    %3767 = vmatprep.subr.mxu0 0.0
    %3768 = vmatpush1.msra.mxu0 0.0
    %3769 = vmatprep.subr.mxu0 0.0
    %3770 = vmatpush1.msra.mxu0 0.0
    %3771 = vmatprep.subr.mxu0 0.0
    %3772 = vmatpush1.msra.mxu0 0.0
    %3773 = vmatprep.subr.mxu0 0.0
    %3774 = vmatpush1.msra.mxu0 0.0
    %3775 = vmatprep.subr.mxu0 0.0
    %3776 = vmatpush1.msra.mxu0 0.0
    %3777 = vmatprep.subr.mxu0 0.0
    %3778 = vmatpush1.msra.mxu0 0.0
    %3779 = vmatprep.subr.mxu0 0.0
    %3780 = vmatpush1.msra.mxu0 0.0
    %3781 = vmatprep.subr.mxu0 0.0
    %3782 = vmatpush1.msra.mxu0 0.0
    %3783 = vmatprep.subr.mxu0 0.0
    %3784 = vmatpush1.msra.mxu0 0.0
    %3785 = vmatprep.subr.mxu0 0.0
    %3786 = vmatpush1.msra.mxu0 0.0
    %3787 = vmatprep.subr.mxu0 0.0
    %3788 = vmatpush1.msra.mxu0 0.0
    %3789 = vmatprep.subr.mxu0 0.0
    %3790 = vmatpush1.msra.mxu0 0.0
    %3791 = vmatprep.subr.mxu0 0.0
    %3792 = vmatpush1.msra.mxu0 0.0
    %3793 = vmatprep.subr.mxu0 0.0
    %3794 = vmatpush1.msra.mxu0 0.0
    %3795 = vmatprep.subr.mxu0 0.0
    %3796 = vmatpush1.msra.mxu0 0.0
    %3797 = vmatprep.subr.mxu0 0.0
    %3798 = vmatpush1.msra.mxu0 0.0
    %3799 = vmatprep.subr.mxu0 0.0
    %3800 = vmatpush1.msra.mxu0 0.0
    %3801 = vmatprep.subr.mxu0 0.0
    %3802 = vmatpush1.msra.mxu0 0.0
    %3803 = vmatprep.subr.mxu0 0.0
    %3804 = vmatpush1.msra.mxu0 0.0
    %3805 = vmatprep.mubr.f32.mxu0 0.0
    %3806 = vmatmul.mubr.f32.gmra.mrb[0].mxu0 %v3739
    %v3807 = vpop.f32.mrb[0].mxu0
    %v3808 = vadd.f32 0.0, %v3807
    %v3809 = vpop.f32.mrb[0].mxu0
    %3810 = vdwg.mxu0
    %v3812 = vsel %vm191, %v3808, 0
    %3814 = vmatprep.subr.mxu0 0.0
    %3815 = vmatpush1.msra.mxu0 %v2333
    %3816 = vmatprep.subr.mxu0 0.0
    %3817 = vmatpush1.msra.mxu0 0.0
    %3818 = vmatprep.subr.mxu0 0.0
    %3819 = vmatpush1.msra.mxu0 0.0
    %3820 = vmatprep.subr.mxu0 0.0
    %3821 = vmatpush1.msra.mxu0 0.0
    %3822 = vmatprep.subr.mxu0 0.0
    %3823 = vmatpush1.msra.mxu0 0.0
    %3824 = vmatprep.subr.mxu0 0.0
    %3825 = vmatpush1.msra.mxu0 0.0
    %3826 = vmatprep.subr.mxu0 0.0
    %3827 = vmatpush1.msra.mxu0 0.0
    %3828 = vmatprep.subr.mxu0 0.0
    %3829 = vmatpush1.msra.mxu0 0.0
    %3830 = vmatprep.subr.mxu0 0.0
    %3831 = vmatpush1.msra.mxu0 0.0
    %3832 = vmatprep.subr.mxu0 0.0
    %3833 = vmatpush1.msra.mxu0 0.0
    %3834 = vmatprep.subr.mxu0 0.0
    %3835 = vmatpush1.msra.mxu0 0.0
    %3836 = vmatprep.subr.mxu0 0.0
    %3837 = vmatpush1.msra.mxu0 0.0
    %3838 = vmatprep.subr.mxu0 0.0
    %3839 = vmatpush1.msra.mxu0 0.0
    %3840 = vmatprep.subr.mxu0 0.0
    %3841 = vmatpush1.msra.mxu0 0.0
    %3842 = vmatprep.subr.mxu0 0.0
    %3843 = vmatpush1.msra.mxu0 0.0
    %3844 = vmatprep.subr.mxu0 0.0
    %3845 = vmatpush1.msra.mxu0 0.0
    %3846 = vmatprep.subr.mxu0 0.0
    %3847 = vmatpush1.msra.mxu0 0.0
    %3848 = vmatprep.subr.mxu0 0.0
    %3849 = vmatpush1.msra.mxu0 0.0
    %3850 = vmatprep.subr.mxu0 0.0
    %3851 = vmatpush1.msra.mxu0 0.0
    %3852 = vmatprep.subr.mxu0 0.0
    %3853 = vmatpush1.msra.mxu0 0.0
    %3854 = vmatprep.subr.mxu0 0.0
    %3855 = vmatpush1.msra.mxu0 0.0
    %3856 = vmatprep.subr.mxu0 0.0
    %3857 = vmatpush1.msra.mxu0 0.0
    %3858 = vmatprep.subr.mxu0 0.0
    %3859 = vmatpush1.msra.mxu0 0.0
    %3860 = vmatprep.subr.mxu0 0.0
    %3861 = vmatpush1.msra.mxu0 0.0
    %3862 = vmatprep.subr.mxu0 0.0
    %3863 = vmatpush1.msra.mxu0 0.0
    %3864 = vmatprep.subr.mxu0 0.0
    %3865 = vmatpush1.msra.mxu0 0.0
    %3866 = vmatprep.subr.mxu0 0.0
    %3867 = vmatpush1.msra.mxu0 0.0
    %3868 = vmatprep.subr.mxu0 0.0
    %3869 = vmatpush1.msra.mxu0 0.0
    %3870 = vmatprep.subr.mxu0 0.0
    %3871 = vmatpush1.msra.mxu0 0.0
    %3872 = vmatprep.subr.mxu0 0.0
    %3873 = vmatpush1.msra.mxu0 0.0
    %3874 = vmatprep.subr.mxu0 0.0
    %3875 = vmatpush1.msra.mxu0 0.0
    %3876 = vmatprep.subr.mxu0 0.0
    %3877 = vmatpush1.msra.mxu0 0.0
    %3878 = vmatprep.mubr.f32.mxu0 0.0
    %3879 = vmatmul.mubr.f32.gmra.mrb[0].mxu0 %v3812
    %v3880 = vpop.f32.mrb[0].mxu0
    %v3881 = vadd.f32 0.0, %v3880
    %v3882 = vpop.f32.mrb[0].mxu0
    %3883 = vdwg.mxu0
    %v3885 = vsel %vm191, %v3732, 0
    %3887 = vmatprep.subr.mxu0 0.0
    %3888 = vmatpush1.msra.mxu0 %v2332
    %3889 = vmatprep.subr.mxu0 0.0
    %3890 = vmatpush1.msra.mxu0 0.0
    %3891 = vmatprep.subr.mxu0 0.0
    %3892 = vmatpush1.msra.mxu0 0.0
    %3893 = vmatprep.subr.mxu0 0.0
    %3894 = vmatpush1.msra.mxu0 0.0
    %3895 = vmatprep.subr.mxu0 0.0
    %3896 = vmatpush1.msra.mxu0 0.0
    %3897 = vmatprep.subr.mxu0 0.0
    %3898 = vmatpush1.msra.mxu0 0.0
    %3899 = vmatprep.subr.mxu0 0.0
    %3900 = vmatpush1.msra.mxu0 0.0
    %3901 = vmatprep.subr.mxu0 0.0
    %3902 = vmatpush1.msra.mxu0 0.0
    %3903 = vmatprep.subr.mxu0 0.0
    %3904 = vmatpush1.msra.mxu0 0.0
    %3905 = vmatprep.subr.mxu0 0.0
    %3906 = vmatpush1.msra.mxu0 0.0
    %3907 = vmatprep.subr.mxu0 0.0
    %3908 = vmatpush1.msra.mxu0 0.0
    %3909 = vmatprep.subr.mxu0 0.0
    %3910 = vmatpush1.msra.mxu0 0.0
    %3911 = vmatprep.subr.mxu0 0.0
    %3912 = vmatpush1.msra.mxu0 0.0
    %3913 = vmatprep.subr.mxu0 0.0
    %3914 = vmatpush1.msra.mxu0 0.0
    %3915 = vmatprep.subr.mxu0 0.0
    %3916 = vmatpush1.msra.mxu0 0.0
    %3917 = vmatprep.subr.mxu0 0.0
    %3918 = vmatpush1.msra.mxu0 0.0
    %3919 = vmatprep.subr.mxu0 0.0
    %3920 = vmatpush1.msra.mxu0 0.0
    %3921 = vmatprep.subr.mxu0 0.0
    %3922 = vmatpush1.msra.mxu0 0.0
    %3923 = vmatprep.subr.mxu0 0.0
    %3924 = vmatpush1.msra.mxu0 0.0
    %3925 = vmatprep.subr.mxu0 0.0
    %3926 = vmatpush1.msra.mxu0 0.0
    %3927 = vmatprep.subr.mxu0 0.0
    %3928 = vmatpush1.msra.mxu0 0.0
    %3929 = vmatprep.subr.mxu0 0.0
    %3930 = vmatpush1.msra.mxu0 0.0
    %3931 = vmatprep.subr.mxu0 0.0
    %3932 = vmatpush1.msra.mxu0 0.0
    %3933 = vmatprep.subr.mxu0 0.0
    %3934 = vmatpush1.msra.mxu0 0.0
    %3935 = vmatprep.subr.mxu0 0.0
    %3936 = vmatpush1.msra.mxu0 0.0
    %3937 = vmatprep.subr.mxu0 0.0
    %3938 = vmatpush1.msra.mxu0 0.0
    %3939 = vmatprep.subr.mxu0 0.0
    %3940 = vmatpush1.msra.mxu0 0.0
    %3941 = vmatprep.subr.mxu0 0.0
    %3942 = vmatpush1.msra.mxu0 0.0
    %3943 = vmatprep.subr.mxu0 0.0
    %3944 = vmatpush1.msra.mxu0 0.0
    %3945 = vmatprep.subr.mxu0 0.0
    %3946 = vmatpush1.msra.mxu0 0.0
    %3947 = vmatprep.subr.mxu0 0.0
    %3948 = vmatpush1.msra.mxu0 0.0
    %3949 = vmatprep.subr.mxu0 0.0
    %3950 = vmatpush1.msra.mxu0 0.0
    %3951 = vmatprep.mubr.f32.mxu0 0.0
    %3952 = vmatmul.mubr.f32.gmra.mrb[0].mxu0 %v3885
    %v3953 = vpop.f32.mrb[0].mxu0
    %v3954 = vadd.f32 %v3881, %v3953
    %v3955 = vpop.f32.mrb[0].mxu0
    %3956 = vdwg.mxu0
    %3957 = vrot.lane.b32.xlu0 %v2329, 80
    %v3958 = vpop.permute.xlu0 %3957
    %v3961 = vsel %vm191, %v3059, 0
    %3963 = vmatprep.subr.mxu0 0.0
    %3964 = vmatpush1.msra.mxu0 %v3958
    %3965 = vmatprep.subr.mxu0 0.0
    %3966 = vmatpush1.msra.mxu0 0.0
    %3967 = vmatprep.subr.mxu0 0.0
    %3968 = vmatpush1.msra.mxu0 0.0
    %3969 = vmatprep.subr.mxu0 0.0
    %3970 = vmatpush1.msra.mxu0 0.0
    %3971 = vmatprep.subr.mxu0 0.0
    %3972 = vmatpush1.msra.mxu0 0.0
    %3973 = vmatprep.subr.mxu0 0.0
    %3974 = vmatpush1.msra.mxu0 0.0
    %3975 = vmatprep.subr.mxu0 0.0
    %3976 = vmatpush1.msra.mxu0 0.0
    %3977 = vmatprep.subr.mxu0 0.0
    %3978 = vmatpush1.msra.mxu0 0.0
    %3979 = vmatprep.subr.mxu0 0.0
    %3980 = vmatpush1.msra.mxu0 0.0
    %3981 = vmatprep.subr.mxu0 0.0
    %3982 = vmatpush1.msra.mxu0 0.0
    %3983 = vmatprep.subr.mxu0 0.0
    %3984 = vmatpush1.msra.mxu0 0.0
    %3985 = vmatprep.subr.mxu0 0.0
    %3986 = vmatpush1.msra.mxu0 0.0
    %3987 = vmatprep.subr.mxu0 0.0
    %3988 = vmatpush1.msra.mxu0 0.0
    %3989 = vmatprep.subr.mxu0 0.0
    %3990 = vmatpush1.msra.mxu0 0.0
    %3991 = vmatprep.subr.mxu0 0.0
    %3992 = vmatpush1.msra.mxu0 0.0
    %3993 = vmatprep.subr.mxu0 0.0
    %3994 = vmatpush1.msra.mxu0 0.0
    %3995 = vmatprep.subr.mxu0 0.0
    %3996 = vmatpush1.msra.mxu0 0.0
    %3997 = vmatprep.subr.mxu0 0.0
    %3998 = vmatpush1.msra.mxu0 0.0
    %3999 = vmatprep.subr.mxu0 0.0
    %4000 = vmatpush1.msra.mxu0 0.0
    %4001 = vmatprep.subr.mxu0 0.0
    %4002 = vmatpush1.msra.mxu0 0.0
    %4003 = vmatprep.subr.mxu0 0.0
    %4004 = vmatpush1.msra.mxu0 0.0
    %4005 = vmatprep.subr.mxu0 0.0
    %4006 = vmatpush1.msra.mxu0 0.0
    %4007 = vmatprep.subr.mxu0 0.0
    %4008 = vmatpush1.msra.mxu0 0.0
    %4009 = vmatprep.subr.mxu0 0.0
    %4010 = vmatpush1.msra.mxu0 0.0
    %4011 = vmatprep.subr.mxu0 0.0
    %4012 = vmatpush1.msra.mxu0 0.0
    %4013 = vmatprep.subr.mxu0 0.0
    %4014 = vmatpush1.msra.mxu0 0.0
    %4015 = vmatprep.subr.mxu0 0.0
    %4016 = vmatpush1.msra.mxu0 0.0
    %4017 = vmatprep.subr.mxu0 0.0
    %4018 = vmatpush1.msra.mxu0 0.0
    %4019 = vmatprep.subr.mxu0 0.0
    %4020 = vmatpush1.msra.mxu0 0.0
    %4021 = vmatprep.subr.mxu0 0.0
    %4022 = vmatpush1.msra.mxu0 0.0
    %4023 = vmatprep.subr.mxu0 0.0
    %4024 = vmatpush1.msra.mxu0 0.0
    %4025 = vmatprep.subr.mxu0 0.0
    %4026 = vmatpush1.msra.mxu0 0.0
    %4027 = vmatprep.mubr.f32.mxu0 0.0
    %4028 = vmatmul.mubr.f32.gmra.mrb[0].mxu0 %v3961
    %v4029 = vpop.f32.mrb[0].mxu0
    %v4030 = vadd.f32 0.0, %v4029
    %v4031 = vpop.f32.mrb[0].mxu0
    %4032 = vdwg.mxu0
    %v4034 = vsel %vm191, %v4030, 0
    %4036 = vmatprep.subr.mxu0 0.0
    %4037 = vmatpush1.msra.mxu0 %v2334
    %4038 = vmatprep.subr.mxu0 0.0
    %4039 = vmatpush1.msra.mxu0 0.0
    %4040 = vmatprep.subr.mxu0 0.0
    %4041 = vmatpush1.msra.mxu0 0.0
    %4042 = vmatprep.subr.mxu0 0.0
    %4043 = vmatpush1.msra.mxu0 0.0
    %4044 = vmatprep.subr.mxu0 0.0
    %4045 = vmatpush1.msra.mxu0 0.0
    %4046 = vmatprep.subr.mxu0 0.0
    %4047 = vmatpush1.msra.mxu0 0.0
    %4048 = vmatprep.subr.mxu0 0.0
    %4049 = vmatpush1.msra.mxu0 0.0
    %4050 = vmatprep.subr.mxu0 0.0
    %4051 = vmatpush1.msra.mxu0 0.0
    %4052 = vmatprep.subr.mxu0 0.0
    %4053 = vmatpush1.msra.mxu0 0.0
    %4054 = vmatprep.subr.mxu0 0.0
    %4055 = vmatpush1.msra.mxu0 0.0
    %4056 = vmatprep.subr.mxu0 0.0
    %4057 = vmatpush1.msra.mxu0 0.0
    %4058 = vmatprep.subr.mxu0 0.0
    %4059 = vmatpush1.msra.mxu0 0.0
    %4060 = vmatprep.subr.mxu0 0.0
    %4061 = vmatpush1.msra.mxu0 0.0
    %4062 = vmatprep.subr.mxu0 0.0
    %4063 = vmatpush1.msra.mxu0 0.0
    %4064 = vmatprep.subr.mxu0 0.0
    %4065 = vmatpush1.msra.mxu0 0.0
    %4066 = vmatprep.subr.mxu0 0.0
    %4067 = vmatpush1.msra.mxu0 0.0
    %4068 = vmatprep.subr.mxu0 0.0
    %4069 = vmatpush1.msra.mxu0 0.0
    %4070 = vmatprep.subr.mxu0 0.0
    %4071 = vmatpush1.msra.mxu0 0.0
    %4072 = vmatprep.subr.mxu0 0.0
    %4073 = vmatpush1.msra.mxu0 0.0
    %4074 = vmatprep.subr.mxu0 0.0
    %4075 = vmatpush1.msra.mxu0 0.0
    %4076 = vmatprep.subr.mxu0 0.0
    %4077 = vmatpush1.msra.mxu0 0.0
    %4078 = vmatprep.subr.mxu0 0.0
    %4079 = vmatpush1.msra.mxu0 0.0
    %4080 = vmatprep.subr.mxu0 0.0
    %4081 = vmatpush1.msra.mxu0 0.0
    %4082 = vmatprep.subr.mxu0 0.0
    %4083 = vmatpush1.msra.mxu0 0.0
    %4084 = vmatprep.subr.mxu0 0.0
    %4085 = vmatpush1.msra.mxu0 0.0
    %4086 = vmatprep.subr.mxu0 0.0
    %4087 = vmatpush1.msra.mxu0 0.0
    %4088 = vmatprep.subr.mxu0 0.0
    %4089 = vmatpush1.msra.mxu0 0.0
    %4090 = vmatprep.subr.mxu0 0.0
    %4091 = vmatpush1.msra.mxu0 0.0
    %4092 = vmatprep.subr.mxu0 0.0
    %4093 = vmatpush1.msra.mxu0 0.0
    %4094 = vmatprep.subr.mxu0 0.0
    %4095 = vmatpush1.msra.mxu0 0.0
    %4096 = vmatprep.subr.mxu0 0.0
    %4097 = vmatpush1.msra.mxu0 0.0
    %4098 = vmatprep.subr.mxu0 0.0
    %4099 = vmatpush1.msra.mxu0 0.0
    %4100 = vmatprep.mubr.f32.mxu0 0.0
    %4101 = vmatmul.mubr.f32.gmra.mrb[0].mxu0 %v4034
    %v4102 = vpop.f32.mrb[0].mxu0
    %v4103 = vadd.f32 0.0, %v4102
    %v4104 = vpop.f32.mrb[0].mxu0
    %4105 = vdwg.mxu0
    %v4106 = vadd.f32 %v3954, %v4103
    %4107 = vrot.lane.b32.xlu0 %v2329, 72
    %v4108 = vpop.permute.xlu0 %4107
    %v4111 = vsel %vm191, %v3060, 0
    %4113 = vmatprep.subr.mxu0 0.0
    %4114 = vmatpush1.msra.mxu0 %v4108
    %4115 = vmatprep.subr.mxu0 0.0
    %4116 = vmatpush1.msra.mxu0 0.0
    %4117 = vmatprep.subr.mxu0 0.0
    %4118 = vmatpush1.msra.mxu0 0.0
    %4119 = vmatprep.subr.mxu0 0.0
    %4120 = vmatpush1.msra.mxu0 0.0
    %4121 = vmatprep.subr.mxu0 0.0
    %4122 = vmatpush1.msra.mxu0 0.0
    %4123 = vmatprep.subr.mxu0 0.0
    %4124 = vmatpush1.msra.mxu0 0.0
    %4125 = vmatprep.subr.mxu0 0.0
    %4126 = vmatpush1.msra.mxu0 0.0
    %4127 = vmatprep.subr.mxu0 0.0
    %4128 = vmatpush1.msra.mxu0 0.0
    %4129 = vmatprep.subr.mxu0 0.0
    %4130 = vmatpush1.msra.mxu0 0.0
    %4131 = vmatprep.subr.mxu0 0.0
    %4132 = vmatpush1.msra.mxu0 0.0
    %4133 = vmatprep.subr.mxu0 0.0
    %4134 = vmatpush1.msra.mxu0 0.0
    %4135 = vmatprep.subr.mxu0 0.0
    %4136 = vmatpush1.msra.mxu0 0.0
    %4137 = vmatprep.subr.mxu0 0.0
    %4138 = vmatpush1.msra.mxu0 0.0
    %4139 = vmatprep.subr.mxu0 0.0
    %4140 = vmatpush1.msra.mxu0 0.0
    %4141 = vmatprep.subr.mxu0 0.0
    %4142 = vmatpush1.msra.mxu0 0.0
    %4143 = vmatprep.subr.mxu0 0.0
    %4144 = vmatpush1.msra.mxu0 0.0
    %4145 = vmatprep.subr.mxu0 0.0
    %4146 = vmatpush1.msra.mxu0 0.0
    %4147 = vmatprep.subr.mxu0 0.0
    %4148 = vmatpush1.msra.mxu0 0.0
    %4149 = vmatprep.subr.mxu0 0.0
    %4150 = vmatpush1.msra.mxu0 0.0
    %4151 = vmatprep.subr.mxu0 0.0
    %4152 = vmatpush1.msra.mxu0 0.0
    %4153 = vmatprep.subr.mxu0 0.0
    %4154 = vmatpush1.msra.mxu0 0.0
    %4155 = vmatprep.subr.mxu0 0.0
    %4156 = vmatpush1.msra.mxu0 0.0
    %4157 = vmatprep.subr.mxu0 0.0
    %4158 = vmatpush1.msra.mxu0 0.0
    %4159 = vmatprep.subr.mxu0 0.0
    %4160 = vmatpush1.msra.mxu0 0.0
    %4161 = vmatprep.subr.mxu0 0.0
    %4162 = vmatpush1.msra.mxu0 0.0
    %4163 = vmatprep.subr.mxu0 0.0
    %4164 = vmatpush1.msra.mxu0 0.0
    %4165 = vmatprep.subr.mxu0 0.0
    %4166 = vmatpush1.msra.mxu0 0.0
    %4167 = vmatprep.subr.mxu0 0.0
    %4168 = vmatpush1.msra.mxu0 0.0
    %4169 = vmatprep.subr.mxu0 0.0
    %4170 = vmatpush1.msra.mxu0 0.0
    %4171 = vmatprep.subr.mxu0 0.0
    %4172 = vmatpush1.msra.mxu0 0.0
    %4173 = vmatprep.subr.mxu0 0.0
    %4174 = vmatpush1.msra.mxu0 0.0
    %4175 = vmatprep.subr.mxu0 0.0
    %4176 = vmatpush1.msra.mxu0 0.0
    %4177 = vmatprep.mubr.f32.mxu0 0.0
    %4178 = vmatmul.mubr.f32.gmra.mrb[0].mxu0 %v4111
    %v4179 = vpop.f32.mrb[0].mxu0
    %v4180 = vadd.f32 0.0, %v4179
    %v4181 = vpop.f32.mrb[0].mxu0
    %4182 = vdwg.mxu0
    %v4184 = vsel %vm191, %v4180, 0
    %4186 = vmatprep.subr.mxu0 0.0
    %4187 = vmatpush1.msra.mxu0 %v2335
    %4188 = vmatprep.subr.mxu0 0.0
    %4189 = vmatpush1.msra.mxu0 0.0
    %4190 = vmatprep.subr.mxu0 0.0
    %4191 = vmatpush1.msra.mxu0 0.0
    %4192 = vmatprep.subr.mxu0 0.0
    %4193 = vmatpush1.msra.mxu0 0.0
    %4194 = vmatprep.subr.mxu0 0.0
    %4195 = vmatpush1.msra.mxu0 0.0
    %4196 = vmatprep.subr.mxu0 0.0
    %4197 = vmatpush1.msra.mxu0 0.0
    %4198 = vmatprep.subr.mxu0 0.0
    %4199 = vmatpush1.msra.mxu0 0.0
    %4200 = vmatprep.subr.mxu0 0.0
    %4201 = vmatpush1.msra.mxu0 0.0
    %4202 = vmatprep.subr.mxu0 0.0
    %4203 = vmatpush1.msra.mxu0 0.0
    %4204 = vmatprep.subr.mxu0 0.0
    %4205 = vmatpush1.msra.mxu0 0.0
    %4206 = vmatprep.subr.mxu0 0.0
    %4207 = vmatpush1.msra.mxu0 0.0
    %4208 = vmatprep.subr.mxu0 0.0
    %4209 = vmatpush1.msra.mxu0 0.0
    %4210 = vmatprep.subr.mxu0 0.0
    %4211 = vmatpush1.msra.mxu0 0.0
    %4212 = vmatprep.subr.mxu0 0.0
    %4213 = vmatpush1.msra.mxu0 0.0
    %4214 = vmatprep.subr.mxu0 0.0
    %4215 = vmatpush1.msra.mxu0 0.0
    %4216 = vmatprep.subr.mxu0 0.0
    %4217 = vmatpush1.msra.mxu0 0.0
    %4218 = vmatprep.subr.mxu0 0.0
    %4219 = vmatpush1.msra.mxu0 0.0
    %4220 = vmatprep.subr.mxu0 0.0
    %4221 = vmatpush1.msra.mxu0 0.0
    %4222 = vmatprep.subr.mxu0 0.0
    %4223 = vmatpush1.msra.mxu0 0.0
    %4224 = vmatprep.subr.mxu0 0.0
    %4225 = vmatpush1.msra.mxu0 0.0
    %4226 = vmatprep.subr.mxu0 0.0
    %4227 = vmatpush1.msra.mxu0 0.0
    %4228 = vmatprep.subr.mxu0 0.0
    %4229 = vmatpush1.msra.mxu0 0.0
    %4230 = vmatprep.subr.mxu0 0.0
    %4231 = vmatpush1.msra.mxu0 0.0
    %4232 = vmatprep.subr.mxu0 0.0
    %4233 = vmatpush1.msra.mxu0 0.0
    %4234 = vmatprep.subr.mxu0 0.0
    %4235 = vmatpush1.msra.mxu0 0.0
    %4236 = vmatprep.subr.mxu0 0.0
    %4237 = vmatpush1.msra.mxu0 0.0
    %4238 = vmatprep.subr.mxu0 0.0
    %4239 = vmatpush1.msra.mxu0 0.0
    %4240 = vmatprep.subr.mxu0 0.0
    %4241 = vmatpush1.msra.mxu0 0.0
    %4242 = vmatprep.subr.mxu0 0.0
    %4243 = vmatpush1.msra.mxu0 0.0
    %4244 = vmatprep.subr.mxu0 0.0
    %4245 = vmatpush1.msra.mxu0 0.0
    %4246 = vmatprep.subr.mxu0 0.0
    %4247 = vmatpush1.msra.mxu0 0.0
    %4248 = vmatprep.subr.mxu0 0.0
    %4249 = vmatpush1.msra.mxu0 0.0
    %4250 = vmatprep.mubr.f32.mxu0 0.0
    %4251 = vmatmul.mubr.f32.gmra.mrb[0].mxu0 %v4184
    %v4252 = vpop.f32.mrb[0].mxu0
    %v4253 = vadd.f32 0.0, %v4252
    %v4254 = vpop.f32.mrb[0].mxu0
    %4255 = vdwg.mxu0
    %v4256 = vadd.f32 %v4106, %v4253
    %v4258 = vlaneseq
    %v4259 = vshrl.u32 %v4258, 7
    %v4260 = vsub.s32 0, %v4259
    %v4261 = vrot.slane %v2336, %v4260
    %v4263 = vadd.f32 %v3658, %v4261
    %v4264 = vadd.f32 %v4256, %v4261
    %v4265 = vadd.f32 %v2158, %v4263
    %v4266 = vadd.f32 %v2159, %v4264
    %v4267 = vld [vmem:[%s13] sm:$0x1]
    %v4268 = vld [vmem:[%s14] sm:$0x1]
    %v4269 = vsel %vm91, %v4265, 0.0
    %4270 = vadd.xlane.f32.xlu0 %v4269
    %v4271 = vpop.xlane.xlu0 %4270
    %v4272 = vsel %vm91, %v4266, 0.0
    %4273 = vadd.xlane.f32.xlu0 %v4272
    %v4274 = vpop.xlane.xlu0 %4273
    %v4275 = vmul.f32 %v4271, %v2123
    %v4276 = vmul.f32 %v4274, %v2123
    %v4277 = vsub.f32 %v4265, %v4275
    %v4278 = vsub.f32 %v4266, %v4276
    %v4279 = vmul.f32 %v4277, %v4277
    %v4280 = vmul.f32 %v4278, %v4278
    %v4281 = vsel %vm91, %v4279, 0.0
    %4282 = vadd.xlane.f32.xlu0 %v4281
    %v4283 = vpop.xlane.xlu0 %4282
    %v4284 = vsel %vm91, %v4280, 0.0
    %4285 = vadd.xlane.f32.xlu0 %v4284
    %v4286 = vpop.xlane.xlu0 %4285
    %v4287 = vmul.f32 %v4283, %v2123
    %v4288 = vmul.f32 %v4286, %v2123
    %v4289 = vadd.f32 %v4287, 1e-05
    %v4290 = vadd.f32 %v4288, 1e-05
    %v4291 = vrsqrt.pop %v4289
    %v4292 = vrsqrt.pop %v4290
    %v4293 = vmul.f32 %v4277, %v4291
    %v4294 = vmul.f32 %v4278, %v4292
    %v4296 = vlaneseq
    %v4297 = vshrl.u32 %v4296, 7
    %v4298 = vsub.s32 0, %v4297
    %v4299 = vrot.slane %v4267, %v4298
    %v4301 = vmul.f32 %v4293, %v4299
    %v4302 = vmul.f32 %v4294, %v4299
    %v4304 = vlaneseq
    %v4305 = vshrl.u32 %v4304, 7
    %v4306 = vsub.s32 0, %v4305
    %v4307 = vrot.slane %v4268, %v4306
    %v4309 = vadd.f32 %v4301, %v4307
    %v4310 = vadd.f32 %v4302, %v4307
    %v4311 = vld [vmem:[%s15] sm:$0xff]
    %v4312 = vld [vmem:[%s15 + $0x8] sm:$0xff]
    %v4313 = vld [vmem:[%s15 + $0x10] sm:$0xff]
    %v4314 = vld [vmem:[%s15 + $0x18] sm:$0xff]
    %v4315 = vld [vmem:[%s16] sm:$0x1]
    %v4317 = vlaneseq
    %v4318 = vshrl.u32 %v4317, 7
    %v4319 = vsub.s32 0, %v4318
    %v4320 = vrot.slane %v4315, %v4319
    %v4323 = vsel %vm91, %v4309, 0
    %v4326 = vsel %vm91, %v4310, 0
    %4328 = vmatprep.subr.mxu0 0.0
    %4329 = vmatpush1.msra.mxu0 %v4311
    %4330 = vmatprep.subr.mxu0 0.0
    %4331 = vmatpush1.msra.mxu0 %v4312
    %4332 = vmatprep.subr.mxu0 0.0
    %4333 = vmatpush1.msra.mxu0 %v4313
    %4334 = vmatprep.subr.mxu0 0.0
    %4335 = vmatpush1.msra.mxu0 %v4314
    %4336 = vmatprep.subr.mxu0 0.0
    %4337 = vmatpush1.msra.mxu0 0.0
    %4338 = vmatprep.subr.mxu0 0.0
    %4339 = vmatpush1.msra.mxu0 0.0
    %4340 = vmatprep.subr.mxu0 0.0
    %4341 = vmatpush1.msra.mxu0 0.0
    %4342 = vmatprep.subr.mxu0 0.0
    %4343 = vmatpush1.msra.mxu0 0.0
    %4344 = vmatprep.subr.mxu0 0.0
    %4345 = vmatpush1.msra.mxu0 0.0
    %4346 = vmatprep.subr.mxu0 0.0
    %4347 = vmatpush1.msra.mxu0 0.0
    %4348 = vmatprep.subr.mxu0 0.0
    %4349 = vmatpush1.msra.mxu0 0.0
    %4350 = vmatprep.subr.mxu0 0.0
    %4351 = vmatpush1.msra.mxu0 0.0
    %4352 = vmatprep.subr.mxu0 0.0
    %4353 = vmatpush1.msra.mxu0 0.0
    %4354 = vmatprep.subr.mxu0 0.0
    %4355 = vmatpush1.msra.mxu0 0.0
    %4356 = vmatprep.subr.mxu0 0.0
    %4357 = vmatpush1.msra.mxu0 0.0
    %4358 = vmatprep.subr.mxu0 0.0
    %4359 = vmatpush1.msra.mxu0 0.0
    %4360 = vmatprep.subr.mxu0 0.0
    %4361 = vmatpush1.msra.mxu0 0.0
    %4362 = vmatprep.subr.mxu0 0.0
    %4363 = vmatpush1.msra.mxu0 0.0
    %4364 = vmatprep.subr.mxu0 0.0
    %4365 = vmatpush1.msra.mxu0 0.0
    %4366 = vmatprep.subr.mxu0 0.0
    %4367 = vmatpush1.msra.mxu0 0.0
    %4368 = vmatprep.subr.mxu0 0.0
    %4369 = vmatpush1.msra.mxu0 0.0
    %4370 = vmatprep.subr.mxu0 0.0
    %4371 = vmatpush1.msra.mxu0 0.0
    %4372 = vmatprep.subr.mxu0 0.0
    %4373 = vmatpush1.msra.mxu0 0.0
    %4374 = vmatprep.subr.mxu0 0.0
    %4375 = vmatpush1.msra.mxu0 0.0
    %4376 = vmatprep.subr.mxu0 0.0
    %4377 = vmatpush1.msra.mxu0 0.0
    %4378 = vmatprep.subr.mxu0 0.0
    %4379 = vmatpush1.msra.mxu0 0.0
    %4380 = vmatprep.subr.mxu0 0.0
    %4381 = vmatpush1.msra.mxu0 0.0
    %4382 = vmatprep.subr.mxu0 0.0
    %4383 = vmatpush1.msra.mxu0 0.0
    %4384 = vmatprep.subr.mxu0 0.0
    %4385 = vmatpush1.msra.mxu0 0.0
    %4386 = vmatprep.subr.mxu0 0.0
    %4387 = vmatpush1.msra.mxu0 0.0
    %4388 = vmatprep.subr.mxu0 0.0
    %4389 = vmatpush1.msra.mxu0 0.0
    %4390 = vmatprep.subr.mxu0 0.0
    %4391 = vmatpush1.msra.mxu0 0.0
    %4392 = vmatprep.mubr.f32.mxu0 0.0
    %4393 = vmatmul.mubr.f32.gmra.mrb[0].mxu0 %v4323
    %v4394 = vpop.f32.mrb[0].mxu0
    %v4395 = vadd.f32 %v4320, %v4394
    %v4396 = vpop.f32.mrb[0].mxu0
    %4397 = vmatprep.mubr.f32.mxu0 0.0
    %4398 = vmatmul.mubr.f32.gmra.mrb[0].mxu0 %v4326
    %v4399 = vpop.f32.mrb[0].mxu0
    %v4400 = vadd.f32 %v4320, %v4399
    %v4401 = vpop.f32.mrb[0].mxu0
    %4402 = vdwg.mxu0
    %v4403 = vmax.f32 %v4395, 0.0
    %v4404 = vmax.f32 %v4400, 0.0
    %v4405 = vld [vmem:[%s17] sm:$0xff]
    %v4406 = vld [vmem:[%s17 + $0x8] sm:$0xff]
    %v4407 = vld [vmem:[%s17 + $0x10] sm:$0xff]
    %v4408 = vld [vmem:[%s17 + $0x18] sm:$0xff]
    %v4409 = vld [vmem:[%s17 + $0x20] sm:$0xff]
    %v4410 = vld [vmem:[%s17 + $0x28] sm:$0xff]
    %v4411 = vld [vmem:[%s17 + $0x30] sm:$0xff]
    %v4412 = vld [vmem:[%s17 + $0x38] sm:$0xff]
    %v4413 = vld [vmem:[%s18] sm:$0x1]
    %v4415 = vlaneseq
    %v4416 = vshrl.u32 %v4415, 7
    %v4417 = vsub.s32 0, %v4416
    %v4418 = vrot.slane %v4413, %v4417
    %vm4420 = vcmask 523264
    %v4422 = vsel %vm4420, %v4403, 0
    %v4425 = vsel %vm4420, %v4404, 0
    %4427 = vmatprep.subr.mxu0 0.0
    %4428 = vmatpush1.msra.mxu0 %v4405
    %4429 = vmatprep.subr.mxu0 0.0
    %4430 = vmatpush1.msra.mxu0 %v4406
    %4431 = vmatprep.subr.mxu0 0.0
    %4432 = vmatpush1.msra.mxu0 %v4407
    %4433 = vmatprep.subr.mxu0 0.0
    %4434 = vmatpush1.msra.mxu0 %v4408
    %4435 = vmatprep.subr.mxu0 0.0
    %4436 = vmatpush1.msra.mxu0 %v4409
    %4437 = vmatprep.subr.mxu0 0.0
    %4438 = vmatpush1.msra.mxu0 %v4410
    %4439 = vmatprep.subr.mxu0 0.0
    %4440 = vmatpush1.msra.mxu0 %v4411
    %4441 = vmatprep.subr.mxu0 0.0
    %4442 = vmatpush1.msra.mxu0 %v4412
    %4443 = vmatprep.subr.mxu0 0.0
    %4444 = vmatpush1.msra.mxu0 0.0
    %4445 = vmatprep.subr.mxu0 0.0
    %4446 = vmatpush1.msra.mxu0 0.0
    %4447 = vmatprep.subr.mxu0 0.0
    %4448 = vmatpush1.msra.mxu0 0.0
    %4449 = vmatprep.subr.mxu0 0.0
    %4450 = vmatpush1.msra.mxu0 0.0
    %4451 = vmatprep.subr.mxu0 0.0
    %4452 = vmatpush1.msra.mxu0 0.0
    %4453 = vmatprep.subr.mxu0 0.0
    %4454 = vmatpush1.msra.mxu0 0.0
    %4455 = vmatprep.subr.mxu0 0.0
    %4456 = vmatpush1.msra.mxu0 0.0
    %4457 = vmatprep.subr.mxu0 0.0
    %4458 = vmatpush1.msra.mxu0 0.0
    %4459 = vmatprep.subr.mxu0 0.0
    %4460 = vmatpush1.msra.mxu0 0.0
    %4461 = vmatprep.subr.mxu0 0.0
    %4462 = vmatpush1.msra.mxu0 0.0
    %4463 = vmatprep.subr.mxu0 0.0
    %4464 = vmatpush1.msra.mxu0 0.0
    %4465 = vmatprep.subr.mxu0 0.0
    %4466 = vmatpush1.msra.mxu0 0.0
    %4467 = vmatprep.subr.mxu0 0.0
    %4468 = vmatpush1.msra.mxu0 0.0
    %4469 = vmatprep.subr.mxu0 0.0
    %4470 = vmatpush1.msra.mxu0 0.0
    %4471 = vmatprep.subr.mxu0 0.0
    %4472 = vmatpush1.msra.mxu0 0.0
    %4473 = vmatprep.subr.mxu0 0.0
    %4474 = vmatpush1.msra.mxu0 0.0
    %4475 = vmatprep.subr.mxu0 0.0
    %4476 = vmatpush1.msra.mxu0 0.0
    %4477 = vmatprep.subr.mxu0 0.0
    %4478 = vmatpush1.msra.mxu0 0.0
    %4479 = vmatprep.subr.mxu0 0.0
    %4480 = vmatpush1.msra.mxu0 0.0
    %4481 = vmatprep.subr.mxu0 0.0
    %4482 = vmatpush1.msra.mxu0 0.0
    %4483 = vmatprep.subr.mxu0 0.0
    %4484 = vmatpush1.msra.mxu0 0.0
    %4485 = vmatprep.subr.mxu0 0.0
    %4486 = vmatpush1.msra.mxu0 0.0
    %4487 = vmatprep.subr.mxu0 0.0
    %4488 = vmatpush1.msra.mxu0 0.0
    %4489 = vmatprep.subr.mxu0 0.0
    %4490 = vmatpush1.msra.mxu0 0.0
    %4491 = vmatprep.mubr.f32.mxu0 0.0
    %4492 = vmatmul.mubr.f32.gmra.mrb[0].mxu0 %v4422
    %v4493 = vpop.f32.mrb[0].mxu0
    %v4494 = vadd.f32 %v4418, %v4493
    %v4495 = vpop.f32.mrb[0].mxu0
    %4496 = vmatprep.mubr.f32.mxu0 0.0
    %4497 = vmatmul.mubr.f32.gmra.mrb[0].mxu0 %v4425
    %v4498 = vpop.f32.mrb[0].mxu0
    %v4499 = vadd.f32 %v4418, %v4498
    %v4500 = vpop.f32.mrb[0].mxu0
    %4501 = vdwg.mxu0
    %v4502 = vadd.f32 %v4309, %v4494
    %v4503 = vadd.f32 %v4310, %v4499
    %v4504 = vld [vmem:[%s19] sm:$0x1]
    %v4505 = vld [vmem:[%s20] sm:$0x1]
    %v4506 = vsel %vm91, %v4502, 0.0
    %4507 = vadd.xlane.f32.xlu0 %v4506
    %v4508 = vpop.xlane.xlu0 %4507
    %v4509 = vsel %vm91, %v4503, 0.0
    %4510 = vadd.xlane.f32.xlu0 %v4509
    %v4511 = vpop.xlane.xlu0 %4510
    %v4512 = vmul.f32 %v4508, %v2123
    %v4513 = vmul.f32 %v4511, %v2123
    %v4514 = vsub.f32 %v4502, %v4512
    %v4515 = vsub.f32 %v4503, %v4513
    %v4516 = vmul.f32 %v4514, %v4514
    %v4517 = vmul.f32 %v4515, %v4515
    %v4518 = vsel %vm91, %v4516, 0.0
    %4519 = vadd.xlane.f32.xlu0 %v4518
    %v4520 = vpop.xlane.xlu0 %4519
    %v4521 = vsel %vm91, %v4517, 0.0
    %4522 = vadd.xlane.f32.xlu0 %v4521
    %v4523 = vpop.xlane.xlu0 %4522
    %v4524 = vmul.f32 %v4520, %v2123
    %v4525 = vmul.f32 %v4523, %v2123
    %v4526 = vadd.f32 %v4524, 1e-05
    %v4527 = vadd.f32 %v4525, 1e-05
    %v4528 = vrsqrt.pop %v4526
    %v4529 = vrsqrt.pop %v4527
    %v4530 = vmul.f32 %v4514, %v4528
    %v4531 = vmul.f32 %v4515, %v4529
    %v4533 = vlaneseq
    %v4534 = vshrl.u32 %v4533, 7
    %v4535 = vsub.s32 0, %v4534
    %v4536 = vrot.slane %v4504, %v4535
    %v4538 = vmul.f32 %v4530, %v4536
    %v4539 = vmul.f32 %v4531, %v4536
    %v4541 = vlaneseq
    %v4542 = vshrl.u32 %v4541, 7
    %v4543 = vsub.s32 0, %v4542
    %v4544 = vrot.slane %v4505, %v4543
    %v4546 = vadd.f32 %v4538, %v4544
    %v4547 = vadd.f32 %v4539, %v4544
    %4548 = vst.msk [vmem:[#allocation5] sm:$0xff] %vm91, %v4546
    %4549 = vst.msk [vmem:[#allocation5 + $0x8] sm:$0xff] %vm91, %v4547
    // Predicated region
    $region90: #{tpu_custom_call.1} parent=1 // pred_check
      _
    $region91: #{tpu_custom_call.1} parent=1 // pred_check_branch
      %4551 = sbr.rel (0) target = $region93
    $region92: #{tpu_custom_call.1} parent=1 // pred_region
      %s4553 = ssub.s32 256, 256
      %4554 = vsyncadd [#allocation4], %s4553
      %s4555 = sshll.u32 [#allocation5], 4
      %s4556 = int_to_ptr.vmem [resolvable:$true] %s4555
      %4561 = dma.vmem_to_hbm [thread:$0]  %s4556, 256, %s21, [#allocation4], 128, 128, 8
    $region93: #{tpu_custom_call.1} parent=1 // pred_fallthru
      _
    // Predicated region
    $region94: #{tpu_custom_call.1} parent=1 // pred_check
      _
    $region95: #{tpu_custom_call.1} parent=1 // pred_check_branch
      %4563 = sbr.rel (0) target = $region97
    $region96: #{tpu_custom_call.1} parent=1 // pred_region
      %4564 = dma.done [#allocation4], 256
    $region97: #{tpu_custom_call.1} parent=1 // pred_fallthru
      _
    %4565 = vsyncpa [#allocation3], 1
    %4566 = vsyncpa [#allocation4], 1

</llo_original>
